<compile_context>
chip_gen: v5e
topology: v5e:2x2
jax: 0.10.0
libtpu: 0.0.40
codegen_flags: <defaults>
</compile_context>

<pallas_src>
import math
import functools

import jax
import jax.numpy as jnp
from jax import lax
from jax.experimental import pallas as pl
from jax.experimental.pallas import tpu as pltpu

LN_EPS = 1e-5
MASK_VALUE = -1e4  # matches HF GPT-2: w = w*b - 1e4*(1-b)

# Flipped to False at runtime if this jax build rejects pl.Buffered(1).
_SINGLE_BUFFER_CONSTS = True


# ----------------------------- kernel helpers -----------------------------
def _layer_norm(x, w, b, eps=LN_EPS):
    mu = jnp.mean(x, axis=-1, keepdims=True)
    var = jnp.mean((x - mu) ** 2, axis=-1, keepdims=True)
    return (x - mu) * lax.rsqrt(var + eps) * w + b


def _gelu(x):
    # pytorch_transformers GPT-2 gelu (tanh approximation)
    return 0.5 * x * (1.0 + jnp.tanh(
        math.sqrt(2.0 / math.pi) * (x + 0.044715 * x ** 3)))


def _softmax(x):
    m = jnp.max(x, axis=-1, keepdims=True)
    e = jnp.exp(x - m)
    # approx reciprocal runs on the EUP (its own bundle slot), not the VALU
    return e * pl.reciprocal(jnp.sum(e, axis=-1, keepdims=True), approx=True)


# ----------------------------- Pallas kernels ------------------------------
def gpt2_block_kernel(x_ref, ln1_w, ln1_b, w_qkv, b_qkv, w_ao, b_ao,
                      ln2_w, ln2_b, w_fc, b_fc, w_mo, b_mo,
                      *rest, n_head, q_tile, ff_chunk, apply_final_ln):
    """One GPT-2 block (LN1 -> causal MHA -> residual -> LN2 -> MLP ->
    residual [-> final LN if last layer]) for one (batch, q-tile) grid cell.

    x_ref holds the FULL sequence [T, D] for the current batch element; the
    output block is the [Tq, D] slab of query rows for this grid step."""
    if apply_final_ln:
        lnf_w, lnf_b, out_ref, qkv_vmem, ctx_vmem = rest
    else:
        out_ref, qkv_vmem, ctx_vmem = rest

    T, D = x_ref.shape
    Hd = D // n_head
    Tq = q_tile
    n_q = T // Tq
    n_ff = (4 * D) // ff_chunk
    qi = pl.program_id(1)

    # ---- qi == 0 (once per batch element): LN1 + c_attn for the whole
    # sequence, written row-tile by row-tile into a persistent bf16 VMEM
    # scratch (bounds the f32 transient to [Tq, 3D]). The scratch carries
    # across the inner ("arbitrary") q-tile grid axis.
    @pl.when(qi == 0)
    def _():
        def fill(t, carry):
            r0 = pl.multiple_of(t * Tq, Tq)
            xc = x_ref[pl.ds(r0, Tq), :]
            hc = _layer_norm(xc, ln1_w[...], ln1_b[...])
            qkv = jnp.dot(hc.astype(jnp.bfloat16), w_qkv[...],
                          preferred_element_type=jnp.float32) + b_qkv[...]
            qkv_vmem[pl.ds(r0, Tq), :] = qkv.astype(jnp.bfloat16)
            return carry
        lax.fori_loop(0, n_q, fill, 0)

    q0 = pl.multiple_of(qi * Tq, Tq)
    xq = x_ref[pl.ds(q0, Tq), :]                 # f32 residual input [Tq, D]

    # causal mask for this query tile (rows q0..q0+Tq-1 vs all T key columns)
    row = q0 + lax.broadcasted_iota(jnp.int32, (Tq, T), 0)
    col = lax.broadcasted_iota(jnp.int32, (Tq, T), 1)
    causal = col <= row

    inv_scale = 1.0 / math.sqrt(Hd)              # scale=True -> / sqrt(head_dim)

    # Per-head attention. Static lane offsets (h*Hd) + dynamic sublane start
    # (q0) slice the VMEM scratch ref per iteration, so the live set is only
    # [Tq|T, Hd] tiles. The bf16 ctx assembled across heads lets c_proj run as
    # ONE full-K [Tq,D]@[D,D] matmul (K=D, not H matmuls with K=Hd that
    # underfill the 256-deep MXU on v6e/v7x).
    # TODO(synk): on v5e (128-deep MXU, single vst slot) the per-head fused
    #             c_proj accumulation may be the better trade.
    for hh in range(n_head):
        qs, ks, vs = hh * Hd, D + hh * Hd, 2 * D + hh * Hd
        qh = qkv_vmem[pl.ds(q0, Tq), qs:qs + Hd]            # bf16 [Tq, Hd]
        kh = qkv_vmem[:, ks:ks + Hd]                        # bf16 [T, Hd]
        vh = qkv_vmem[:, vs:vs + Hd]                        # bf16 [T, Hd]
        # q @ k^T without an explicit transpose: contract dim 1 with dim 1.
        s = lax.dot_general(qh, kh, (((1,), (1,)), ((), ())),
                            preferred_element_type=jnp.float32) * inv_scale
        s = jnp.where(causal, s, MASK_VALUE)     # exact HF masking, one vsel
        p = _softmax(s)                          # f32 [Tq, T]
        ctx_h = jnp.dot(p.astype(jnp.bfloat16), vh,
                        preferred_element_type=jnp.float32)
        ctx_vmem[:, qs:qs + Hd] = ctx_h.astype(jnp.bfloat16)

    attn = jnp.dot(ctx_vmem[...], w_ao[...],
                   preferred_element_type=jnp.float32) + b_ao[...]
    x1 = xq + attn

    # ---- MLP, tiled along the 4D (ffn) axis: gelu intermediate is bounded to
    # [Tq, ff_chunk] and the c_proj contraction is accumulated chunk by chunk.
    h2 = _layer_norm(x1, ln2_w[...], ln2_b[...]).astype(jnp.bfloat16)
    mlp = None
    for c in range(n_ff):
        c0 = c * ff_chunk
        g = _gelu(jnp.dot(h2, w_fc[:, c0:c0 + ff_chunk],
                          preferred_element_type=jnp.float32)
                  + b_fc[:, c0:c0 + ff_chunk])
        part = jnp.dot(g.astype(jnp.bfloat16), w_mo[c0:c0 + ff_chunk, :],
                       preferred_element_type=jnp.float32)
        mlp = part if mlp is None else mlp + part
    y = x1 + mlp + b_mo[...]

    if apply_final_ln:
        # time_ln_f fused into the last block's epilogue (pure VPU work).
        y = _layer_norm(y, lnf_w[...], lnf_b[...])
    out_ref[...] = y


def ln_kernel(x_ref, w_ref, b_ref, out_ref):
    out_ref[...] = _layer_norm(x_ref[...], w_ref[...], b_ref[...])


# ------------------------------ host wrappers -------------------------------
def _const_spec(a):
    """Whole array resident in VMEM, same block for every grid step.
    Single-buffered: constants never change block index, so double-buffering
    them only wastes VMEM."""
    assert a.ndim == 2
    idx = lambda b, q: (0, 0)
    if _SINGLE_BUFFER_CONSTS:
        return pl.BlockSpec(a.shape, idx, pipeline_mode=pl.Buffered(1))
    return pl.BlockSpec(a.shape, idx)


def _pick_row_tile(n, target=128):
    """Largest divisor of n that is <= target and a multiple of 8 (or == n)."""
    for d in range(min(n, target), 0, -1):
        if n % d == 0 and (d % 8 == 0 or d == n):
            return d
    return n


def _pick_ff_chunk(nf, target=2048):
    """Largest divisor of nf that is <= target and a multiple of 128 (or == nf)."""
    for d in range(min(nf, target), 0, -1):
        if nf % d == 0 and (d % 128 == 0 or d == nf):
            return d
    return nf


def _vmem_cap_bytes():
    try:
        cap = int(pltpu.get_tpu_info().vmem_capacity_bytes)
    except Exception:
        cap = 64 << 20   # be safe for the smallest per-TC VMEM (v7x)
    return int(0.9 * cap)


def run_block(hidden, layer_params, n_head, final_ln=None):
    B, T, D = hidden.shape
    assert D % n_head == 0
    Tq = _pick_row_tile(T)
    Q = T // Tq
    ffc = _pick_ff_chunk(4 * D)

    consts = list(layer_params) + (list(final_ln) if final_ln is not None else [])
    in_specs = [pl.BlockSpec((None, T, D), lambda b, q: (b, 0, 0))] + \
               [_const_spec(p) for p in consts]
    out_specs = pl.BlockSpec((None, Tq, D), lambda b, q: (b, q, 0))

    # Scoped-VMEM budget from the actual resident + transient footprint
    # (+30% headroom), clamped to the chip's physical VMEM.
    weight_bytes = sum(int(p.size) * p.dtype.itemsize for p in consts)
    if not _SINGLE_BUFFER_CONSTS:
        weight_bytes *= 2
    resident = (weight_bytes
                + 2 * T * D * 4          # x block (double-buffered input)
                + 2 * Tq * D * 4         # out block (double-buffered output)
                + T * 3 * D * 2          # qkv scratch (bf16)
                + Tq * D * 2)            # ctx scratch (bf16)
    transient = (2 * Tq * T * 4          # per-head scores + probs (f32)
                 + 6 * Tq * 3 * D        # qkv row-tile f32 + bf16 copy
                 + 3 * Tq * ffc * 4      # gelu chunk (f32 + bf16 copy)
                 + 8 * Tq * D * 4)       # LN / residual temporaries
    vmem_limit = min(max(int(1.3 * (resident + transient)), 32 << 20),
                     _vmem_cap_bytes())

    # advisory scheduling hint for XLA
    flops = int(B * (24 * T * D * D + 4 * T * T * D))
    transcendentals = int(B * (n_head * T * T + 5 * T * D))
    bytes_accessed = int(weight_bytes + 2 * B * T * D * 4)

    kern = functools.partial(gpt2_block_kernel, n_head=n_head, q_tile=Tq,
                             ff_chunk=ffc, apply_final_ln=final_ln is not None)
    return pl.pallas_call(
        kern,
        out_shape=jax.ShapeDtypeStruct((B, T, D), jnp.float32),
        grid=(B, Q),
        in_specs=in_specs,
        out_specs=out_specs,
        scratch_shapes=[pltpu.VMEM((T, 3 * D), jnp.bfloat16),   # qkv (persists)
                        pltpu.VMEM((Tq, D), jnp.bfloat16)],     # per-tile ctx
        compiler_params=pltpu.CompilerParams(
            # batch items are independent (megacore shards them); the q-tile
            # axis carries the qkv scratch, so it must stay "arbitrary".
            dimension_semantics=("parallel", "arbitrary"),
            vmem_limit_bytes=vmem_limit),
        cost_estimate=pl.CostEstimate(flops=flops,
                                      transcendentals=transcendentals,
                                      bytes_accessed=bytes_accessed),
    )(hidden, *consts)


def run_final_ln(hidden, w, b):
    # Only used when n_layer == 0; otherwise ln_f is fused into the last block.
    B, T, D = hidden.shape
    return pl.pallas_call(
        ln_kernel,
        out_shape=jax.ShapeDtypeStruct((B, T, D), jnp.float32),
        grid=(B,),
        in_specs=[pl.BlockSpec((None, T, D), lambda i: (i, 0, 0)),
                  pl.BlockSpec(w.shape, lambda i: (0, 0)),
                  pl.BlockSpec(b.shape, lambda i: (0, 0))],
        out_specs=pl.BlockSpec((None, T, D), lambda i: (i, 0, 0)),
        compiler_params=pltpu.CompilerParams(
            dimension_semantics=("parallel",)),
    )(hidden, w, b)


def timer_gpt2_forward(input_ids, cluster, params, n_head):
    B, T = input_ids.shape
    position_ids = jnp.arange(T, dtype=jnp.int32)
    # embedding gathers are glue (plain JAX); the hot path lives in the kernels
    inputs_embeds = params["wte"][input_ids]
    position_embeds = params["wpe"][position_ids][None, :, :]
    cluster_embeds = params["wce"][cluster]
    hidden = inputs_embeds + position_embeds + cluster_embeds
    # self.drop(hidden): identity in eval mode
    layers = params["layers"]
    n_layer = len(layers)
    if n_layer == 0:
        return run_final_ln(hidden, params["ln_f_w"], params["ln_f_b"])
    for i, layer in enumerate(layers):
        fin = (params["ln_f_w"], params["ln_f_b"]) if i == n_layer - 1 else None
        hidden = run_block(hidden, layer, n_head, final_ln=fin)
    return hidden


# ------------------------------ parameter init ------------------------------
def init_params(key, *, vocab_size, n_positions, n_cluster, n_embd, n_layer,
                initializer_range):
    D = n_embd
    std = initializer_range
    keys = iter(jax.random.split(key, 3 + 4 * n_layer))

    def nrm(k, shape, dtype=jnp.float32):
        return (std * jax.random.normal(k, shape, dtype=jnp.float32)).astype(dtype)

    params = {
        "wte": nrm(next(keys), (vocab_size, D)),
        "wpe": nrm(next(keys), (n_positions, D)),
        "wce": nrm(next(keys), (n_cluster, D)),
        "ln_f_w": jnp.ones((1, D), jnp.float32),
        "ln_f_b": jnp.zeros((1, D), jnp.float32),
        "layers": [],
    }
    for _ in range(n_layer):
        layer = [
            jnp.ones((1, D), jnp.float32),                 # ln_1 weight
            jnp.zeros((1, D), jnp.float32),                # ln_1 bias
            nrm(next(keys), (D, 3 * D), jnp.bfloat16),     # attn c_attn W (bf16)
            jnp.zeros((1, 3 * D), jnp.float32),            # attn c_attn b
            nrm(next(keys), (D, D), jnp.bfloat16),         # attn c_proj W (bf16)
            jnp.zeros((1, D), jnp.float32),                # attn c_proj b
            jnp.ones((1, D), jnp.float32),                 # ln_2 weight
            jnp.zeros((1, D), jnp.float32),                # ln_2 bias
            nrm(next(keys), (D, 4 * D), jnp.bfloat16),     # mlp c_fc W (bf16)
            jnp.zeros((1, 4 * D), jnp.float32),            # mlp c_fc b
            nrm(next(keys), (4 * D, D), jnp.bfloat16),     # mlp c_proj W (bf16)
            jnp.zeros((1, D), jnp.float32),                # mlp c_proj b
        ]
        params["layers"].append(layer)
    return params


# ---------------------------------- main ------------------------------------
if __name__ == "__main__":
    # small, deterministic config
    cfg = dict(vocab_size=50, n_positions=16, n_cluster=6,
               n_embd=32, n_layer=2, initializer_range=0.02)
    n_head = 4
    B, T = 2, 8

    root = jax.random.PRNGKey(0)
    k_params, k_ids, k_clu = jax.random.split(root, 3)
    params = init_params(k_params, **cfg)

    input_ids = jax.random.randint(k_ids, (B, T), 0, cfg["vocab_size"],
                                   dtype=jnp.int32)
    cluster = jax.random.randint(k_clu, (B, T), 0, cfg["n_cluster"],
                                 dtype=jnp.int32)

    try:
        out = timer_gpt2_forward(input_ids, cluster, params, n_head)
        out = jax.block_until_ready(out)
    except Exception:
        # Guard: if this jax build rejects single-buffered constant blocks
        # (pl.Buffered(1)), fall back to default double-buffering and retry.
        _SINGLE_BUFFER_CONSTS = False
        out = timer_gpt2_forward(input_ids, cluster, params, n_head)
        out = jax.block_until_ready(out)

    assert out.shape == (B, T, cfg["n_embd"]) and out.dtype == jnp.float32
    print("KERNEL_OK")
</pallas_src>

<mosaic_0001>
module attributes {stable_mosaic.version = 11 : i64} {
  func.func @gpt2_block_kernel(%arg0: i32, %arg1: i32, %arg2: memref<1x8x32xf32, #tpu.memory_space<vmem>>, %arg3: memref<1x32xf32, #tpu.memory_space<vmem>>, %arg4: memref<1x32xf32, #tpu.memory_space<vmem>>, %arg5: memref<32x96xbf16, #tpu.memory_space<vmem>>, %arg6: memref<1x96xf32, #tpu.memory_space<vmem>>, %arg7: memref<32x32xbf16, #tpu.memory_space<vmem>>, %arg8: memref<1x32xf32, #tpu.memory_space<vmem>>, %arg9: memref<1x32xf32, #tpu.memory_space<vmem>>, %arg10: memref<1x32xf32, #tpu.memory_space<vmem>>, %arg11: memref<32x128xbf16, #tpu.memory_space<vmem>>, %arg12: memref<1x128xf32, #tpu.memory_space<vmem>>, %arg13: memref<128x32xbf16, #tpu.memory_space<vmem>>, %arg14: memref<1x32xf32, #tpu.memory_space<vmem>>, %arg15: memref<1x8x32xf32, #tpu.memory_space<vmem>>, %arg16: memref<8x96xbf16, #tpu.memory_space<vmem>>, %arg17: memref<8x32xbf16, #tpu.memory_space<vmem>>) attributes {dimension_semantics = [#tpu.dimension_semantics<parallel>, #tpu.dimension_semantics<arbitrary>], iteration_bounds = array<i64: 2, 1>, scalar_prefetch = 0 : i64, scratch_operands = 2 : i64, tpu.core_type = #tpu.core_type<tc>, window_params = [{transform_indices = @transform_0, window_bounds = array<i64: 1, 8, 32>}, {pipeline_mode = #tpu.pipeline_mode<synchronous>, transform_indices = @transform_1, window_bounds = array<i64: 1, 32>}, {pipeline_mode = #tpu.pipeline_mode<synchronous>, transform_indices = @transform_2, window_bounds = array<i64: 1, 32>}, {pipeline_mode = #tpu.pipeline_mode<synchronous>, transform_indices = @transform_3, window_bounds = array<i64: 32, 96>}, {pipeline_mode = #tpu.pipeline_mode<synchronous>, transform_indices = @transform_4, window_bounds = array<i64: 1, 96>}, {pipeline_mode = #tpu.pipeline_mode<synchronous>, transform_indices = @transform_5, window_bounds = array<i64: 32, 32>}, {pipeline_mode = #tpu.pipeline_mode<synchronous>, transform_indices = @transform_6, window_bounds = array<i64: 1, 32>}, {pipeline_mode = #tpu.pipeline_mode<synchronous>, transform_indices = @transform_7, window_bounds = array<i64: 1, 32>}, {pipeline_mode = #tpu.pipeline_mode<synchronous>, transform_indices = @transform_8, window_bounds = array<i64: 1, 32>}, {pipeline_mode = #tpu.pipeline_mode<synchronous>, transform_indices = @transform_9, window_bounds = array<i64: 32, 128>}, {pipeline_mode = #tpu.pipeline_mode<synchronous>, transform_indices = @transform_10, window_bounds = array<i64: 1, 128>}, {pipeline_mode = #tpu.pipeline_mode<synchronous>, transform_indices = @transform_11, window_bounds = array<i64: 128, 32>}, {pipeline_mode = #tpu.pipeline_mode<synchronous>, transform_indices = @transform_12, window_bounds = array<i64: 1, 32>}, {transform_indices = @transform_13, window_bounds = array<i64: 1, 8, 32>}]} {
    %c0_i32 = arith.constant 0 : i32
    %0 = arith.cmpi eq, %arg1, %c0_i32 : i32
    %1 = arith.extui %0 : i1 to i32
    %c0_i32_0 = arith.constant 0 : i32
    %2 = arith.cmpi ne, %1, %c0_i32_0 : i32
    scf.if %2 {
      %c0_i32_75 = arith.constant 0 : i32
      %c8_i32_76 = arith.constant 8 : i32
      %165 = arith.muli %c0_i32_75, %c8_i32_76 : i32
      %166 = tpu.assume_multiple %165, 8 : i32
      %c0_77 = arith.constant 0 : index
      %167 = arith.index_cast %166 : i32 to index
      %c0_78 = arith.constant 0 : index
      %168 = vector.load %arg2[%c0_77, %167, %c0_78] : memref<1x8x32xf32, #tpu.memory_space<vmem>>, vector<1x8x32xf32>
      %169 = vector.shape_cast %168 : vector<1x8x32xf32> to vector<8x32xf32>
      %c0_79 = arith.constant 0 : index
      %c0_80 = arith.constant 0 : index
      %170 = vector.load %arg3[%c0_79, %c0_80] : memref<1x32xf32, #tpu.memory_space<vmem>>, vector<1x32xf32>
      %c0_81 = arith.constant 0 : index
      %c0_82 = arith.constant 0 : index
      %171 = vector.load %arg4[%c0_81, %c0_82] : memref<1x32xf32, #tpu.memory_space<vmem>>, vector<1x32xf32>
      %cst_83 = arith.constant dense<0.000000e+00> : vector<8xf32>
      %172 = vector.multi_reduction <add>, %169, %cst_83 [1] : vector<8x32xf32> to vector<8xf32>
      %173 = vector.shape_cast %172 : vector<8xf32> to vector<8x1xf32>
      %cst_84 = arith.constant 3.200000e+01 : f32
      %174 = vector.broadcast %cst_84 : f32 to vector<8x1xf32>
      %175 = arith.divf %173, %174 : vector<8x1xf32>
      %176 = vector.broadcast %175 : vector<8x1xf32> to vector<8x32xf32>
      %177 = arith.subf %169, %176 : vector<8x32xf32>
      %178 = arith.mulf %177, %177 : vector<8x32xf32>
      %cst_85 = arith.constant dense<0.000000e+00> : vector<8xf32>
      %179 = vector.multi_reduction <add>, %178, %cst_85 [1] : vector<8x32xf32> to vector<8xf32>
      %180 = vector.shape_cast %179 : vector<8xf32> to vector<8x1xf32>
      %cst_86 = arith.constant 3.200000e+01 : f32
      %181 = vector.broadcast %cst_86 : f32 to vector<8x1xf32>
      %182 = arith.divf %180, %181 : vector<8x1xf32>
      %183 = vector.broadcast %175 : vector<8x1xf32> to vector<8x32xf32>
      %184 = arith.subf %169, %183 : vector<8x32xf32>
      %cst_87 = arith.constant 9.99999974E-6 : f32
      %185 = vector.broadcast %cst_87 : f32 to vector<8x1xf32>
      %186 = arith.addf %182, %185 : vector<8x1xf32>
      %187 = math.rsqrt %186 : vector<8x1xf32>
      %188 = vector.broadcast %187 : vector<8x1xf32> to vector<8x32xf32>
      %189 = arith.mulf %184, %188 : vector<8x32xf32>
      %190 = vector.broadcast %170 : vector<1x32xf32> to vector<8x32xf32>
      %191 = arith.mulf %189, %190 : vector<8x32xf32>
      %192 = vector.broadcast %171 : vector<1x32xf32> to vector<8x32xf32>
      %193 = arith.addf %191, %192 : vector<8x32xf32>
      %194 = arith.truncf %193 : vector<8x32xf32> to vector<8x32xbf16>
      %c0_88 = arith.constant 0 : index
      %c0_89 = arith.constant 0 : index
      %195 = vector.load %arg5[%c0_88, %c0_89] : memref<32x96xbf16, #tpu.memory_space<vmem>>, vector<32x96xbf16>
      %cst_90 = arith.constant dense<0.000000e+00> : vector<8x96xf32>
      %196 = tpu.matmul %194, %195, %cst_90 {dimension_numbers = #tpu.dot_dimension_numbers<[1], [0], [0], [1], [0, 0, 1, 1], [], []>} : vector<8x32xbf16>, vector<32x96xbf16>, vector<8x96xf32> -> vector<8x96xf32>
      %c0_91 = arith.constant 0 : index
      %c0_92 = arith.constant 0 : index
      %197 = vector.load %arg6[%c0_91, %c0_92] : memref<1x96xf32, #tpu.memory_space<vmem>>, vector<1x96xf32>
      %198 = vector.broadcast %197 : vector<1x96xf32> to vector<8x96xf32>
      %199 = arith.addf %196, %198 : vector<8x96xf32>
      %200 = arith.truncf %199 : vector<8x96xf32> to vector<8x96xbf16>
      %201 = arith.index_cast %166 : i32 to index
      %c0_93 = arith.constant 0 : index
      %202 = vector.load %arg16[%201, %c0_93] : memref<8x96xbf16, #tpu.memory_space<vmem>>, vector<8x96xbf16>
      tpu.vector_store %arg16[%201, %c0_93], %200 {strides = array<i32>} : memref<8x96xbf16, #tpu.memory_space<vmem>>, vector<8x96xbf16>,
      %c1_i32 = arith.constant 1 : i32
    } else {
    }
    %c8_i32 = arith.constant 8 : i32
    %3 = arith.muli %arg1, %c8_i32 : i32
    %4 = tpu.assume_multiple %3, 8 : i32
    %c0 = arith.constant 0 : index
    %5 = arith.index_cast %4 : i32 to index
    %c0_1 = arith.constant 0 : index
    %6 = vector.load %arg2[%c0, %5, %c0_1] : memref<1x8x32xf32, #tpu.memory_space<vmem>>, vector<1x8x32xf32>
    %7 = vector.shape_cast %6 : vector<1x8x32xf32> to vector<8x32xf32>
    %8 = tpu.iota {dimensions = array<i32: 0>} : vector<8x8xi32>
    %9 = vector.broadcast %4 : i32 to vector<8x8xi32>
    %10 = arith.addi %9, %8 : vector<8x8xi32>
    %11 = tpu.iota {dimensions = array<i32: 1>} : vector<8x8xi32>
    %12 = arith.cmpi sle, %11, %10 : vector<8x8xi32>
    %13 = arith.index_cast %4 : i32 to index
    %c0_2 = arith.constant 0 : index
    %14 = vector.load %arg16[%13, %c0_2] : memref<8x96xbf16, #tpu.memory_space<vmem>>, vector<8x8xbf16>
    %c0_3 = arith.constant 0 : index
    %c32 = arith.constant 32 : index
    %15 = vector.load %arg16[%c0_3, %c32] : memref<8x96xbf16, #tpu.memory_space<vmem>>, vector<8x8xbf16>
    %c0_4 = arith.constant 0 : index
    %c64 = arith.constant 64 : index
    %16 = vector.load %arg16[%c0_4, %c64] : memref<8x96xbf16, #tpu.memory_space<vmem>>, vector<8x8xbf16>
    %cst = arith.constant dense<0.000000e+00> : vector<8x8xf32>
    %17 = tpu.matmul %14, %15, %cst {dimension_numbers = #tpu.dot_dimension_numbers<[1], [1], [0], [0], [0, 0, 1, 0], [], []>} : vector<8x8xbf16>, vector<8x8xbf16>, vector<8x8xf32> -> vector<8x8xf32>
    %cst_5 = arith.constant 0.353553385 : f32
    %18 = vector.broadcast %cst_5 : f32 to vector<8x8xf32>
    %19 = arith.mulf %17, %18 : vector<8x8xf32>
    %cst_6 = arith.constant -1.000000e+04 : f32
    %20 = vector.broadcast %cst_6 : f32 to vector<8x8xf32>
    %21 = arith.select %12, %19, %20 : vector<8x8xi1>, vector<8x8xf32>
    %cst_7 = arith.constant dense<0xFF800000> : vector<8xf32>
    %22 = vector.multi_reduction <maximumf>, %21, %cst_7 [1] : vector<8x8xf32> to vector<8xf32>
    %23 = vector.shape_cast %22 : vector<8xf32> to vector<8x1xf32>
    %24 = vector.broadcast %23 : vector<8x1xf32> to vector<8x8xf32>
    %25 = arith.subf %21, %24 : vector<8x8xf32>
    %26 = math.exp %25 : vector<8x8xf32>
    %cst_8 = arith.constant dense<0.000000e+00> : vector<8xf32>
    %27 = vector.multi_reduction <add>, %26, %cst_8 [1] : vector<8x8xf32> to vector<8xf32>
    %28 = vector.shape_cast %27 : vector<8xf32> to vector<8x1xf32>
    %29 = tpu.reciprocal %28 {approx = true} : vector<8x1xf32> -> vector<8x1xf32>
    %30 = vector.broadcast %29 : vector<8x1xf32> to vector<8x8xf32>
    %31 = arith.mulf %26, %30 : vector<8x8xf32>
    %32 = arith.truncf %31 : vector<8x8xf32> to vector<8x8xbf16>
    %cst_9 = arith.constant dense<0.000000e+00> : vector<8x8xf32>
    %33 = tpu.matmul %32, %16, %cst_9 {dimension_numbers = #tpu.dot_dimension_numbers<[1], [0], [0], [1], [0, 0, 1, 1], [], []>} : vector<8x8xbf16>, vector<8x8xbf16>, vector<8x8xf32> -> vector<8x8xf32>
    %34 = arith.truncf %33 : vector<8x8xf32> to vector<8x8xbf16>
    %c0_10 = arith.constant 0 : index
    %c0_11 = arith.constant 0 : index
    %35 = vector.load %arg17[%c0_10, %c0_11] : memref<8x32xbf16, #tpu.memory_space<vmem>>, vector<8x8xbf16>
    tpu.vector_store %arg17[%c0_10, %c0_11], %34 {strides = array<i32>} : memref<8x32xbf16, #tpu.memory_space<vmem>>, vector<8x8xbf16>,
    %36 = arith.index_cast %4 : i32 to index
    %c8 = arith.constant 8 : index
    %37 = vector.load %arg16[%36, %c8] : memref<8x96xbf16, #tpu.memory_space<vmem>>, vector<8x8xbf16>
    %c0_12 = arith.constant 0 : index
    %c40 = arith.constant 40 : index
    %38 = vector.load %arg16[%c0_12, %c40] : memref<8x96xbf16, #tpu.memory_space<vmem>>, vector<8x8xbf16>
    %c0_13 = arith.constant 0 : index
    %c72 = arith.constant 72 : index
    %39 = vector.load %arg16[%c0_13, %c72] : memref<8x96xbf16, #tpu.memory_space<vmem>>, vector<8x8xbf16>
    %cst_14 = arith.constant dense<0.000000e+00> : vector<8x8xf32>
    %40 = tpu.matmul %37, %38, %cst_14 {dimension_numbers = #tpu.dot_dimension_numbers<[1], [1], [0], [0], [0, 0, 1, 0], [], []>} : vector<8x8xbf16>, vector<8x8xbf16>, vector<8x8xf32> -> vector<8x8xf32>
    %cst_15 = arith.constant 0.353553385 : f32
    %41 = vector.broadcast %cst_15 : f32 to vector<8x8xf32>
    %42 = arith.mulf %40, %41 : vector<8x8xf32>
    %cst_16 = arith.constant -1.000000e+04 : f32
    %43 = vector.broadcast %cst_16 : f32 to vector<8x8xf32>
    %44 = arith.select %12, %42, %43 : vector<8x8xi1>, vector<8x8xf32>
    %cst_17 = arith.constant dense<0xFF800000> : vector<8xf32>
    %45 = vector.multi_reduction <maximumf>, %44, %cst_17 [1] : vector<8x8xf32> to vector<8xf32>
    %46 = vector.shape_cast %45 : vector<8xf32> to vector<8x1xf32>
    %47 = vector.broadcast %46 : vector<8x1xf32> to vector<8x8xf32>
    %48 = arith.subf %44, %47 : vector<8x8xf32>
    %49 = math.exp %48 : vector<8x8xf32>
    %cst_18 = arith.constant dense<0.000000e+00> : vector<8xf32>
    %50 = vector.multi_reduction <add>, %49, %cst_18 [1] : vector<8x8xf32> to vector<8xf32>
    %51 = vector.shape_cast %50 : vector<8xf32> to vector<8x1xf32>
    %52 = tpu.reciprocal %51 {approx = true} : vector<8x1xf32> -> vector<8x1xf32>
    %53 = vector.broadcast %52 : vector<8x1xf32> to vector<8x8xf32>
    %54 = arith.mulf %49, %53 : vector<8x8xf32>
    %55 = arith.truncf %54 : vector<8x8xf32> to vector<8x8xbf16>
    %cst_19 = arith.constant dense<0.000000e+00> : vector<8x8xf32>
    %56 = tpu.matmul %55, %39, %cst_19 {dimension_numbers = #tpu.dot_dimension_numbers<[1], [0], [0], [1], [0, 0, 1, 1], [], []>} : vector<8x8xbf16>, vector<8x8xbf16>, vector<8x8xf32> -> vector<8x8xf32>
    %57 = arith.truncf %56 : vector<8x8xf32> to vector<8x8xbf16>
    %c0_20 = arith.constant 0 : index
    %c8_21 = arith.constant 8 : index
    %58 = vector.load %arg17[%c0_20, %c8_21] : memref<8x32xbf16, #tpu.memory_space<vmem>>, vector<8x8xbf16>
    tpu.vector_store %arg17[%c0_20, %c8_21], %57 {strides = array<i32>} : memref<8x32xbf16, #tpu.memory_space<vmem>>, vector<8x8xbf16>,
    %59 = arith.index_cast %4 : i32 to index
    %c16 = arith.constant 16 : index
    %60 = vector.load %arg16[%59, %c16] : memref<8x96xbf16, #tpu.memory_space<vmem>>, vector<8x8xbf16>
    %c0_22 = arith.constant 0 : index
    %c48 = arith.constant 48 : index
    %61 = vector.load %arg16[%c0_22, %c48] : memref<8x96xbf16, #tpu.memory_space<vmem>>, vector<8x8xbf16>
    %c0_23 = arith.constant 0 : index
    %c80 = arith.constant 80 : index
    %62 = vector.load %arg16[%c0_23, %c80] : memref<8x96xbf16, #tpu.memory_space<vmem>>, vector<8x8xbf16>
    %cst_24 = arith.constant dense<0.000000e+00> : vector<8x8xf32>
    %63 = tpu.matmul %60, %61, %cst_24 {dimension_numbers = #tpu.dot_dimension_numbers<[1], [1], [0], [0], [0, 0, 1, 0], [], []>} : vector<8x8xbf16>, vector<8x8xbf16>, vector<8x8xf32> -> vector<8x8xf32>
    %cst_25 = arith.constant 0.353553385 : f32
    %64 = vector.broadcast %cst_25 : f32 to vector<8x8xf32>
    %65 = arith.mulf %63, %64 : vector<8x8xf32>
    %cst_26 = arith.constant -1.000000e+04 : f32
    %66 = vector.broadcast %cst_26 : f32 to vector<8x8xf32>
    %67 = arith.select %12, %65, %66 : vector<8x8xi1>, vector<8x8xf32>
    %cst_27 = arith.constant dense<0xFF800000> : vector<8xf32>
    %68 = vector.multi_reduction <maximumf>, %67, %cst_27 [1] : vector<8x8xf32> to vector<8xf32>
    %69 = vector.shape_cast %68 : vector<8xf32> to vector<8x1xf32>
    %70 = vector.broadcast %69 : vector<8x1xf32> to vector<8x8xf32>
    %71 = arith.subf %67, %70 : vector<8x8xf32>
    %72 = math.exp %71 : vector<8x8xf32>
    %cst_28 = arith.constant dense<0.000000e+00> : vector<8xf32>
    %73 = vector.multi_reduction <add>, %72, %cst_28 [1] : vector<8x8xf32> to vector<8xf32>
    %74 = vector.shape_cast %73 : vector<8xf32> to vector<8x1xf32>
    %75 = tpu.reciprocal %74 {approx = true} : vector<8x1xf32> -> vector<8x1xf32>
    %76 = vector.broadcast %75 : vector<8x1xf32> to vector<8x8xf32>
    %77 = arith.mulf %72, %76 : vector<8x8xf32>
    %78 = arith.truncf %77 : vector<8x8xf32> to vector<8x8xbf16>
    %cst_29 = arith.constant dense<0.000000e+00> : vector<8x8xf32>
    %79 = tpu.matmul %78, %62, %cst_29 {dimension_numbers = #tpu.dot_dimension_numbers<[1], [0], [0], [1], [0, 0, 1, 1], [], []>} : vector<8x8xbf16>, vector<8x8xbf16>, vector<8x8xf32> -> vector<8x8xf32>
    %80 = arith.truncf %79 : vector<8x8xf32> to vector<8x8xbf16>
    %c0_30 = arith.constant 0 : index
    %c16_31 = arith.constant 16 : index
    %81 = vector.load %arg17[%c0_30, %c16_31] : memref<8x32xbf16, #tpu.memory_space<vmem>>, vector<8x8xbf16>
    tpu.vector_store %arg17[%c0_30, %c16_31], %80 {strides = array<i32>} : memref<8x32xbf16, #tpu.memory_space<vmem>>, vector<8x8xbf16>,
    %82 = arith.index_cast %4 : i32 to index
    %c24 = arith.constant 24 : index
    %83 = vector.load %arg16[%82, %c24] : memref<8x96xbf16, #tpu.memory_space<vmem>>, vector<8x8xbf16>
    %c0_32 = arith.constant 0 : index
    %c56 = arith.constant 56 : index
    %84 = vector.load %arg16[%c0_32, %c56] : memref<8x96xbf16, #tpu.memory_space<vmem>>, vector<8x8xbf16>
    %c0_33 = arith.constant 0 : index
    %c88 = arith.constant 88 : index
    %85 = vector.load %arg16[%c0_33, %c88] : memref<8x96xbf16, #tpu.memory_space<vmem>>, vector<8x8xbf16>
    %cst_34 = arith.constant dense<0.000000e+00> : vector<8x8xf32>
    %86 = tpu.matmul %83, %84, %cst_34 {dimension_numbers = #tpu.dot_dimension_numbers<[1], [1], [0], [0], [0, 0, 1, 0], [], []>} : vector<8x8xbf16>, vector<8x8xbf16>, vector<8x8xf32> -> vector<8x8xf32>
    %cst_35 = arith.constant 0.353553385 : f32
    %87 = vector.broadcast %cst_35 : f32 to vector<8x8xf32>
    %88 = arith.mulf %86, %87 : vector<8x8xf32>
    %cst_36 = arith.constant -1.000000e+04 : f32
    %89 = vector.broadcast %cst_36 : f32 to vector<8x8xf32>
    %90 = arith.select %12, %88, %89 : vector<8x8xi1>, vector<8x8xf32>
    %cst_37 = arith.constant dense<0xFF800000> : vector<8xf32>
    %91 = vector.multi_reduction <maximumf>, %90, %cst_37 [1] : vector<8x8xf32> to vector<8xf32>
    %92 = vector.shape_cast %91 : vector<8xf32> to vector<8x1xf32>
    %93 = vector.broadcast %92 : vector<8x1xf32> to vector<8x8xf32>
    %94 = arith.subf %90, %93 : vector<8x8xf32>
    %95 = math.exp %94 : vector<8x8xf32>
    %cst_38 = arith.constant dense<0.000000e+00> : vector<8xf32>
    %96 = vector.multi_reduction <add>, %95, %cst_38 [1] : vector<8x8xf32> to vector<8xf32>
    %97 = vector.shape_cast %96 : vector<8xf32> to vector<8x1xf32>
    %98 = tpu.reciprocal %97 {approx = true} : vector<8x1xf32> -> vector<8x1xf32>
    %99 = vector.broadcast %98 : vector<8x1xf32> to vector<8x8xf32>
    %100 = arith.mulf %95, %99 : vector<8x8xf32>
    %101 = arith.truncf %100 : vector<8x8xf32> to vector<8x8xbf16>
    %cst_39 = arith.constant dense<0.000000e+00> : vector<8x8xf32>
    %102 = tpu.matmul %101, %85, %cst_39 {dimension_numbers = #tpu.dot_dimension_numbers<[1], [0], [0], [1], [0, 0, 1, 1], [], []>} : vector<8x8xbf16>, vector<8x8xbf16>, vector<8x8xf32> -> vector<8x8xf32>
    %103 = arith.truncf %102 : vector<8x8xf32> to vector<8x8xbf16>
    %c0_40 = arith.constant 0 : index
    %c24_41 = arith.constant 24 : index
    %104 = vector.load %arg17[%c0_40, %c24_41] : memref<8x32xbf16, #tpu.memory_space<vmem>>, vector<8x8xbf16>
    tpu.vector_store %arg17[%c0_40, %c24_41], %103 {strides = array<i32>} : memref<8x32xbf16, #tpu.memory_space<vmem>>, vector<8x8xbf16>,
    %c0_42 = arith.constant 0 : index
    %c0_43 = arith.constant 0 : index
    %105 = vector.load %arg17[%c0_42, %c0_43] : memref<8x32xbf16, #tpu.memory_space<vmem>>, vector<8x32xbf16>
    %c0_44 = arith.constant 0 : index
    %c0_45 = arith.constant 0 : index
    %106 = vector.load %arg7[%c0_44, %c0_45] : memref<32x32xbf16, #tpu.memory_space<vmem>>, vector<32x32xbf16>
    %cst_46 = arith.constant dense<0.000000e+00> : vector<8x32xf32>
    %107 = tpu.matmul %105, %106, %cst_46 {dimension_numbers = #tpu.dot_dimension_numbers<[1], [0], [0], [1], [0, 0, 1, 1], [], []>} : vector<8x32xbf16>, vector<32x32xbf16>, vector<8x32xf32> -> vector<8x32xf32>
    %c0_47 = arith.constant 0 : index
    %c0_48 = arith.constant 0 : index
    %108 = vector.load %arg8[%c0_47, %c0_48] : memref<1x32xf32, #tpu.memory_space<vmem>>, vector<1x32xf32>
    %109 = vector.broadcast %108 : vector<1x32xf32> to vector<8x32xf32>
    %110 = arith.addf %107, %109 : vector<8x32xf32>
    %111 = arith.addf %7, %110 : vector<8x32xf32>
    %c0_49 = arith.constant 0 : index
    %c0_50 = arith.constant 0 : index
    %112 = vector.load %arg9[%c0_49, %c0_50] : memref<1x32xf32, #tpu.memory_space<vmem>>, vector<1x32xf32>
    %c0_51 = arith.constant 0 : index
    %c0_52 = arith.constant 0 : index
    %113 = vector.load %arg10[%c0_51, %c0_52] : memref<1x32xf32, #tpu.memory_space<vmem>>, vector<1x32xf32>
    %cst_53 = arith.constant dense<0.000000e+00> : vector<8xf32>
    %114 = vector.multi_reduction <add>, %111, %cst_53 [1] : vector<8x32xf32> to vector<8xf32>
    %115 = vector.shape_cast %114 : vector<8xf32> to vector<8x1xf32>
    %cst_54 = arith.constant 3.200000e+01 : f32
    %116 = vector.broadcast %cst_54 : f32 to vector<8x1xf32>
    %117 = arith.divf %115, %116 : vector<8x1xf32>
    %118 = vector.broadcast %117 : vector<8x1xf32> to vector<8x32xf32>
    %119 = arith.subf %111, %118 : vector<8x32xf32>
    %120 = arith.mulf %119, %119 : vector<8x32xf32>
    %cst_55 = arith.constant dense<0.000000e+00> : vector<8xf32>
    %121 = vector.multi_reduction <add>, %120, %cst_55 [1] : vector<8x32xf32> to vector<8xf32>
    %122 = vector.shape_cast %121 : vector<8xf32> to vector<8x1xf32>
    %cst_56 = arith.constant 3.200000e+01 : f32
    %123 = vector.broadcast %cst_56 : f32 to vector<8x1xf32>
    %124 = arith.divf %122, %123 : vector<8x1xf32>
    %125 = vector.broadcast %117 : vector<8x1xf32> to vector<8x32xf32>
    %126 = arith.subf %111, %125 : vector<8x32xf32>
    %cst_57 = arith.constant 9.99999974E-6 : f32
    %127 = vector.broadcast %cst_57 : f32 to vector<8x1xf32>
    %128 = arith.addf %124, %127 : vector<8x1xf32>
    %129 = math.rsqrt %128 : vector<8x1xf32>
    %130 = vector.broadcast %129 : vector<8x1xf32> to vector<8x32xf32>
    %131 = arith.mulf %126, %130 : vector<8x32xf32>
    %132 = vector.broadcast %112 : vector<1x32xf32> to vector<8x32xf32>
    %133 = arith.mulf %131, %132 : vector<8x32xf32>
    %134 = vector.broadcast %113 : vector<1x32xf32> to vector<8x32xf32>
    %135 = arith.addf %133, %134 : vector<8x32xf32>
    %136 = arith.truncf %135 : vector<8x32xf32> to vector<8x32xbf16>
    %c0_58 = arith.constant 0 : index
    %c0_59 = arith.constant 0 : index
    %137 = vector.load %arg11[%c0_58, %c0_59] : memref<32x128xbf16, #tpu.memory_space<vmem>>, vector<32x128xbf16>
    %cst_60 = arith.constant dense<0.000000e+00> : vector<8x128xf32>
    %138 = tpu.matmul %136, %137, %cst_60 {dimension_numbers = #tpu.dot_dimension_numbers<[1], [0], [0], [1], [0, 0, 1, 1], [], []>} : vector<8x32xbf16>, vector<32x128xbf16>, vector<8x128xf32> -> vector<8x128xf32>
    %c0_61 = arith.constant 0 : index
    %c0_62 = arith.constant 0 : index
    %139 = vector.load %arg12[%c0_61, %c0_62] : memref<1x128xf32, #tpu.memory_space<vmem>>, vector<1x128xf32>
    %140 = vector.broadcast %139 : vector<1x128xf32> to vector<8x128xf32>
    %141 = arith.addf %138, %140 : vector<8x128xf32>
    %cst_63 = arith.constant 5.000000e-01 : f32
    %142 = vector.broadcast %cst_63 : f32 to vector<8x128xf32>
    %143 = arith.mulf %142, %141 : vector<8x128xf32>
    %144 = arith.mulf %141, %141 : vector<8x128xf32>
    %145 = arith.mulf %141, %144 : vector<8x128xf32>
    %cst_64 = arith.constant 4.471500e-02 : f32
    %146 = vector.broadcast %cst_64 : f32 to vector<8x128xf32>
    %147 = arith.mulf %146, %145 : vector<8x128xf32>
    %148 = arith.addf %141, %147 : vector<8x128xf32>
    %cst_65 = arith.constant 0.797884583 : f32
    %149 = vector.broadcast %cst_65 : f32 to vector<8x128xf32>
    %150 = arith.mulf %149, %148 : vector<8x128xf32>
    %151 = math.tanh %150 : vector<8x128xf32>
    %cst_66 = arith.constant 1.000000e+00 : f32
    %152 = vector.broadcast %cst_66 : f32 to vector<8x128xf32>
    %153 = arith.addf %152, %151 : vector<8x128xf32>
    %154 = arith.mulf %143, %153 : vector<8x128xf32>
    %155 = arith.truncf %154 : vector<8x128xf32> to vector<8x128xbf16>
    %c0_67 = arith.constant 0 : index
    %c0_68 = arith.constant 0 : index
    %156 = vector.load %arg13[%c0_67, %c0_68] : memref<128x32xbf16, #tpu.memory_space<vmem>>, vector<128x32xbf16>
    %cst_69 = arith.constant dense<0.000000e+00> : vector<8x32xf32>
    %157 = tpu.matmul %155, %156, %cst_69 {dimension_numbers = #tpu.dot_dimension_numbers<[1], [0], [0], [1], [0, 0, 1, 1], [], []>} : vector<8x128xbf16>, vector<128x32xbf16>, vector<8x32xf32> -> vector<8x32xf32>
    %158 = arith.addf %111, %157 : vector<8x32xf32>
    %c0_70 = arith.constant 0 : index
    %c0_71 = arith.constant 0 : index
    %159 = vector.load %arg14[%c0_70, %c0_71] : memref<1x32xf32, #tpu.memory_space<vmem>>, vector<1x32xf32>
    %160 = vector.broadcast %159 : vector<1x32xf32> to vector<8x32xf32>
    %161 = arith.addf %158, %160 : vector<8x32xf32>
    %c0_72 = arith.constant 0 : index
    %c0_73 = arith.constant 0 : index
    %c0_74 = arith.constant 0 : index
    %162 = vector.load %arg15[%c0_72, %c0_73, %c0_74] : memref<1x8x32xf32, #tpu.memory_space<vmem>>, vector<1x8x32xf32>
    %163 = vector.shape_cast %162 : vector<1x8x32xf32> to vector<8x32xf32>
    %164 = vector.shape_cast %161 : vector<8x32xf32> to vector<1x8x32xf32>
    tpu.vector_store %arg15[%c0_72, %c0_73, %c0_74], %164 {strides = array<i32>} : memref<1x8x32xf32, #tpu.memory_space<vmem>>, vector<1x8x32xf32>,
    return
  }
  func.func @transform_0(%arg0: i32, %arg1: i32) -> (i32, i32, i32) {
    %c0_i32 = arith.constant 0 : i32
    %c0_i32_0 = arith.constant 0 : i32
    %c0_i32_1 = arith.constant 0 : i32
    return %arg0, %c0_i32, %c0_i32_0 : i32, i32, i32
  }
  func.func @transform_1(%arg0: i32, %arg1: i32) -> (i32, i32) {
    %c0_i32 = arith.constant 0 : i32
    %c0_i32_0 = arith.constant 0 : i32
    %c0_i32_1 = arith.constant 0 : i32
    return %c0_i32, %c0_i32_0 : i32, i32
  }
  func.func @transform_2(%arg0: i32, %arg1: i32) -> (i32, i32) {
    %c0_i32 = arith.constant 0 : i32
    %c0_i32_0 = arith.constant 0 : i32
    %c0_i32_1 = arith.constant 0 : i32
    return %c0_i32, %c0_i32_0 : i32, i32
  }
  func.func @transform_3(%arg0: i32, %arg1: i32) -> (i32, i32) {
    %c0_i32 = arith.constant 0 : i32
    %c0_i32_0 = arith.constant 0 : i32
    %c0_i32_1 = arith.constant 0 : i32
    return %c0_i32, %c0_i32_0 : i32, i32
  }
  func.func @transform_4(%arg0: i32, %arg1: i32) -> (i32, i32) {
    %c0_i32 = arith.constant 0 : i32
    %c0_i32_0 = arith.constant 0 : i32
    %c0_i32_1 = arith.constant 0 : i32
    return %c0_i32, %c0_i32_0 : i32, i32
  }
  func.func @transform_5(%arg0: i32, %arg1: i32) -> (i32, i32) {
    %c0_i32 = arith.constant 0 : i32
    %c0_i32_0 = arith.constant 0 : i32
    %c0_i32_1 = arith.constant 0 : i32
    return %c0_i32, %c0_i32_0 : i32, i32
  }
  func.func @transform_6(%arg0: i32, %arg1: i32) -> (i32, i32) {
    %c0_i32 = arith.constant 0 : i32
    %c0_i32_0 = arith.constant 0 : i32
    %c0_i32_1 = arith.constant 0 : i32
    return %c0_i32, %c0_i32_0 : i32, i32
  }
  func.func @transform_7(%arg0: i32, %arg1: i32) -> (i32, i32) {
    %c0_i32 = arith.constant 0 : i32
    %c0_i32_0 = arith.constant 0 : i32
    %c0_i32_1 = arith.constant 0 : i32
    return %c0_i32, %c0_i32_0 : i32, i32
  }
  func.func @transform_8(%arg0: i32, %arg1: i32) -> (i32, i32) {
    %c0_i32 = arith.constant 0 : i32
    %c0_i32_0 = arith.constant 0 : i32
    %c0_i32_1 = arith.constant 0 : i32
    return %c0_i32, %c0_i32_0 : i32, i32
  }
  func.func @transform_9(%arg0: i32, %arg1: i32) -> (i32, i32) {
    %c0_i32 = arith.constant 0 : i32
    %c0_i32_0 = arith.constant 0 : i32
    %c0_i32_1 = arith.constant 0 : i32
    return %c0_i32, %c0_i32_0 : i32, i32
  }
  func.func @transform_10(%arg0: i32, %arg1: i32) -> (i32, i32) {
    %c0_i32 = arith.constant 0 : i32
    %c0_i32_0 = arith.constant 0 : i32
    %c0_i32_1 = arith.constant 0 : i32
    return %c0_i32, %c0_i32_0 : i32, i32
  }
  func.func @transform_11(%arg0: i32, %arg1: i32) -> (i32, i32) {
    %c0_i32 = arith.constant 0 : i32
    %c0_i32_0 = arith.constant 0 : i32
    %c0_i32_1 = arith.constant 0 : i32
    return %c0_i32, %c0_i32_0 : i32, i32
  }
  func.func @transform_12(%arg0: i32, %arg1: i32) -> (i32, i32) {
    %c0_i32 = arith.constant 0 : i32
    %c0_i32_0 = arith.constant 0 : i32
    %c0_i32_1 = arith.constant 0 : i32
    return %c0_i32, %c0_i32_0 : i32, i32
  }
  func.func @transform_13(%arg0: i32, %arg1: i32) -> (i32, i32, i32) {
    %c0_i32 = arith.constant 0 : i32
    %c0_i32_0 = arith.constant 0 : i32
    return %arg0, %arg1, %c0_i32 : i32, i32, i32
  }
}

module attributes {stable_mosaic.version = 11 : i64} {
  func.func @gpt2_block_kernel(%arg0: i32, %arg1: i32, %arg2: memref<1x8x32xf32, #tpu.memory_space<vmem>>, %arg3: memref<1x32xf32, #tpu.memory_space<vmem>>, %arg4: memref<1x32xf32, #tpu.memory_space<vmem>>, %arg5: memref<32x96xbf16, #tpu.memory_space<vmem>>, %arg6: memref<1x96xf32, #tpu.memory_space<vmem>>, %arg7: memref<32x32xbf16, #tpu.memory_space<vmem>>, %arg8: memref<1x32xf32, #tpu.memory_space<vmem>>, %arg9: memref<1x32xf32, #tpu.memory_space<vmem>>, %arg10: memref<1x32xf32, #tpu.memory_space<vmem>>, %arg11: memref<32x128xbf16, #tpu.memory_space<vmem>>, %arg12: memref<1x128xf32, #tpu.memory_space<vmem>>, %arg13: memref<128x32xbf16, #tpu.memory_space<vmem>>, %arg14: memref<1x32xf32, #tpu.memory_space<vmem>>, %arg15: memref<1x8x32xf32, #tpu.memory_space<vmem>>, %arg16: memref<8x96xbf16, #tpu.memory_space<vmem>>, %arg17: memref<8x32xbf16, #tpu.memory_space<vmem>>) attributes {dimension_semantics = [#tpu.dimension_semantics<parallel>, #tpu.dimension_semantics<arbitrary>], iteration_bounds = array<i64: 2, 1>, scalar_prefetch = 0 : i64, scratch_operands = 2 : i64, tpu.core_type = #tpu.core_type<tc>, window_params = [{transform_indices = @transform_0, window_bounds = array<i64: 1, 8, 32>}, {pipeline_mode = #tpu.pipeline_mode<synchronous>, transform_indices = @transform_1, window_bounds = array<i64: 1, 32>}, {pipeline_mode = #tpu.pipeline_mode<synchronous>, transform_indices = @transform_2, window_bounds = array<i64: 1, 32>}, {pipeline_mode = #tpu.pipeline_mode<synchronous>, transform_indices = @transform_3, window_bounds = array<i64: 32, 96>}, {pipeline_mode = #tpu.pipeline_mode<synchronous>, transform_indices = @transform_4, window_bounds = array<i64: 1, 96>}, {pipeline_mode = #tpu.pipeline_mode<synchronous>, transform_indices = @transform_5, window_bounds = array<i64: 32, 32>}, {pipeline_mode = #tpu.pipeline_mode<synchronous>, transform_indices = @transform_6, window_bounds = array<i64: 1, 32>}, {pipeline_mode = #tpu.pipeline_mode<synchronous>, transform_indices = @transform_7, window_bounds = array<i64: 1, 32>}, {pipeline_mode = #tpu.pipeline_mode<synchronous>, transform_indices = @transform_8, window_bounds = array<i64: 1, 32>}, {pipeline_mode = #tpu.pipeline_mode<synchronous>, transform_indices = @transform_9, window_bounds = array<i64: 32, 128>}, {pipeline_mode = #tpu.pipeline_mode<synchronous>, transform_indices = @transform_10, window_bounds = array<i64: 1, 128>}, {pipeline_mode = #tpu.pipeline_mode<synchronous>, transform_indices = @transform_11, window_bounds = array<i64: 128, 32>}, {pipeline_mode = #tpu.pipeline_mode<synchronous>, transform_indices = @transform_12, window_bounds = array<i64: 1, 32>}, {transform_indices = @transform_13, window_bounds = array<i64: 1, 8, 32>}]} {
    %c0_i32 = arith.constant 0 : i32
    %0 = arith.cmpi eq, %arg1, %c0_i32 : i32
    %1 = arith.extui %0 : i1 to i32
    %c0_i32_0 = arith.constant 0 : i32
    %2 = arith.cmpi ne, %1, %c0_i32_0 : i32
    scf.if %2 {
      %c0_i32_75 = arith.constant 0 : i32
      %c8_i32_76 = arith.constant 8 : i32
      %165 = arith.muli %c0_i32_75, %c8_i32_76 : i32
      %166 = tpu.assume_multiple %165, 8 : i32
      %c0_77 = arith.constant 0 : index
      %167 = arith.index_cast %166 : i32 to index
      %c0_78 = arith.constant 0 : index
      %168 = vector.load %arg2[%c0_77, %167, %c0_78] : memref<1x8x32xf32, #tpu.memory_space<vmem>>, vector<1x8x32xf32>
      %169 = vector.shape_cast %168 : vector<1x8x32xf32> to vector<8x32xf32>
      %c0_79 = arith.constant 0 : index
      %c0_80 = arith.constant 0 : index
      %170 = vector.load %arg3[%c0_79, %c0_80] : memref<1x32xf32, #tpu.memory_space<vmem>>, vector<1x32xf32>
      %c0_81 = arith.constant 0 : index
      %c0_82 = arith.constant 0 : index
      %171 = vector.load %arg4[%c0_81, %c0_82] : memref<1x32xf32, #tpu.memory_space<vmem>>, vector<1x32xf32>
      %cst_83 = arith.constant dense<0.000000e+00> : vector<8xf32>
      %172 = vector.multi_reduction <add>, %169, %cst_83 [1] : vector<8x32xf32> to vector<8xf32>
      %173 = vector.shape_cast %172 : vector<8xf32> to vector<8x1xf32>
      %cst_84 = arith.constant 3.200000e+01 : f32
      %174 = vector.broadcast %cst_84 : f32 to vector<8x1xf32>
      %175 = arith.divf %173, %174 : vector<8x1xf32>
      %176 = vector.broadcast %175 : vector<8x1xf32> to vector<8x32xf32>
      %177 = arith.subf %169, %176 : vector<8x32xf32>
      %178 = arith.mulf %177, %177 : vector<8x32xf32>
      %cst_85 = arith.constant dense<0.000000e+00> : vector<8xf32>
      %179 = vector.multi_reduction <add>, %178, %cst_85 [1] : vector<8x32xf32> to vector<8xf32>
      %180 = vector.shape_cast %179 : vector<8xf32> to vector<8x1xf32>
      %cst_86 = arith.constant 3.200000e+01 : f32
      %181 = vector.broadcast %cst_86 : f32 to vector<8x1xf32>
      %182 = arith.divf %180, %181 : vector<8x1xf32>
      %183 = vector.broadcast %175 : vector<8x1xf32> to vector<8x32xf32>
      %184 = arith.subf %169, %183 : vector<8x32xf32>
      %cst_87 = arith.constant 9.99999974E-6 : f32
      %185 = vector.broadcast %cst_87 : f32 to vector<8x1xf32>
      %186 = arith.addf %182, %185 : vector<8x1xf32>
      %187 = math.rsqrt %186 : vector<8x1xf32>
      %188 = vector.broadcast %187 : vector<8x1xf32> to vector<8x32xf32>
      %189 = arith.mulf %184, %188 : vector<8x32xf32>
      %190 = vector.broadcast %170 : vector<1x32xf32> to vector<8x32xf32>
      %191 = arith.mulf %189, %190 : vector<8x32xf32>
      %192 = vector.broadcast %171 : vector<1x32xf32> to vector<8x32xf32>
      %193 = arith.addf %191, %192 : vector<8x32xf32>
      %194 = arith.truncf %193 : vector<8x32xf32> to vector<8x32xbf16>
      %c0_88 = arith.constant 0 : index
      %c0_89 = arith.constant 0 : index
      %195 = vector.load %arg5[%c0_88, %c0_89] : memref<32x96xbf16, #tpu.memory_space<vmem>>, vector<32x96xbf16>
      %cst_90 = arith.constant dense<0.000000e+00> : vector<8x96xf32>
      %196 = tpu.matmul %194, %195, %cst_90 {dimension_numbers = #tpu.dot_dimension_numbers<[1], [0], [0], [1], [0, 0, 1, 1], [], []>} : vector<8x32xbf16>, vector<32x96xbf16>, vector<8x96xf32> -> vector<8x96xf32>
      %c0_91 = arith.constant 0 : index
      %c0_92 = arith.constant 0 : index
      %197 = vector.load %arg6[%c0_91, %c0_92] : memref<1x96xf32, #tpu.memory_space<vmem>>, vector<1x96xf32>
      %198 = vector.broadcast %197 : vector<1x96xf32> to vector<8x96xf32>
      %199 = arith.addf %196, %198 : vector<8x96xf32>
      %200 = arith.truncf %199 : vector<8x96xf32> to vector<8x96xbf16>
      %201 = arith.index_cast %166 : i32 to index
      %c0_93 = arith.constant 0 : index
      %202 = vector.load %arg16[%201, %c0_93] : memref<8x96xbf16, #tpu.memory_space<vmem>>, vector<8x96xbf16>
      tpu.vector_store %arg16[%201, %c0_93], %200 {strides = array<i32>} : memref<8x96xbf16, #tpu.memory_space<vmem>>, vector<8x96xbf16>,
      %c1_i32 = arith.constant 1 : i32
    } else {
    }
    %c8_i32 = arith.constant 8 : i32
    %3 = arith.muli %arg1, %c8_i32 : i32
    %4 = tpu.assume_multiple %3, 8 : i32
    %c0 = arith.constant 0 : index
    %5 = arith.index_cast %4 : i32 to index
    %c0_1 = arith.constant 0 : index
    %6 = vector.load %arg2[%c0, %5, %c0_1] : memref<1x8x32xf32, #tpu.memory_space<vmem>>, vector<1x8x32xf32>
    %7 = vector.shape_cast %6 : vector<1x8x32xf32> to vector<8x32xf32>
    %8 = tpu.iota {dimensions = array<i32: 0>} : vector<8x8xi32>
    %9 = vector.broadcast %4 : i32 to vector<8x8xi32>
    %10 = arith.addi %9, %8 : vector<8x8xi32>
    %11 = tpu.iota {dimensions = array<i32: 1>} : vector<8x8xi32>
    %12 = arith.cmpi sle, %11, %10 : vector<8x8xi32>
    %13 = arith.index_cast %4 : i32 to index
    %c0_2 = arith.constant 0 : index
    %14 = vector.load %arg16[%13, %c0_2] : memref<8x96xbf16, #tpu.memory_space<vmem>>, vector<8x8xbf16>
    %c0_3 = arith.constant 0 : index
    %c32 = arith.constant 32 : index
    %15 = vector.load %arg16[%c0_3, %c32] : memref<8x96xbf16, #tpu.memory_space<vmem>>, vector<8x8xbf16>
    %c0_4 = arith.constant 0 : index
    %c64 = arith.constant 64 : index
    %16 = vector.load %arg16[%c0_4, %c64] : memref<8x96xbf16, #tpu.memory_space<vmem>>, vector<8x8xbf16>
    %cst = arith.constant dense<0.000000e+00> : vector<8x8xf32>
    %17 = tpu.matmul %14, %15, %cst {dimension_numbers = #tpu.dot_dimension_numbers<[1], [1], [0], [0], [0, 0, 1, 0], [], []>} : vector<8x8xbf16>, vector<8x8xbf16>, vector<8x8xf32> -> vector<8x8xf32>
    %cst_5 = arith.constant 0.353553385 : f32
    %18 = vector.broadcast %cst_5 : f32 to vector<8x8xf32>
    %19 = arith.mulf %17, %18 : vector<8x8xf32>
    %cst_6 = arith.constant -1.000000e+04 : f32
    %20 = vector.broadcast %cst_6 : f32 to vector<8x8xf32>
    %21 = arith.select %12, %19, %20 : vector<8x8xi1>, vector<8x8xf32>
    %cst_7 = arith.constant dense<0xFF800000> : vector<8xf32>
    %22 = vector.multi_reduction <maximumf>, %21, %cst_7 [1] : vector<8x8xf32> to vector<8xf32>
    %23 = vector.shape_cast %22 : vector<8xf32> to vector<8x1xf32>
    %24 = vector.broadcast %23 : vector<8x1xf32> to vector<8x8xf32>
    %25 = arith.subf %21, %24 : vector<8x8xf32>
    %26 = math.exp %25 : vector<8x8xf32>
    %cst_8 = arith.constant dense<0.000000e+00> : vector<8xf32>
    %27 = vector.multi_reduction <add>, %26, %cst_8 [1] : vector<8x8xf32> to vector<8xf32>
    %28 = vector.shape_cast %27 : vector<8xf32> to vector<8x1xf32>
    %29 = tpu.reciprocal %28 {approx = true} : vector<8x1xf32> -> vector<8x1xf32>
    %30 = vector.broadcast %29 : vector<8x1xf32> to vector<8x8xf32>
    %31 = arith.mulf %26, %30 : vector<8x8xf32>
    %32 = arith.truncf %31 : vector<8x8xf32> to vector<8x8xbf16>
    %cst_9 = arith.constant dense<0.000000e+00> : vector<8x8xf32>
    %33 = tpu.matmul %32, %16, %cst_9 {dimension_numbers = #tpu.dot_dimension_numbers<[1], [0], [0], [1], [0, 0, 1, 1], [], []>} : vector<8x8xbf16>, vector<8x8xbf16>, vector<8x8xf32> -> vector<8x8xf32>
    %34 = arith.truncf %33 : vector<8x8xf32> to vector<8x8xbf16>
    %c0_10 = arith.constant 0 : index
    %c0_11 = arith.constant 0 : index
    %35 = vector.load %arg17[%c0_10, %c0_11] : memref<8x32xbf16, #tpu.memory_space<vmem>>, vector<8x8xbf16>
    tpu.vector_store %arg17[%c0_10, %c0_11], %34 {strides = array<i32>} : memref<8x32xbf16, #tpu.memory_space<vmem>>, vector<8x8xbf16>,
    %36 = arith.index_cast %4 : i32 to index
    %c8 = arith.constant 8 : index
    %37 = vector.load %arg16[%36, %c8] : memref<8x96xbf16, #tpu.memory_space<vmem>>, vector<8x8xbf16>
    %c0_12 = arith.constant 0 : index
    %c40 = arith.constant 40 : index
    %38 = vector.load %arg16[%c0_12, %c40] : memref<8x96xbf16, #tpu.memory_space<vmem>>, vector<8x8xbf16>
    %c0_13 = arith.constant 0 : index
    %c72 = arith.constant 72 : index
    %39 = vector.load %arg16[%c0_13, %c72] : memref<8x96xbf16, #tpu.memory_space<vmem>>, vector<8x8xbf16>
    %cst_14 = arith.constant dense<0.000000e+00> : vector<8x8xf32>
    %40 = tpu.matmul %37, %38, %cst_14 {dimension_numbers = #tpu.dot_dimension_numbers<[1], [1], [0], [0], [0, 0, 1, 0], [], []>} : vector<8x8xbf16>, vector<8x8xbf16>, vector<8x8xf32> -> vector<8x8xf32>
    %cst_15 = arith.constant 0.353553385 : f32
    %41 = vector.broadcast %cst_15 : f32 to vector<8x8xf32>
    %42 = arith.mulf %40, %41 : vector<8x8xf32>
    %cst_16 = arith.constant -1.000000e+04 : f32
    %43 = vector.broadcast %cst_16 : f32 to vector<8x8xf32>
    %44 = arith.select %12, %42, %43 : vector<8x8xi1>, vector<8x8xf32>
    %cst_17 = arith.constant dense<0xFF800000> : vector<8xf32>
    %45 = vector.multi_reduction <maximumf>, %44, %cst_17 [1] : vector<8x8xf32> to vector<8xf32>
    %46 = vector.shape_cast %45 : vector<8xf32> to vector<8x1xf32>
    %47 = vector.broadcast %46 : vector<8x1xf32> to vector<8x8xf32>
    %48 = arith.subf %44, %47 : vector<8x8xf32>
    %49 = math.exp %48 : vector<8x8xf32>
    %cst_18 = arith.constant dense<0.000000e+00> : vector<8xf32>
    %50 = vector.multi_reduction <add>, %49, %cst_18 [1] : vector<8x8xf32> to vector<8xf32>
    %51 = vector.shape_cast %50 : vector<8xf32> to vector<8x1xf32>
    %52 = tpu.reciprocal %51 {approx = true} : vector<8x1xf32> -> vector<8x1xf32>
    %53 = vector.broadcast %52 : vector<8x1xf32> to vector<8x8xf32>
    %54 = arith.mulf %49, %53 : vector<8x8xf32>
    %55 = arith.truncf %54 : vector<8x8xf32> to vector<8x8xbf16>
    %cst_19 = arith.constant dense<0.000000e+00> : vector<8x8xf32>
    %56 = tpu.matmul %55, %39, %cst_19 {dimension_numbers = #tpu.dot_dimension_numbers<[1], [0], [0], [1], [0, 0, 1, 1], [], []>} : vector<8x8xbf16>, vector<8x8xbf16>, vector<8x8xf32> -> vector<8x8xf32>
    %57 = arith.truncf %56 : vector<8x8xf32> to vector<8x8xbf16>
    %c0_20 = arith.constant 0 : index
    %c8_21 = arith.constant 8 : index
    %58 = vector.load %arg17[%c0_20, %c8_21] : memref<8x32xbf16, #tpu.memory_space<vmem>>, vector<8x8xbf16>
    tpu.vector_store %arg17[%c0_20, %c8_21], %57 {strides = array<i32>} : memref<8x32xbf16, #tpu.memory_space<vmem>>, vector<8x8xbf16>,
    %59 = arith.index_cast %4 : i32 to index
    %c16 = arith.constant 16 : index
    %60 = vector.load %arg16[%59, %c16] : memref<8x96xbf16, #tpu.memory_space<vmem>>, vector<8x8xbf16>
    %c0_22 = arith.constant 0 : index
    %c48 = arith.constant 48 : index
    %61 = vector.load %arg16[%c0_22, %c48] : memref<8x96xbf16, #tpu.memory_space<vmem>>, vector<8x8xbf16>
    %c0_23 = arith.constant 0 : index
    %c80 = arith.constant 80 : index
    %62 = vector.load %arg16[%c0_23, %c80] : memref<8x96xbf16, #tpu.memory_space<vmem>>, vector<8x8xbf16>
    %cst_24 = arith.constant dense<0.000000e+00> : vector<8x8xf32>
    %63 = tpu.matmul %60, %61, %cst_24 {dimension_numbers = #tpu.dot_dimension_numbers<[1], [1], [0], [0], [0, 0, 1, 0], [], []>} : vector<8x8xbf16>, vector<8x8xbf16>, vector<8x8xf32> -> vector<8x8xf32>
    %cst_25 = arith.constant 0.353553385 : f32
    %64 = vector.broadcast %cst_25 : f32 to vector<8x8xf32>
    %65 = arith.mulf %63, %64 : vector<8x8xf32>
    %cst_26 = arith.constant -1.000000e+04 : f32
    %66 = vector.broadcast %cst_26 : f32 to vector<8x8xf32>
    %67 = arith.select %12, %65, %66 : vector<8x8xi1>, vector<8x8xf32>
    %cst_27 = arith.constant dense<0xFF800000> : vector<8xf32>
    %68 = vector.multi_reduction <maximumf>, %67, %cst_27 [1] : vector<8x8xf32> to vector<8xf32>
    %69 = vector.shape_cast %68 : vector<8xf32> to vector<8x1xf32>
    %70 = vector.broadcast %69 : vector<8x1xf32> to vector<8x8xf32>
    %71 = arith.subf %67, %70 : vector<8x8xf32>
    %72 = math.exp %71 : vector<8x8xf32>
    %cst_28 = arith.constant dense<0.000000e+00> : vector<8xf32>
    %73 = vector.multi_reduction <add>, %72, %cst_28 [1] : vector<8x8xf32> to vector<8xf32>
    %74 = vector.shape_cast %73 : vector<8xf32> to vector<8x1xf32>
    %75 = tpu.reciprocal %74 {approx = true} : vector<8x1xf32> -> vector<8x1xf32>
    %76 = vector.broadcast %75 : vector<8x1xf32> to vector<8x8xf32>
    %77 = arith.mulf %72, %76 : vector<8x8xf32>
    %78 = arith.truncf %77 : vector<8x8xf32> to vector<8x8xbf16>
    %cst_29 = arith.constant dense<0.000000e+00> : vector<8x8xf32>
    %79 = tpu.matmul %78, %62, %cst_29 {dimension_numbers = #tpu.dot_dimension_numbers<[1], [0], [0], [1], [0, 0, 1, 1], [], []>} : vector<8x8xbf16>, vector<8x8xbf16>, vector<8x8xf32> -> vector<8x8xf32>
    %80 = arith.truncf %79 : vector<8x8xf32> to vector<8x8xbf16>
    %c0_30 = arith.constant 0 : index
    %c16_31 = arith.constant 16 : index
    %81 = vector.load %arg17[%c0_30, %c16_31] : memref<8x32xbf16, #tpu.memory_space<vmem>>, vector<8x8xbf16>
    tpu.vector_store %arg17[%c0_30, %c16_31], %80 {strides = array<i32>} : memref<8x32xbf16, #tpu.memory_space<vmem>>, vector<8x8xbf16>,
    %82 = arith.index_cast %4 : i32 to index
    %c24 = arith.constant 24 : index
    %83 = vector.load %arg16[%82, %c24] : memref<8x96xbf16, #tpu.memory_space<vmem>>, vector<8x8xbf16>
    %c0_32 = arith.constant 0 : index
    %c56 = arith.constant 56 : index
    %84 = vector.load %arg16[%c0_32, %c56] : memref<8x96xbf16, #tpu.memory_space<vmem>>, vector<8x8xbf16>
    %c0_33 = arith.constant 0 : index
    %c88 = arith.constant 88 : index
    %85 = vector.load %arg16[%c0_33, %c88] : memref<8x96xbf16, #tpu.memory_space<vmem>>, vector<8x8xbf16>
    %cst_34 = arith.constant dense<0.000000e+00> : vector<8x8xf32>
    %86 = tpu.matmul %83, %84, %cst_34 {dimension_numbers = #tpu.dot_dimension_numbers<[1], [1], [0], [0], [0, 0, 1, 0], [], []>} : vector<8x8xbf16>, vector<8x8xbf16>, vector<8x8xf32> -> vector<8x8xf32>
    %cst_35 = arith.constant 0.353553385 : f32
    %87 = vector.broadcast %cst_35 : f32 to vector<8x8xf32>
    %88 = arith.mulf %86, %87 : vector<8x8xf32>
    %cst_36 = arith.constant -1.000000e+04 : f32
    %89 = vector.broadcast %cst_36 : f32 to vector<8x8xf32>
    %90 = arith.select %12, %88, %89 : vector<8x8xi1>, vector<8x8xf32>
    %cst_37 = arith.constant dense<0xFF800000> : vector<8xf32>
    %91 = vector.multi_reduction <maximumf>, %90, %cst_37 [1] : vector<8x8xf32> to vector<8xf32>
    %92 = vector.shape_cast %91 : vector<8xf32> to vector<8x1xf32>
    %93 = vector.broadcast %92 : vector<8x1xf32> to vector<8x8xf32>
    %94 = arith.subf %90, %93 : vector<8x8xf32>
    %95 = math.exp %94 : vector<8x8xf32>
    %cst_38 = arith.constant dense<0.000000e+00> : vector<8xf32>
    %96 = vector.multi_reduction <add>, %95, %cst_38 [1] : vector<8x8xf32> to vector<8xf32>
    %97 = vector.shape_cast %96 : vector<8xf32> to vector<8x1xf32>
    %98 = tpu.reciprocal %97 {approx = true} : vector<8x1xf32> -> vector<8x1xf32>
    %99 = vector.broadcast %98 : vector<8x1xf32> to vector<8x8xf32>
    %100 = arith.mulf %95, %99 : vector<8x8xf32>
    %101 = arith.truncf %100 : vector<8x8xf32> to vector<8x8xbf16>
    %cst_39 = arith.constant dense<0.000000e+00> : vector<8x8xf32>
    %102 = tpu.matmul %101, %85, %cst_39 {dimension_numbers = #tpu.dot_dimension_numbers<[1], [0], [0], [1], [0, 0, 1, 1], [], []>} : vector<8x8xbf16>, vector<8x8xbf16>, vector<8x8xf32> -> vector<8x8xf32>
    %103 = arith.truncf %102 : vector<8x8xf32> to vector<8x8xbf16>
    %c0_40 = arith.constant 0 : index
    %c24_41 = arith.constant 24 : index
    %104 = vector.load %arg17[%c0_40, %c24_41] : memref<8x32xbf16, #tpu.memory_space<vmem>>, vector<8x8xbf16>
    tpu.vector_store %arg17[%c0_40, %c24_41], %103 {strides = array<i32>} : memref<8x32xbf16, #tpu.memory_space<vmem>>, vector<8x8xbf16>,
    %c0_42 = arith.constant 0 : index
    %c0_43 = arith.constant 0 : index
    %105 = vector.load %arg17[%c0_42, %c0_43] : memref<8x32xbf16, #tpu.memory_space<vmem>>, vector<8x32xbf16>
    %c0_44 = arith.constant 0 : index
    %c0_45 = arith.constant 0 : index
    %106 = vector.load %arg7[%c0_44, %c0_45] : memref<32x32xbf16, #tpu.memory_space<vmem>>, vector<32x32xbf16>
    %cst_46 = arith.constant dense<0.000000e+00> : vector<8x32xf32>
    %107 = tpu.matmul %105, %106, %cst_46 {dimension_numbers = #tpu.dot_dimension_numbers<[1], [0], [0], [1], [0, 0, 1, 1], [], []>} : vector<8x32xbf16>, vector<32x32xbf16>, vector<8x32xf32> -> vector<8x32xf32>
    %c0_47 = arith.constant 0 : index
    %c0_48 = arith.constant 0 : index
    %108 = vector.load %arg8[%c0_47, %c0_48] : memref<1x32xf32, #tpu.memory_space<vmem>>, vector<1x32xf32>
    %109 = vector.broadcast %108 : vector<1x32xf32> to vector<8x32xf32>
    %110 = arith.addf %107, %109 : vector<8x32xf32>
    %111 = arith.addf %7, %110 : vector<8x32xf32>
    %c0_49 = arith.constant 0 : index
    %c0_50 = arith.constant 0 : index
    %112 = vector.load %arg9[%c0_49, %c0_50] : memref<1x32xf32, #tpu.memory_space<vmem>>, vector<1x32xf32>
    %c0_51 = arith.constant 0 : index
    %c0_52 = arith.constant 0 : index
    %113 = vector.load %arg10[%c0_51, %c0_52] : memref<1x32xf32, #tpu.memory_space<vmem>>, vector<1x32xf32>
    %cst_53 = arith.constant dense<0.000000e+00> : vector<8xf32>
    %114 = vector.multi_reduction <add>, %111, %cst_53 [1] : vector<8x32xf32> to vector<8xf32>
    %115 = vector.shape_cast %114 : vector<8xf32> to vector<8x1xf32>
    %cst_54 = arith.constant 3.200000e+01 : f32
    %116 = vector.broadcast %cst_54 : f32 to vector<8x1xf32>
    %117 = arith.divf %115, %116 : vector<8x1xf32>
    %118 = vector.broadcast %117 : vector<8x1xf32> to vector<8x32xf32>
    %119 = arith.subf %111, %118 : vector<8x32xf32>
    %120 = arith.mulf %119, %119 : vector<8x32xf32>
    %cst_55 = arith.constant dense<0.000000e+00> : vector<8xf32>
    %121 = vector.multi_reduction <add>, %120, %cst_55 [1] : vector<8x32xf32> to vector<8xf32>
    %122 = vector.shape_cast %121 : vector<8xf32> to vector<8x1xf32>
    %cst_56 = arith.constant 3.200000e+01 : f32
    %123 = vector.broadcast %cst_56 : f32 to vector<8x1xf32>
    %124 = arith.divf %122, %123 : vector<8x1xf32>
    %125 = vector.broadcast %117 : vector<8x1xf32> to vector<8x32xf32>
    %126 = arith.subf %111, %125 : vector<8x32xf32>
    %cst_57 = arith.constant 9.99999974E-6 : f32
    %127 = vector.broadcast %cst_57 : f32 to vector<8x1xf32>
    %128 = arith.addf %124, %127 : vector<8x1xf32>
    %129 = math.rsqrt %128 : vector<8x1xf32>
    %130 = vector.broadcast %129 : vector<8x1xf32> to vector<8x32xf32>
    %131 = arith.mulf %126, %130 : vector<8x32xf32>
    %132 = vector.broadcast %112 : vector<1x32xf32> to vector<8x32xf32>
    %133 = arith.mulf %131, %132 : vector<8x32xf32>
    %134 = vector.broadcast %113 : vector<1x32xf32> to vector<8x32xf32>
    %135 = arith.addf %133, %134 : vector<8x32xf32>
    %136 = arith.truncf %135 : vector<8x32xf32> to vector<8x32xbf16>
    %c0_58 = arith.constant 0 : index
    %c0_59 = arith.constant 0 : index
    %137 = vector.load %arg11[%c0_58, %c0_59] : memref<32x128xbf16, #tpu.memory_space<vmem>>, vector<32x128xbf16>
    %cst_60 = arith.constant dense<0.000000e+00> : vector<8x128xf32>
    %138 = tpu.matmul %136, %137, %cst_60 {dimension_numbers = #tpu.dot_dimension_numbers<[1], [0], [0], [1], [0, 0, 1, 1], [], []>} : vector<8x32xbf16>, vector<32x128xbf16>, vector<8x128xf32> -> vector<8x128xf32>
    %c0_61 = arith.constant 0 : index
    %c0_62 = arith.constant 0 : index
    %139 = vector.load %arg12[%c0_61, %c0_62] : memref<1x128xf32, #tpu.memory_space<vmem>>, vector<1x128xf32>
    %140 = vector.broadcast %139 : vector<1x128xf32> to vector<8x128xf32>
    %141 = arith.addf %138, %140 : vector<8x128xf32>
    %cst_63 = arith.constant 5.000000e-01 : f32
    %142 = vector.broadcast %cst_63 : f32 to vector<8x128xf32>
    %143 = arith.mulf %142, %141 : vector<8x128xf32>
    %144 = arith.mulf %141, %141 : vector<8x128xf32>
    %145 = arith.mulf %141, %144 : vector<8x128xf32>
    %cst_64 = arith.constant 4.471500e-02 : f32
    %146 = vector.broadcast %cst_64 : f32 to vector<8x128xf32>
    %147 = arith.mulf %146, %145 : vector<8x128xf32>
    %148 = arith.addf %141, %147 : vector<8x128xf32>
    %cst_65 = arith.constant 0.797884583 : f32
    %149 = vector.broadcast %cst_65 : f32 to vector<8x128xf32>
    %150 = arith.mulf %149, %148 : vector<8x128xf32>
    %151 = math.tanh %150 : vector<8x128xf32>
    %cst_66 = arith.constant 1.000000e+00 : f32
    %152 = vector.broadcast %cst_66 : f32 to vector<8x128xf32>
    %153 = arith.addf %152, %151 : vector<8x128xf32>
    %154 = arith.mulf %143, %153 : vector<8x128xf32>
    %155 = arith.truncf %154 : vector<8x128xf32> to vector<8x128xbf16>
    %c0_67 = arith.constant 0 : index
    %c0_68 = arith.constant 0 : index
    %156 = vector.load %arg13[%c0_67, %c0_68] : memref<128x32xbf16, #tpu.memory_space<vmem>>, vector<128x32xbf16>
    %cst_69 = arith.constant dense<0.000000e+00> : vector<8x32xf32>
    %157 = tpu.matmul %155, %156, %cst_69 {dimension_numbers = #tpu.dot_dimension_numbers<[1], [0], [0], [1], [0, 0, 1, 1], [], []>} : vector<8x128xbf16>, vector<128x32xbf16>, vector<8x32xf32> -> vector<8x32xf32>
    %158 = arith.addf %111, %157 : vector<8x32xf32>
    %c0_70 = arith.constant 0 : index
    %c0_71 = arith.constant 0 : index
    %159 = vector.load %arg14[%c0_70, %c0_71] : memref<1x32xf32, #tpu.memory_space<vmem>>, vector<1x32xf32>
    %160 = vector.broadcast %159 : vector<1x32xf32> to vector<8x32xf32>
    %161 = arith.addf %158, %160 : vector<8x32xf32>
    %c0_72 = arith.constant 0 : index
    %c0_73 = arith.constant 0 : index
    %c0_74 = arith.constant 0 : index
    %162 = vector.load %arg15[%c0_72, %c0_73, %c0_74] : memref<1x8x32xf32, #tpu.memory_space<vmem>>, vector<1x8x32xf32>
    %163 = vector.shape_cast %162 : vector<1x8x32xf32> to vector<8x32xf32>
    %164 = vector.shape_cast %161 : vector<8x32xf32> to vector<1x8x32xf32>
    tpu.vector_store %arg15[%c0_72, %c0_73, %c0_74], %164 {strides = array<i32>} : memref<1x8x32xf32, #tpu.memory_space<vmem>>, vector<1x8x32xf32>,
    return
  }
  func.func @transform_0(%arg0: i32, %arg1: i32) -> (i32, i32, i32) {
    %c0_i32 = arith.constant 0 : i32
    %c0_i32_0 = arith.constant 0 : i32
    %c0_i32_1 = arith.constant 0 : i32
    return %arg0, %c0_i32, %c0_i32_0 : i32, i32, i32
  }
  func.func @transform_1(%arg0: i32, %arg1: i32) -> (i32, i32) {
    %c0_i32 = arith.constant 0 : i32
    %c0_i32_0 = arith.constant 0 : i32
    %c0_i32_1 = arith.constant 0 : i32
    return %c0_i32, %c0_i32_0 : i32, i32
  }
  func.func @transform_2(%arg0: i32, %arg1: i32) -> (i32, i32) {
    %c0_i32 = arith.constant 0 : i32
    %c0_i32_0 = arith.constant 0 : i32
    %c0_i32_1 = arith.constant 0 : i32
    return %c0_i32, %c0_i32_0 : i32, i32
  }
  func.func @transform_3(%arg0: i32, %arg1: i32) -> (i32, i32) {
    %c0_i32 = arith.constant 0 : i32
    %c0_i32_0 = arith.constant 0 : i32
    %c0_i32_1 = arith.constant 0 : i32
    return %c0_i32, %c0_i32_0 : i32, i32
  }
  func.func @transform_4(%arg0: i32, %arg1: i32) -> (i32, i32) {
    %c0_i32 = arith.constant 0 : i32
    %c0_i32_0 = arith.constant 0 : i32
    %c0_i32_1 = arith.constant 0 : i32
    return %c0_i32, %c0_i32_0 : i32, i32
  }
  func.func @transform_5(%arg0: i32, %arg1: i32) -> (i32, i32) {
    %c0_i32 = arith.constant 0 : i32
    %c0_i32_0 = arith.constant 0 : i32
    %c0_i32_1 = arith.constant 0 : i32
    return %c0_i32, %c0_i32_0 : i32, i32
  }
  func.func @transform_6(%arg0: i32, %arg1: i32) -> (i32, i32) {
    %c0_i32 = arith.constant 0 : i32
    %c0_i32_0 = arith.constant 0 : i32
    %c0_i32_1 = arith.constant 0 : i32
    return %c0_i32, %c0_i32_0 : i32, i32
  }
  func.func @transform_7(%arg0: i32, %arg1: i32) -> (i32, i32) {
    %c0_i32 = arith.constant 0 : i32
    %c0_i32_0 = arith.constant 0 : i32
    %c0_i32_1 = arith.constant 0 : i32
    return %c0_i32, %c0_i32_0 : i32, i32
  }
  func.func @transform_8(%arg0: i32, %arg1: i32) -> (i32, i32) {
    %c0_i32 = arith.constant 0 : i32
    %c0_i32_0 = arith.constant 0 : i32
    %c0_i32_1 = arith.constant 0 : i32
    return %c0_i32, %c0_i32_0 : i32, i32
  }
  func.func @transform_9(%arg0: i32, %arg1: i32) -> (i32, i32) {
    %c0_i32 = arith.constant 0 : i32
    %c0_i32_0 = arith.constant 0 : i32
    %c0_i32_1 = arith.constant 0 : i32
    return %c0_i32, %c0_i32_0 : i32, i32
  }
  func.func @transform_10(%arg0: i32, %arg1: i32) -> (i32, i32) {
    %c0_i32 = arith.constant 0 : i32
    %c0_i32_0 = arith.constant 0 : i32
    %c0_i32_1 = arith.constant 0 : i32
    return %c0_i32, %c0_i32_0 : i32, i32
  }
  func.func @transform_11(%arg0: i32, %arg1: i32) -> (i32, i32) {
    %c0_i32 = arith.constant 0 : i32
    %c0_i32_0 = arith.constant 0 : i32
    %c0_i32_1 = arith.constant 0 : i32
    return %c0_i32, %c0_i32_0 : i32, i32
  }
  func.func @transform_12(%arg0: i32, %arg1: i32) -> (i32, i32) {
    %c0_i32 = arith.constant 0 : i32
    %c0_i32_0 = arith.constant 0 : i32
    %c0_i32_1 = arith.constant 0 : i32
    return %c0_i32, %c0_i32_0 : i32, i32
  }
  func.func @transform_13(%arg0: i32, %arg1: i32) -> (i32, i32, i32) {
    %c0_i32 = arith.constant 0 : i32
    %c0_i32_0 = arith.constant 0 : i32
    return %arg0, %arg1, %c0_i32 : i32, i32, i32
  }
}

</mosaic_0001>

<llo_original>
// kernel: tpu_custom_call.1
$region0: #{tpu_custom_call.1}
  #allocation0 [shape = 'u32[]', space=smem, size = 0x4, offset = 0x4, fixed_abs, tag = 'smem constant byte address 0x4 - core index']
  #allocation1 [shape = 'u32[72,128]{1,0:T(1,128)}', space=vmem, size = 0x9000, scoped, tag = 'internal scratch']
  #allocation2 [shape = 'bf16[8,96]{1,0:T(8,128)(2,1)}', space=vmem, size = 0x800, scoped, tag = 'scratch operand']
  #allocation3 [shape = 'bf16[8,32]{1,0:T(8,128)(2,1)}', space=vmem, size = 0x800, scoped, tag = 'scratch operand']
  %s0 = inlined_call_operand.vmem [shape: f32[2,8,32], index: 0, kind: input, shape index: {}]
  %s1 = inlined_call_operand.vmem [shape: f32[1,32], index: 1, kind: input, shape index: {}]
  %s2 = inlined_call_operand.vmem [shape: f32[1,32], index: 2, kind: input, shape index: {}]
  %s3 = inlined_call_operand.vmem [shape: bf16[32,96], index: 3, kind: input, shape index: {}]
  %s4 = inlined_call_operand.vmem [shape: f32[1,96], index: 4, kind: input, shape index: {}]
  %s5 = inlined_call_operand.vmem [shape: bf16[32,32], index: 5, kind: input, shape index: {}]
  %s6 = inlined_call_operand.vmem [shape: f32[1,32], index: 6, kind: input, shape index: {}]
  %s7 = inlined_call_operand.vmem [shape: f32[1,32], index: 7, kind: input, shape index: {}]
  %s8 = inlined_call_operand.vmem [shape: f32[1,32], index: 8, kind: input, shape index: {}]
  %s9 = inlined_call_operand.vmem [shape: bf16[32,128], index: 9, kind: input, shape index: {}]
  %s10 = inlined_call_operand.vmem [shape: f32[1,128], index: 10, kind: input, shape index: {}]
  %s11 = inlined_call_operand.vmem [shape: bf16[128,32], index: 11, kind: input, shape index: {}]
  %s12 = inlined_call_operand.vmem [shape: f32[1,32], index: 12, kind: input, shape index: {}]
  %s13 = inlined_call_operand.hbm [shape: f32[2,8,32], index: 13, kind: output, shape index: {}]
  %s14 = sld [smem:[#allocation0]]
  $region89: #{tpu_custom_call.1} parent=0
    _
  %s16 = ssub.s32 1, %s14
  %s17 = scalar_select 0, %s16, %s14
  $region1: #{tpu_custom_call.1} parent=0
    #allocation4 [shape = 'u8[8192]{0}', space=vmem, size = 0x2000, scoped, tag = 'output window, operand 0']
    #allocation5 [shape = 's32[2]{0}', space=sflag, size = 0x8, scoped, tag = 'scoped memory for tpu_custom_call.1']
    %18 = vsyncpa [#allocation5], 0
    %s19 = scalar_lea.sflag [#allocation5], 1
    %20 = vsyncpa %s19, 0
    loop: start=0, step=1, limit=4
    $region2: #{tpu_custom_call.1} parent=1 // loop_pre_header
      _
    $region3: #{tpu_custom_call.1} parent=1 // loop_header
      %s22 = sphi 0, %s26
      %p23 = scmp.ge.s32.totalorder %s22, 4
      %s29 = sphi 0, %s41
      %s30 = sphi 0, %s37
      %s31 = sphi 0, %s29
      %s32 = sphi 0, %s30
      %s33 = sphi 0, %s31
      %s34 = sphi 0, %s32
      %s44 = sphi 0, %s46
      %s47 = sphi 0, %s44
      %s48 = sphi 0, %s47
      %s64 = sphi 0, %s48
      %s68 = sphi 0, %s68
      %s70 = sphi 0, %s68
      %s71 = sphi 0, %s70
      %s85 = sphi 0, %s71
      %s89 = sphi 0, %s89
      %s91 = sphi 0, %s89
      %s92 = sphi 0, %s91
      %s106 = sphi 0, %s92
      %s110 = sphi 0, %s110
      %s112 = sphi 0, %s110
      %s113 = sphi 0, %s112
      %s127 = sphi 0, %s113
      %s131 = sphi 0, %s131
      %s133 = sphi 0, %s131
      %s134 = sphi 0, %s133
      %s148 = sphi 0, %s134
      %s152 = sphi 0, %s152
      %s154 = sphi 0, %s152
      %s155 = sphi 0, %s154
      %s169 = sphi 0, %s155
      %s173 = sphi 0, %s173
      %s175 = sphi 0, %s173
      %s176 = sphi 0, %s175
      %s190 = sphi 0, %s176
      %s194 = sphi 0, %s194
      %s196 = sphi 0, %s194
      %s197 = sphi 0, %s196
      %s211 = sphi 0, %s197
      %s215 = sphi 0, %s215
      %s217 = sphi 0, %s215
      %s218 = sphi 0, %s217
      %s232 = sphi 0, %s218
      %s236 = sphi 0, %s236
      %s238 = sphi 0, %s236
      %s239 = sphi 0, %s238
      %s253 = sphi 0, %s239
      %s257 = sphi 0, %s257
      %s259 = sphi 0, %s257
      %s260 = sphi 0, %s259
      %s274 = sphi 0, %s260
      %s278 = sphi 0, %s278
      %s280 = sphi 0, %s278
      %s281 = sphi 0, %s280
      %s295 = sphi 0, %s281
      %s299 = sphi 0, %s299
      %s301 = sphi 0, %s299
      %s302 = sphi 0, %s301
      %s316 = sphi 0, %s302
      %s324 = sphi 0, %s326
      %s327 = sphi 0, %s324
      %s328 = sphi 0, %s327
      %s344 = sphi 0, %s328
    $region4: #{tpu_custom_call.1} parent=1 // loop_header_branch
      %25 = sbr.rel (%p23) target = $region8
    $region5: #{tpu_custom_call.1} parent=1 // loop_body
      %s27 = ssub.s32 %s22, 1
      %s28 = ssub.s32 %s22, 2
      %s35 = sadd.s32 1, %s30
      %p36 = scmp.ge.s32.totalorder %s35, 1
      %s37 = scalar_select %p36, 0, %s35
      %s38 = sadd.s32 1, %s29
      %s39 = scalar_select %p36, %s38, %s29
      %p40 = scmp.ge.s32.totalorder %s39, 2
      %s41 = scalar_select %p40, 0, %s39
      %s42 = ssub.s32 %s29, %s41
      %p43 = scmp.eq.s32.totalorder %s42, 0
      %s45 = sadd.s32 %s44, 1
      %s46 = scalar_select %p43, %s44, %s45
      %p49 = pneg %p43
      %p50 = scmp.eq.s32.totalorder %s22, 1
      %p51 = por %p49, %p50
      %p52 = scmp.ne.s32.totalorder %s44, %s47
      %p53 = scmp.eq.s32.totalorder %s22, 0
      %p54 = por %p52, %p53
      %p55 = scmp.ne.s32.totalorder %s44, %s47
      %p56 = scmp.eq.s32.totalorder %s27, 1
      %p57 = por %p55, %p56
      %p58 = scmp.ne.s32.totalorder %s47, %s48
      %p59 = scmp.eq.s32.totalorder %s27, 0
      %p60 = por %p58, %p59
      %p61 = scmp.ne.s32.totalorder %s47, %s48
      %p62 = scmp.eq.s32.totalorder %s28, 1
      %p63 = por %p61, %p62
      %p65 = scmp.ne.s32.totalorder %s48, %s64
      %p66 = scmp.eq.s32.totalorder %s28, 0
      %p67 = por %p65, %p66
      %s69 = sadd.s32 %s68, 1
      %p72 = scmp.eq.s32.totalorder %s22, 1
      %p73 = scmp.ne.s32.totalorder %s68, %s70
      %p74 = scmp.eq.s32.totalorder %s22, 0
      %p75 = por %p73, %p74
      %p76 = scmp.ne.s32.totalorder %s68, %s70
      %p77 = scmp.eq.s32.totalorder %s27, 1
      %p78 = por %p76, %p77
      %p79 = scmp.ne.s32.totalorder %s70, %s71
      %p80 = scmp.eq.s32.totalorder %s27, 0
      %p81 = por %p79, %p80
      %p82 = scmp.ne.s32.totalorder %s70, %s71
      %p83 = scmp.eq.s32.totalorder %s28, 1
      %p84 = por %p82, %p83
      %p86 = scmp.ne.s32.totalorder %s71, %s85
      %p87 = scmp.eq.s32.totalorder %s28, 0
      %p88 = por %p86, %p87
      %s90 = sadd.s32 %s89, 1
      %p93 = scmp.eq.s32.totalorder %s22, 1
      %p94 = scmp.ne.s32.totalorder %s89, %s91
      %p95 = scmp.eq.s32.totalorder %s22, 0
      %p96 = por %p94, %p95
      %p97 = scmp.ne.s32.totalorder %s89, %s91
      %p98 = scmp.eq.s32.totalorder %s27, 1
      %p99 = por %p97, %p98
      %p100 = scmp.ne.s32.totalorder %s91, %s92
      %p101 = scmp.eq.s32.totalorder %s27, 0
      %p102 = por %p100, %p101
      %p103 = scmp.ne.s32.totalorder %s91, %s92
      %p104 = scmp.eq.s32.totalorder %s28, 1
      %p105 = por %p103, %p104
      %p107 = scmp.ne.s32.totalorder %s92, %s106
      %p108 = scmp.eq.s32.totalorder %s28, 0
      %p109 = por %p107, %p108
      %s111 = sadd.s32 %s110, 1
      %p114 = scmp.eq.s32.totalorder %s22, 1
      %p115 = scmp.ne.s32.totalorder %s110, %s112
      %p116 = scmp.eq.s32.totalorder %s22, 0
      %p117 = por %p115, %p116
      %p118 = scmp.ne.s32.totalorder %s110, %s112
      %p119 = scmp.eq.s32.totalorder %s27, 1
      %p120 = por %p118, %p119
      %p121 = scmp.ne.s32.totalorder %s112, %s113
      %p122 = scmp.eq.s32.totalorder %s27, 0
      %p123 = por %p121, %p122
      %p124 = scmp.ne.s32.totalorder %s112, %s113
      %p125 = scmp.eq.s32.totalorder %s28, 1
      %p126 = por %p124, %p125
      %p128 = scmp.ne.s32.totalorder %s113, %s127
      %p129 = scmp.eq.s32.totalorder %s28, 0
      %p130 = por %p128, %p129
      %s132 = sadd.s32 %s131, 1
      %p135 = scmp.eq.s32.totalorder %s22, 1
      %p136 = scmp.ne.s32.totalorder %s131, %s133
      %p137 = scmp.eq.s32.totalorder %s22, 0
      %p138 = por %p136, %p137
      %p139 = scmp.ne.s32.totalorder %s131, %s133
      %p140 = scmp.eq.s32.totalorder %s27, 1
      %p141 = por %p139, %p140
      %p142 = scmp.ne.s32.totalorder %s133, %s134
      %p143 = scmp.eq.s32.totalorder %s27, 0
      %p144 = por %p142, %p143
      %p145 = scmp.ne.s32.totalorder %s133, %s134
      %p146 = scmp.eq.s32.totalorder %s28, 1
      %p147 = por %p145, %p146
      %p149 = scmp.ne.s32.totalorder %s134, %s148
      %p150 = scmp.eq.s32.totalorder %s28, 0
      %p151 = por %p149, %p150
      %s153 = sadd.s32 %s152, 1
      %p156 = scmp.eq.s32.totalorder %s22, 1
      %p157 = scmp.ne.s32.totalorder %s152, %s154
      %p158 = scmp.eq.s32.totalorder %s22, 0
      %p159 = por %p157, %p158
      %p160 = scmp.ne.s32.totalorder %s152, %s154
      %p161 = scmp.eq.s32.totalorder %s27, 1
      %p162 = por %p160, %p161
      %p163 = scmp.ne.s32.totalorder %s154, %s155
      %p164 = scmp.eq.s32.totalorder %s27, 0
      %p165 = por %p163, %p164
      %p166 = scmp.ne.s32.totalorder %s154, %s155
      %p167 = scmp.eq.s32.totalorder %s28, 1
      %p168 = por %p166, %p167
      %p170 = scmp.ne.s32.totalorder %s155, %s169
      %p171 = scmp.eq.s32.totalorder %s28, 0
      %p172 = por %p170, %p171
      %s174 = sadd.s32 %s173, 1
      %p177 = scmp.eq.s32.totalorder %s22, 1
      %p178 = scmp.ne.s32.totalorder %s173, %s175
      %p179 = scmp.eq.s32.totalorder %s22, 0
      %p180 = por %p178, %p179
      %p181 = scmp.ne.s32.totalorder %s173, %s175
      %p182 = scmp.eq.s32.totalorder %s27, 1
      %p183 = por %p181, %p182
      %p184 = scmp.ne.s32.totalorder %s175, %s176
      %p185 = scmp.eq.s32.totalorder %s27, 0
      %p186 = por %p184, %p185
      %p187 = scmp.ne.s32.totalorder %s175, %s176
      %p188 = scmp.eq.s32.totalorder %s28, 1
      %p189 = por %p187, %p188
      %p191 = scmp.ne.s32.totalorder %s176, %s190
      %p192 = scmp.eq.s32.totalorder %s28, 0
      %p193 = por %p191, %p192
      %s195 = sadd.s32 %s194, 1
      %p198 = scmp.eq.s32.totalorder %s22, 1
      %p199 = scmp.ne.s32.totalorder %s194, %s196
      %p200 = scmp.eq.s32.totalorder %s22, 0
      %p201 = por %p199, %p200
      %p202 = scmp.ne.s32.totalorder %s194, %s196
      %p203 = scmp.eq.s32.totalorder %s27, 1
      %p204 = por %p202, %p203
      %p205 = scmp.ne.s32.totalorder %s196, %s197
      %p206 = scmp.eq.s32.totalorder %s27, 0
      %p207 = por %p205, %p206
      %p208 = scmp.ne.s32.totalorder %s196, %s197
      %p209 = scmp.eq.s32.totalorder %s28, 1
      %p210 = por %p208, %p209
      %p212 = scmp.ne.s32.totalorder %s197, %s211
      %p213 = scmp.eq.s32.totalorder %s28, 0
      %p214 = por %p212, %p213
      %s216 = sadd.s32 %s215, 1
      %p219 = scmp.eq.s32.totalorder %s22, 1
      %p220 = scmp.ne.s32.totalorder %s215, %s217
      %p221 = scmp.eq.s32.totalorder %s22, 0
      %p222 = por %p220, %p221
      %p223 = scmp.ne.s32.totalorder %s215, %s217
      %p224 = scmp.eq.s32.totalorder %s27, 1
      %p225 = por %p223, %p224
      %p226 = scmp.ne.s32.totalorder %s217, %s218
      %p227 = scmp.eq.s32.totalorder %s27, 0
      %p228 = por %p226, %p227
      %p229 = scmp.ne.s32.totalorder %s217, %s218
      %p230 = scmp.eq.s32.totalorder %s28, 1
      %p231 = por %p229, %p230
      %p233 = scmp.ne.s32.totalorder %s218, %s232
      %p234 = scmp.eq.s32.totalorder %s28, 0
      %p235 = por %p233, %p234
      %s237 = sadd.s32 %s236, 1
      %p240 = scmp.eq.s32.totalorder %s22, 1
      %p241 = scmp.ne.s32.totalorder %s236, %s238
      %p242 = scmp.eq.s32.totalorder %s22, 0
      %p243 = por %p241, %p242
      %p244 = scmp.ne.s32.totalorder %s236, %s238
      %p245 = scmp.eq.s32.totalorder %s27, 1
      %p246 = por %p244, %p245
      %p247 = scmp.ne.s32.totalorder %s238, %s239
      %p248 = scmp.eq.s32.totalorder %s27, 0
      %p249 = por %p247, %p248
      %p250 = scmp.ne.s32.totalorder %s238, %s239
      %p251 = scmp.eq.s32.totalorder %s28, 1
      %p252 = por %p250, %p251
      %p254 = scmp.ne.s32.totalorder %s239, %s253
      %p255 = scmp.eq.s32.totalorder %s28, 0
      %p256 = por %p254, %p255
      %s258 = sadd.s32 %s257, 1
      %p261 = scmp.eq.s32.totalorder %s22, 1
      %p262 = scmp.ne.s32.totalorder %s257, %s259
      %p263 = scmp.eq.s32.totalorder %s22, 0
      %p264 = por %p262, %p263
      %p265 = scmp.ne.s32.totalorder %s257, %s259
      %p266 = scmp.eq.s32.totalorder %s27, 1
      %p267 = por %p265, %p266
      %p268 = scmp.ne.s32.totalorder %s259, %s260
      %p269 = scmp.eq.s32.totalorder %s27, 0
      %p270 = por %p268, %p269
      %p271 = scmp.ne.s32.totalorder %s259, %s260
      %p272 = scmp.eq.s32.totalorder %s28, 1
      %p273 = por %p271, %p272
      %p275 = scmp.ne.s32.totalorder %s260, %s274
      %p276 = scmp.eq.s32.totalorder %s28, 0
      %p277 = por %p275, %p276
      %s279 = sadd.s32 %s278, 1
      %p282 = scmp.eq.s32.totalorder %s22, 1
      %p283 = scmp.ne.s32.totalorder %s278, %s280
      %p284 = scmp.eq.s32.totalorder %s22, 0
      %p285 = por %p283, %p284
      %p286 = scmp.ne.s32.totalorder %s278, %s280
      %p287 = scmp.eq.s32.totalorder %s27, 1
      %p288 = por %p286, %p287
      %p289 = scmp.ne.s32.totalorder %s280, %s281
      %p290 = scmp.eq.s32.totalorder %s27, 0
      %p291 = por %p289, %p290
      %p292 = scmp.ne.s32.totalorder %s280, %s281
      %p293 = scmp.eq.s32.totalorder %s28, 1
      %p294 = por %p292, %p293
      %p296 = scmp.ne.s32.totalorder %s281, %s295
      %p297 = scmp.eq.s32.totalorder %s28, 0
      %p298 = por %p296, %p297
      %s300 = sadd.s32 %s299, 1
      %p303 = scmp.eq.s32.totalorder %s22, 1
      %p304 = scmp.ne.s32.totalorder %s299, %s301
      %p305 = scmp.eq.s32.totalorder %s22, 0
      %p306 = por %p304, %p305
      %p307 = scmp.ne.s32.totalorder %s299, %s301
      %p308 = scmp.eq.s32.totalorder %s27, 1
      %p309 = por %p307, %p308
      %p310 = scmp.ne.s32.totalorder %s301, %s302
      %p311 = scmp.eq.s32.totalorder %s27, 0
      %p312 = por %p310, %p311
      %p313 = scmp.ne.s32.totalorder %s301, %s302
      %p314 = scmp.eq.s32.totalorder %s28, 1
      %p315 = por %p313, %p314
      %p317 = scmp.ne.s32.totalorder %s302, %s316
      %p318 = scmp.eq.s32.totalorder %s28, 0
      %p319 = por %p317, %p318
      %s320 = ssub.s32 %s29, %s41
      %s321 = ssub.s32 %s30, %s37
      %s322 = sor.u32 %s320, %s321
      %p323 = scmp.eq.s32.totalorder %s322, 0
      %s325 = sadd.s32 %s324, 1
      %s326 = scalar_select %p323, %s324, %s325
      %p329 = pneg %p323
      %p330 = scmp.eq.s32.totalorder %s22, 1
      %p331 = por %p329, %p330
      %p332 = scmp.ne.s32.totalorder %s324, %s327
      %p333 = scmp.eq.s32.totalorder %s22, 0
      %p334 = por %p332, %p333
      %p335 = scmp.ne.s32.totalorder %s324, %s327
      %p336 = scmp.eq.s32.totalorder %s27, 1
      %p337 = por %p335, %p336
      %p338 = scmp.ne.s32.totalorder %s327, %s328
      %p339 = scmp.eq.s32.totalorder %s27, 0
      %p340 = por %p338, %p339
      %p341 = scmp.ne.s32.totalorder %s327, %s328
      %p342 = scmp.eq.s32.totalorder %s28, 1
      %p343 = por %p341, %p342
      %p345 = scmp.ne.s32.totalorder %s328, %s344
      %p346 = scmp.eq.s32.totalorder %s28, 0
      %p347 = por %p345, %p346
      %p348 = scmp.le.s32.totalorder 1, %s22
      %p349 = scmp.lt.s32.totalorder %s22, 3
      %p350 = pnand %p348, %p349
      %p351 = pneg %p350
      // Predicated region
      $region9: #{tpu_custom_call.1} parent=5 // pred_check
        _
      $region10: #{tpu_custom_call.1} parent=5 // pred_check_branch
        %353 = sbr.rel (%p350) target = $region12
      $region11: #{tpu_custom_call.1} parent=5 // pred_region
        %s354 = ssub.s32 %s22, 1
        // Predicated region
        $region13: #{tpu_custom_call.1} parent=11 // pred_check
          %p355 = pneg %p81
        $region14: #{tpu_custom_call.1} parent=11 // pred_check_branch
          %357 = sbr.rel (%p355) target = $region16
        $region15: #{tpu_custom_call.1} parent=11 // pred_region
          _
        $region16: #{tpu_custom_call.1} parent=11 // pred_fallthru
          _
        // Predicated region
        $region17: #{tpu_custom_call.1} parent=11 // pred_check
          %p358 = pneg %p102
        $region18: #{tpu_custom_call.1} parent=11 // pred_check_branch
          %360 = sbr.rel (%p358) target = $region20
        $region19: #{tpu_custom_call.1} parent=11 // pred_region
          _
        $region20: #{tpu_custom_call.1} parent=11 // pred_fallthru
          _
        // Predicated region
        $region21: #{tpu_custom_call.1} parent=11 // pred_check
          %p361 = pneg %p123
        $region22: #{tpu_custom_call.1} parent=11 // pred_check_branch
          %363 = sbr.rel (%p361) target = $region24
        $region23: #{tpu_custom_call.1} parent=11 // pred_region
          _
        $region24: #{tpu_custom_call.1} parent=11 // pred_fallthru
          _
        // Predicated region
        $region25: #{tpu_custom_call.1} parent=11 // pred_check
          %p364 = pneg %p144
        $region26: #{tpu_custom_call.1} parent=11 // pred_check_branch
          %366 = sbr.rel (%p364) target = $region28
        $region27: #{tpu_custom_call.1} parent=11 // pred_region
          _
        $region28: #{tpu_custom_call.1} parent=11 // pred_fallthru
          _
        // Predicated region
        $region29: #{tpu_custom_call.1} parent=11 // pred_check
          %p367 = pneg %p165
        $region30: #{tpu_custom_call.1} parent=11 // pred_check_branch
          %369 = sbr.rel (%p367) target = $region32
        $region31: #{tpu_custom_call.1} parent=11 // pred_region
          _
        $region32: #{tpu_custom_call.1} parent=11 // pred_fallthru
          _
        // Predicated region
        $region33: #{tpu_custom_call.1} parent=11 // pred_check
          %p370 = pneg %p186
        $region34: #{tpu_custom_call.1} parent=11 // pred_check_branch
          %372 = sbr.rel (%p370) target = $region36
        $region35: #{tpu_custom_call.1} parent=11 // pred_region
          _
        $region36: #{tpu_custom_call.1} parent=11 // pred_fallthru
          _
        // Predicated region
        $region37: #{tpu_custom_call.1} parent=11 // pred_check
          %p373 = pneg %p207
        $region38: #{tpu_custom_call.1} parent=11 // pred_check_branch
          %375 = sbr.rel (%p373) target = $region40
        $region39: #{tpu_custom_call.1} parent=11 // pred_region
          _
        $region40: #{tpu_custom_call.1} parent=11 // pred_fallthru
          _
        // Predicated region
        $region41: #{tpu_custom_call.1} parent=11 // pred_check
          %p376 = pneg %p228
        $region42: #{tpu_custom_call.1} parent=11 // pred_check_branch
          %378 = sbr.rel (%p376) target = $region44
        $region43: #{tpu_custom_call.1} parent=11 // pred_region
          _
        $region44: #{tpu_custom_call.1} parent=11 // pred_fallthru
          _
        // Predicated region
        $region45: #{tpu_custom_call.1} parent=11 // pred_check
          %p379 = pneg %p249
        $region46: #{tpu_custom_call.1} parent=11 // pred_check_branch
          %381 = sbr.rel (%p379) target = $region48
        $region47: #{tpu_custom_call.1} parent=11 // pred_region
          _
        $region48: #{tpu_custom_call.1} parent=11 // pred_fallthru
          _
        // Predicated region
        $region49: #{tpu_custom_call.1} parent=11 // pred_check
          %p382 = pneg %p270
        $region50: #{tpu_custom_call.1} parent=11 // pred_check_branch
          %384 = sbr.rel (%p382) target = $region52
        $region51: #{tpu_custom_call.1} parent=11 // pred_region
          _
        $region52: #{tpu_custom_call.1} parent=11 // pred_fallthru
          _
        // Predicated region
        $region53: #{tpu_custom_call.1} parent=11 // pred_check
          %p385 = pneg %p291
        $region54: #{tpu_custom_call.1} parent=11 // pred_check_branch
          %387 = sbr.rel (%p385) target = $region56
        $region55: #{tpu_custom_call.1} parent=11 // pred_region
          _
        $region56: #{tpu_custom_call.1} parent=11 // pred_fallthru
          _
        // Predicated region
        $region57: #{tpu_custom_call.1} parent=11 // pred_check
          %p388 = pneg %p312
        $region58: #{tpu_custom_call.1} parent=11 // pred_check_branch
          %390 = sbr.rel (%p388) target = $region60
        $region59: #{tpu_custom_call.1} parent=11 // pred_region
          _
        $region60: #{tpu_custom_call.1} parent=11 // pred_fallthru
          _
      $region12: #{tpu_custom_call.1} parent=5 // pred_fallthru
        _
      %p391 = scmp.lt.s32.totalorder %s22, 2
      // Predicated region
      $region61: #{tpu_custom_call.1} parent=5 // pred_check
        %p392 = pneg %p391
      $region62: #{tpu_custom_call.1} parent=5 // pred_check_branch
        %394 = sbr.rel (%p392) target = $region64
      $region63: #{tpu_custom_call.1} parent=5 // pred_region
        // Predicated region
        $region65: #{tpu_custom_call.1} parent=63 // pred_check
          %p395 = pneg %p54
        $region66: #{tpu_custom_call.1} parent=63 // pred_check_branch
          %397 = sbr.rel (%p395) target = $region68
        $region67: #{tpu_custom_call.1} parent=63 // pred_region
          %p398 = scmp.lt.s32.totalorder %s29, 1
          %s399 = scalar_select %p398, %s29, 1
          %s400 = smul.addr %s399, 8
          %s401 = scalar_lea.vmem %s0, %s400
        $region68: #{tpu_custom_call.1} parent=63 // pred_fallthru
          _
      $region64: #{tpu_custom_call.1} parent=5 // pred_fallthru
        _
      %p402 = scmp.le.s32.totalorder 1, %s22
      %p403 = scmp.lt.s32.totalorder %s22, 3
      %p404 = pnand %p402, %p403
      %p405 = pneg %p404
      // Predicated region
      $region69: #{tpu_custom_call.1} parent=5 // pred_check
        _
      $region70: #{tpu_custom_call.1} parent=5 // pred_check_branch
        %407 = sbr.rel (%p404) target = $region72
      $region71: #{tpu_custom_call.1} parent=5 // pred_region
        %s408 = ssub.s32 %s22, 1
        %p409 = scmp.lt.s32.totalorder %s31, 1
        %s410 = scalar_select %p409, %s31, 1
        %s411 = smul.addr %s410, 8
        %s412 = scalar_lea.vmem %s0, %s411
        %p413 = pneg %p60
        %p414 = pneg %p57
        %p415 = pneg %p81
        %p416 = pneg %p78
        %p417 = pneg %p102
        %p418 = pneg %p99
        %p419 = pneg %p123
        %p420 = pneg %p120
        %p421 = pneg %p144
        %p422 = pneg %p141
        %p423 = pneg %p165
        %p424 = pneg %p162
        %p425 = pneg %p186
        %p426 = pneg %p183
        %p427 = pneg %p207
        %p428 = pneg %p204
        %p429 = pneg %p228
        %p430 = pneg %p225
        %p431 = pneg %p249
        %p432 = pneg %p246
        %p433 = pneg %p270
        %p434 = pneg %p267
        %p435 = pneg %p291
        %p436 = pneg %p288
        %p437 = pneg %p312
        %p438 = pneg %p309
        %p439 = pneg %p340
        %p440 = pneg %p337
        %s441 = sand.u32 %s327, 1
        %s442 = scalar_lea.sflag [#allocation5], %s441
        %s443 = sand.u32 %s327, 1
        %s444 = smul.addr %s443, 8
        %s445 = scalar_lea.vmem [#allocation4], %s444
        %p446 = scmp.lt.s32.totalorder %s31, 1
        %s447 = scalar_select %p446, %s31, 1
        %s448 = smul.addr %s447, 8
        %s449 = scalar_lea.vmem %s0, %s448
        %p451 = scmp.eq.s32.totalorder %s32, 0
        // Predicated region
        $region73: #{tpu_custom_call.1} parent=71 // pred_check
          %p452 = pneg %p451
        $region74: #{tpu_custom_call.1} parent=71 // pred_check_branch
          %454 = sbr.rel (%p452) target = $region76
        $region75: #{tpu_custom_call.1} parent=71 // pred_region
          %v455 = vld [vmem:[%s449] sm:$0xff]
          %v456 = vld [vmem:[%s1] sm:$0x1]
          %v457 = vld [vmem:[%s2] sm:$0x1]
          %vm458 = vcmask 261120
          %v459 = vsel %vm458, %v455, 0.0
          %460 = vadd.xlane.f32.xlu0 %v459
          %v461 = vpop.xlane.xlu0 %460
          %v462 = vrcp.pop 32.0
          %v463 = vmul.f32 32.0, %v462
          %v464 = vsub.f32 1.0, %v463
          %v465 = vmul.f32 %v462, %v464
          %v466 = vadd.f32 %v462, %v465
          %vm467 = vweird.f32 %v462
          %v468 = vsel %vm467, %v462, %v466
          %v469 = vmul.f32 %v461, %v468
          %v470 = vsub.f32 %v455, %v469
          %v471 = vmul.f32 %v470, %v470
          %v472 = vsel %vm458, %v471, 0.0
          %473 = vadd.xlane.f32.xlu0 %v472
          %v474 = vpop.xlane.xlu0 %473
          %v475 = vmul.f32 %v474, %v468
          %v476 = vadd.f32 %v475, 1e-05
          %v477 = vrsqrt.pop %v476
          %v478 = vmul.f32 %v477, %v476
          %v479 = vmul.f32 %v478, %v477
          %v480 = vmul.f32 0.5, %v479
          %v481 = vsub.f32 1.5, %v480
          %v482 = vmul.f32 %v477, %v481
          %vm483 = vweird.f32 %v476
          %vm484 = vweird.f32 %v477
          %vm485 = vmor %vm483, %vm484
          %v486 = vsel %vm485, %v477, %v482
          %v487 = vmul.f32 %v470, %v486
          %v489 = vperm.slane %v456, 0
          %v491 = vmul.f32 %v487, %v489
          %v493 = vperm.slane %v457, 0
          %v495 = vadd.f32 %v491, %v493
          %v496 = vpack.c.bf16 %v495, %v495
          %v497 = vld [vmem:[%s3] sm:$0xf]
          %v498 = vld [vmem:[%s3 + $0x4] sm:$0xf]
          %v499 = vld [vmem:[%s3 + $0x8] sm:$0xf]
          %v500 = vld [vmem:[%s3 + $0xc] sm:$0xf]
          %v501 = vld [vmem:[%s4] sm:$0x1]
          %v503 = vperm.slane %v501, 0
          %v509 = vunpack.c.l.b16 %v497
          %v510 = vunpack.c.l.b16 %v498
          %v511 = vunpack.c.l.b16 %v499
          %v512 = vunpack.c.l.b16 %v500
          %v513 = vpack.c.b16 %v510, %v509
          %v514 = vpack.c.b16 %v512, %v511
          %v518 = vsel %vm458, %v496, 0
          %520 = vmatpush.bf16.msra.mxu0 0
          %521 = vmatpush.bf16.msra.mxu0 0
          %522 = vmatpush.bf16.msra.mxu0 0
          %523 = vmatpush.bf16.msra.mxu0 0
          %524 = vmatpush.bf16.msra.mxu0 0
          %525 = vmatpush.bf16.msra.mxu0 0
          %526 = vmatpush.bf16.msra.mxu0 %v514
          %527 = vmatpush.bf16.msra.mxu0 %v513
          %528 = vmatmul.bf16.gmra.mxu0 %v518
          %v529 = vpop.f32.mrf.mxu0
          %v530 = vadd.f32 %v503, %v529
          %v531 = vpop.f32.mrf.mxu0
          %532 = vdwg.mxu0
          %v533 = vpack.c.bf16 %v530, %v530
          %vm534 = vcmask 781312
          %535 = vst.msk [vmem:[#allocation2] sm:$0xf] %vm534, %v533
        $region76: #{tpu_custom_call.1} parent=71 // pred_fallthru
          _
        %s536 = smul.u32 %s32, 8
        %s537 = scalar_lea.vmem %s449, %s536
        %v538 = vld [vmem:[%s537] sm:$0xff]
        %v539 = vlaneseq
        %v540 = vshrl.u32 %v539, 7
        %v541 = vstv %s536
        %v542 = vadd.s32 %v541, %v540
        %v543 = vlaneseq
        %v544 = vand.u32 %v543, 127
        %vm545 = vcmp.le.s32.totalorder %v544, %v542
        %s546 = sshra.s32 %s536, 3
        %s547 = sand.u32 %s536, 7
        %s548 = smul.addr %s546, 4
        %s549 = scalar_lea.vmem [#allocation2], %s548
        %v550 = vld [vmem:[%s549] sm:$0xf]
        %v551 = vld [vmem:[#allocation2] sm:$0xf]
        %v553 = vunpack.c.l.b16 %v551
        %v554 = vpack.c.b16 %v553, %v553
        %555 = vrot.lane.b32.xlu0 %v554, 96
        %v556 = vpop.permute.xlu0 %555
        %vm557 = vcmask 64512
        %v559 = vsel %vm557, %v550, 0
        %v562 = vsel %vm557, %v556, 0
        %564 = vmatpush.bf16.xpose.msra.mxu0 0
        %565 = vmatpush.bf16.xpose.msra.mxu0 0
        %566 = vmatpush.bf16.xpose.msra.mxu0 0
        %567 = vmatpush.bf16.xpose.msra.mxu0 0
        %568 = vmatpush.bf16.xpose.msra.mxu0 0
        %569 = vmatpush.bf16.xpose.msra.mxu0 0
        %570 = vmatpush.bf16.xpose.msra.mxu0 0
        %571 = vmatpush.bf16.xpose.msra.mxu0 %v562
        %572 = vmatmul.bf16.gmra.mxu0 %v559
        %v573 = vpop.f32.mrf.mxu0
        %v574 = vadd.f32 0.0, %v573
        %v575 = vpop.f32.mrf.mxu0
        %576 = vdwg.mxu0
        %v577 = vmul.f32 %v574, 0.35355338
        %v578 = vsel %vm545, %v577, -10000.0
        %v579 = vsel %vm557, %v578, -inf
        %580 = vmax.xlane.f32.xlu0 %v579
        %v581 = vpop.xlane.xlu0 %580
        %v582 = vsub.f32 %v578, %v581
        %v583 = vmul.f32 %v582, 1.442695
        %v584 = vpow.pop %v583
        %v585 = vsel %vm557, %v584, 0.0
        %586 = vadd.xlane.f32.xlu0 %v585
        %v587 = vpop.xlane.xlu0 %586
        %v588 = vrcp.pop %v587
        %v589 = vmul.f32 %v584, %v588
        %v590 = vpack.c.bf16 %v589, %v589
        %591 = vrot.lane.b32.xlu0 %v554, 64
        %v592 = vpop.permute.xlu0 %591
        %v594 = vsel %vm557, %v590, 0
        %vm596 = vcmask 1043456
        %v598 = vsel %vm596, %v592, 0
        %600 = vmatpush.bf16.msra.mxu0 0
        %601 = vmatpush.bf16.msra.mxu0 0
        %602 = vmatpush.bf16.msra.mxu0 0
        %603 = vmatpush.bf16.msra.mxu0 0
        %604 = vmatpush.bf16.msra.mxu0 0
        %605 = vmatpush.bf16.msra.mxu0 0
        %606 = vmatpush.bf16.msra.mxu0 0
        %607 = vmatpush.bf16.msra.mxu0 %v598
        %608 = vmatmul.bf16.gmra.mxu0 %v594
        %v609 = vpop.f32.mrf.mxu0
        %v610 = vadd.f32 0.0, %v609
        %v611 = vpop.f32.mrf.mxu0
        %612 = vdwg.mxu0
        %v613 = vpack.c.bf16 %v610, %v610
        %vm614 = vcmask 60416
        %615 = vst.msk [vmem:[#allocation3] sm:$0xf] %vm614, %v613
        %v616 = vld [vmem:[%s549] sm:$0xf]
        %v617 = vld [vmem:[#allocation2] sm:$0xf]
        %v619 = vunpack.c.l.b16 %v616
        %v620 = vpack.c.b16 %v619, %v619
        %621 = vrot.lane.b32.xlu0 %v620, 120
        %v622 = vpop.permute.xlu0 %621
        %v624 = vunpack.c.l.b16 %v617
        %v625 = vpack.c.b16 %v624, %v624
        %626 = vrot.lane.b32.xlu0 %v625, 88
        %v627 = vpop.permute.xlu0 %626
        %v629 = vsel %vm557, %v622, 0
        %v632 = vsel %vm557, %v627, 0
        %634 = vmatpush.bf16.xpose.msra.mxu0 0
        %635 = vmatpush.bf16.xpose.msra.mxu0 0
        %636 = vmatpush.bf16.xpose.msra.mxu0 0
        %637 = vmatpush.bf16.xpose.msra.mxu0 0
        %638 = vmatpush.bf16.xpose.msra.mxu0 0
        %639 = vmatpush.bf16.xpose.msra.mxu0 0
        %640 = vmatpush.bf16.xpose.msra.mxu0 0
        %641 = vmatpush.bf16.xpose.msra.mxu0 %v632
        %642 = vmatmul.bf16.gmra.mxu0 %v629
        %v643 = vpop.f32.mrf.mxu0
        %v644 = vadd.f32 0.0, %v643
        %v645 = vpop.f32.mrf.mxu0
        %646 = vdwg.mxu0
        %v647 = vmul.f32 %v644, 0.35355338
        %v648 = vsel %vm545, %v647, -10000.0
        %v649 = vsel %vm557, %v648, -inf
        %650 = vmax.xlane.f32.xlu0 %v649
        %v651 = vpop.xlane.xlu0 %650
        %v652 = vsub.f32 %v648, %v651
        %v653 = vmul.f32 %v652, 1.442695
        %v654 = vpow.pop %v653
        %v655 = vsel %vm557, %v654, 0.0
        %656 = vadd.xlane.f32.xlu0 %v655
        %v657 = vpop.xlane.xlu0 %656
        %v658 = vrcp.pop %v657
        %v659 = vmul.f32 %v654, %v658
        %v660 = vpack.c.bf16 %v659, %v659
        %661 = vrot.lane.b32.xlu0 %v625, 56
        %v662 = vpop.permute.xlu0 %661
        %v664 = vsel %vm557, %v660, 0
        %v667 = vsel %vm596, %v662, 0
        %669 = vmatpush.bf16.msra.mxu0 0
        %670 = vmatpush.bf16.msra.mxu0 0
        %671 = vmatpush.bf16.msra.mxu0 0
        %672 = vmatpush.bf16.msra.mxu0 0
        %673 = vmatpush.bf16.msra.mxu0 0
        %674 = vmatpush.bf16.msra.mxu0 0
        %675 = vmatpush.bf16.msra.mxu0 0
        %676 = vmatpush.bf16.msra.mxu0 %v667
        %677 = vmatmul.bf16.gmra.mxu0 %v664
        %v678 = vpop.f32.mrf.mxu0
        %v679 = vadd.f32 0.0, %v678
        %v680 = vpop.f32.mrf.mxu0
        %681 = vdwg.mxu0
        %v682 = vpack.c.bf16 %v679, %v679
        %684 = vrot.lane.b32.xlu0 %v682, 8
        %v685 = vpop.permute.xlu0 %684
        %vm687 = vcmask 126016
        %688 = vst.msk [vmem:[#allocation3] sm:$0xf] %vm687, %v685
        %v689 = vld [vmem:[%s549] sm:$0xf]
        %v690 = vld [vmem:[#allocation2] sm:$0xf]
        %v692 = vunpack.c.l.b16 %v689
        %v693 = vpack.c.b16 %v692, %v692
        %694 = vrot.lane.b32.xlu0 %v693, 112
        %v695 = vpop.permute.xlu0 %694
        %v697 = vunpack.c.l.b16 %v690
        %v698 = vpack.c.b16 %v697, %v697
        %699 = vrot.lane.b32.xlu0 %v698, 80
        %v700 = vpop.permute.xlu0 %699
        %v702 = vsel %vm557, %v695, 0
        %v705 = vsel %vm557, %v700, 0
        %707 = vmatpush.bf16.xpose.msra.mxu0 0
        %708 = vmatpush.bf16.xpose.msra.mxu0 0
        %709 = vmatpush.bf16.xpose.msra.mxu0 0
        %710 = vmatpush.bf16.xpose.msra.mxu0 0
        %711 = vmatpush.bf16.xpose.msra.mxu0 0
        %712 = vmatpush.bf16.xpose.msra.mxu0 0
        %713 = vmatpush.bf16.xpose.msra.mxu0 0
        %714 = vmatpush.bf16.xpose.msra.mxu0 %v705
        %715 = vmatmul.bf16.gmra.mxu0 %v702
        %v716 = vpop.f32.mrf.mxu0
        %v717 = vadd.f32 0.0, %v716
        %v718 = vpop.f32.mrf.mxu0
        %719 = vdwg.mxu0
        %v720 = vmul.f32 %v717, 0.35355338
        %v721 = vsel %vm545, %v720, -10000.0
        %v722 = vsel %vm557, %v721, -inf
        %723 = vmax.xlane.f32.xlu0 %v722
        %v724 = vpop.xlane.xlu0 %723
        %v725 = vsub.f32 %v721, %v724
        %v726 = vmul.f32 %v725, 1.442695
        %v727 = vpow.pop %v726
        %v728 = vsel %vm557, %v727, 0.0
        %729 = vadd.xlane.f32.xlu0 %v728
        %v730 = vpop.xlane.xlu0 %729
        %v731 = vrcp.pop %v730
        %v732 = vmul.f32 %v727, %v731
        %v733 = vpack.c.bf16 %v732, %v732
        %734 = vrot.lane.b32.xlu0 %v698, 48
        %v735 = vpop.permute.xlu0 %734
        %v737 = vsel %vm557, %v733, 0
        %v740 = vsel %vm596, %v735, 0
        %742 = vmatpush.bf16.msra.mxu0 0
        %743 = vmatpush.bf16.msra.mxu0 0
        %744 = vmatpush.bf16.msra.mxu0 0
        %745 = vmatpush.bf16.msra.mxu0 0
        %746 = vmatpush.bf16.msra.mxu0 0
        %747 = vmatpush.bf16.msra.mxu0 0
        %748 = vmatpush.bf16.msra.mxu0 0
        %749 = vmatpush.bf16.msra.mxu0 %v740
        %750 = vmatmul.bf16.gmra.mxu0 %v737
        %v751 = vpop.f32.mrf.mxu0
        %v752 = vadd.f32 0.0, %v751
        %v753 = vpop.f32.mrf.mxu0
        %754 = vdwg.mxu0
        %v755 = vpack.c.bf16 %v752, %v752
        %757 = vrot.lane.b32.xlu0 %v755, 16
        %v758 = vpop.permute.xlu0 %757
        %vm760 = vcmask 191616
        %761 = vst.msk [vmem:[#allocation3] sm:$0xf] %vm760, %v758
        %v762 = vld [vmem:[%s549] sm:$0xf]
        %v763 = vld [vmem:[#allocation2] sm:$0xf]
        %v765 = vunpack.c.l.b16 %v762
        %v766 = vpack.c.b16 %v765, %v765
        %767 = vrot.lane.b32.xlu0 %v766, 104
        %v768 = vpop.permute.xlu0 %767
        %v770 = vunpack.c.l.b16 %v763
        %v771 = vpack.c.b16 %v770, %v770
        %772 = vrot.lane.b32.xlu0 %v771, 72
        %v773 = vpop.permute.xlu0 %772
        %v775 = vsel %vm557, %v768, 0
        %v778 = vsel %vm557, %v773, 0
        %780 = vmatpush.bf16.xpose.msra.mxu0 0
        %781 = vmatpush.bf16.xpose.msra.mxu0 0
        %782 = vmatpush.bf16.xpose.msra.mxu0 0
        %783 = vmatpush.bf16.xpose.msra.mxu0 0
        %784 = vmatpush.bf16.xpose.msra.mxu0 0
        %785 = vmatpush.bf16.xpose.msra.mxu0 0
        %786 = vmatpush.bf16.xpose.msra.mxu0 0
        %787 = vmatpush.bf16.xpose.msra.mxu0 %v778
        %788 = vmatmul.bf16.gmra.mxu0 %v775
        %v789 = vpop.f32.mrf.mxu0
        %v790 = vadd.f32 0.0, %v789
        %v791 = vpop.f32.mrf.mxu0
        %792 = vdwg.mxu0
        %v793 = vmul.f32 %v790, 0.35355338
        %v794 = vsel %vm545, %v793, -10000.0
        %v795 = vsel %vm557, %v794, -inf
        %796 = vmax.xlane.f32.xlu0 %v795
        %v797 = vpop.xlane.xlu0 %796
        %v798 = vsub.f32 %v794, %v797
        %v799 = vmul.f32 %v798, 1.442695
        %v800 = vpow.pop %v799
        %v801 = vsel %vm557, %v800, 0.0
        %802 = vadd.xlane.f32.xlu0 %v801
        %v803 = vpop.xlane.xlu0 %802
        %v804 = vrcp.pop %v803
        %v805 = vmul.f32 %v800, %v804
        %v806 = vpack.c.bf16 %v805, %v805
        %807 = vrot.lane.b32.xlu0 %v771, 40
        %v808 = vpop.permute.xlu0 %807
        %v810 = vsel %vm557, %v806, 0
        %v813 = vsel %vm596, %v808, 0
        %815 = vmatpush.bf16.msra.mxu0 0
        %816 = vmatpush.bf16.msra.mxu0 0
        %817 = vmatpush.bf16.msra.mxu0 0
        %818 = vmatpush.bf16.msra.mxu0 0
        %819 = vmatpush.bf16.msra.mxu0 0
        %820 = vmatpush.bf16.msra.mxu0 0
        %821 = vmatpush.bf16.msra.mxu0 0
        %822 = vmatpush.bf16.msra.mxu0 %v813
        %823 = vmatmul.bf16.gmra.mxu0 %v810
        %v824 = vpop.f32.mrf.mxu0
        %v825 = vadd.f32 0.0, %v824
        %v826 = vpop.f32.mrf.mxu0
        %827 = vdwg.mxu0
        %v828 = vpack.c.bf16 %v825, %v825
        %830 = vrot.lane.b32.xlu0 %v828, 24
        %v831 = vpop.permute.xlu0 %830
        %vm833 = vcmask 257216
        %834 = vst.msk [vmem:[#allocation3] sm:$0xf] %vm833, %v831
        %v835 = vld [vmem:[#allocation3] sm:$0xf]
        %v836 = vld [vmem:[%s5] sm:$0xf]
        %v837 = vld [vmem:[%s5 + $0x4] sm:$0xf]
        %v838 = vld [vmem:[%s5 + $0x8] sm:$0xf]
        %v839 = vld [vmem:[%s5 + $0xc] sm:$0xf]
        %v840 = vld [vmem:[%s6] sm:$0x1]
        %v842 = vperm.slane %v840, 0
        %v848 = vunpack.c.l.b16 %v836
        %v849 = vunpack.c.l.b16 %v837
        %v850 = vunpack.c.l.b16 %v838
        %v851 = vunpack.c.l.b16 %v839
        %v852 = vpack.c.b16 %v849, %v848
        %v853 = vpack.c.b16 %v851, %v850
        %vm856 = vcmask 261120
        %v858 = vsel %vm856, %v835, 0
        %860 = vmatpush.bf16.msra.mxu0 0
        %861 = vmatpush.bf16.msra.mxu0 0
        %862 = vmatpush.bf16.msra.mxu0 0
        %863 = vmatpush.bf16.msra.mxu0 0
        %864 = vmatpush.bf16.msra.mxu0 0
        %865 = vmatpush.bf16.msra.mxu0 0
        %866 = vmatpush.bf16.msra.mxu0 %v853
        %867 = vmatpush.bf16.msra.mxu0 %v852
        %868 = vmatmul.bf16.gmra.mxu0 %v858
        %v869 = vpop.f32.mrf.mxu0
        %v870 = vadd.f32 %v842, %v869
        %v871 = vpop.f32.mrf.mxu0
        %872 = vdwg.mxu0
        %v873 = vadd.f32 %v538, %v870
        %v874 = vld [vmem:[%s7] sm:$0x1]
        %v875 = vld [vmem:[%s8] sm:$0x1]
        %v876 = vsel %vm856, %v873, 0.0
        %877 = vadd.xlane.f32.xlu0 %v876
        %v878 = vpop.xlane.xlu0 %877
        %v879 = vrcp.pop 32.0
        %v880 = vmul.f32 32.0, %v879
        %v881 = vsub.f32 1.0, %v880
        %v882 = vmul.f32 %v879, %v881
        %v883 = vadd.f32 %v879, %v882
        %vm884 = vweird.f32 %v879
        %v885 = vsel %vm884, %v879, %v883
        %v886 = vmul.f32 %v878, %v885
        %v887 = vsub.f32 %v873, %v886
        %v888 = vmul.f32 %v887, %v887
        %v889 = vsel %vm856, %v888, 0.0
        %890 = vadd.xlane.f32.xlu0 %v889
        %v891 = vpop.xlane.xlu0 %890
        %v892 = vmul.f32 %v891, %v885
        %v893 = vadd.f32 %v892, 1e-05
        %v894 = vrsqrt.pop %v893
        %v895 = vmul.f32 %v894, %v893
        %v896 = vmul.f32 %v895, %v894
        %v897 = vmul.f32 0.5, %v896
        %v898 = vsub.f32 1.5, %v897
        %v899 = vmul.f32 %v894, %v898
        %vm900 = vweird.f32 %v893
        %vm901 = vweird.f32 %v894
        %vm902 = vmor %vm900, %vm901
        %v903 = vsel %vm902, %v894, %v899
        %v904 = vmul.f32 %v887, %v903
        %v906 = vperm.slane %v874, 0
        %v908 = vmul.f32 %v904, %v906
        %v910 = vperm.slane %v875, 0
        %v912 = vadd.f32 %v908, %v910
        %v913 = vpack.c.bf16 %v912, %v912
        %v914 = vld [vmem:[%s9] sm:$0xf]
        %v915 = vld [vmem:[%s9 + $0x4] sm:$0xf]
        %v916 = vld [vmem:[%s9 + $0x8] sm:$0xf]
        %v917 = vld [vmem:[%s9 + $0xc] sm:$0xf]
        %v918 = vld [vmem:[%s10] sm:$0x1]
        %v920 = vperm.slane %v918, 0
        %v926 = vunpack.c.l.b16 %v914
        %v927 = vunpack.c.l.b16 %v915
        %v928 = vunpack.c.l.b16 %v916
        %v929 = vunpack.c.l.b16 %v917
        %v930 = vpack.c.b16 %v927, %v926
        %v931 = vpack.c.b16 %v929, %v928
        %v935 = vsel %vm856, %v913, 0
        %937 = vmatpush.bf16.msra.mxu0 0
        %938 = vmatpush.bf16.msra.mxu0 0
        %939 = vmatpush.bf16.msra.mxu0 0
        %940 = vmatpush.bf16.msra.mxu0 0
        %941 = vmatpush.bf16.msra.mxu0 0
        %942 = vmatpush.bf16.msra.mxu0 0
        %943 = vmatpush.bf16.msra.mxu0 %v931
        %944 = vmatpush.bf16.msra.mxu0 %v930
        %945 = vmatmul.bf16.gmra.mxu0 %v935
        %v946 = vpop.f32.mrf.mxu0
        %v947 = vadd.f32 %v920, %v946
        %v948 = vpop.f32.mrf.mxu0
        %949 = vdwg.mxu0
        %v950 = vmul.f32 %v947, 0.5
        %v951 = vmul.f32 %v947, %v947
        %v952 = vmul.f32 %v947, %v951
        %v953 = vmul.f32 %v952, 0.044715
        %v954 = vadd.f32 %v947, %v953
        %v955 = vmul.f32 %v954, 0.7978846
        %v956 = vtanh.pop %v955
        %v957 = vadd.f32 %v956, 1.0
        %v958 = vmul.f32 %v950, %v957
        %v959 = vpack.c.bf16 %v958, %v958
        %v960 = vld [vmem:[%s11] sm:$0xf]
        %v961 = vld [vmem:[%s11 + $0x4] sm:$0xf]
        %v962 = vld [vmem:[%s11 + $0x8] sm:$0xf]
        %v963 = vld [vmem:[%s11 + $0xc] sm:$0xf]
        %v964 = vld [vmem:[%s11 + $0x10] sm:$0xf]
        %v965 = vld [vmem:[%s11 + $0x14] sm:$0xf]
        %v966 = vld [vmem:[%s11 + $0x18] sm:$0xf]
        %v967 = vld [vmem:[%s11 + $0x1c] sm:$0xf]
        %v968 = vld [vmem:[%s11 + $0x20] sm:$0xf]
        %v969 = vld [vmem:[%s11 + $0x24] sm:$0xf]
        %v970 = vld [vmem:[%s11 + $0x28] sm:$0xf]
        %v971 = vld [vmem:[%s11 + $0x2c] sm:$0xf]
        %v972 = vld [vmem:[%s11 + $0x30] sm:$0xf]
        %v973 = vld [vmem:[%s11 + $0x34] sm:$0xf]
        %v974 = vld [vmem:[%s11 + $0x38] sm:$0xf]
        %v975 = vld [vmem:[%s11 + $0x3c] sm:$0xf]
        %v992 = vunpack.c.l.b16 %v960
        %v993 = vunpack.c.l.b16 %v961
        %v994 = vunpack.c.l.b16 %v962
        %v995 = vunpack.c.l.b16 %v963
        %v996 = vunpack.c.l.b16 %v964
        %v997 = vunpack.c.l.b16 %v965
        %v998 = vunpack.c.l.b16 %v966
        %v999 = vunpack.c.l.b16 %v967
        %v1000 = vunpack.c.l.b16 %v968
        %v1001 = vunpack.c.l.b16 %v969
        %v1002 = vunpack.c.l.b16 %v970
        %v1003 = vunpack.c.l.b16 %v971
        %v1004 = vunpack.c.l.b16 %v972
        %v1005 = vunpack.c.l.b16 %v973
        %v1006 = vunpack.c.l.b16 %v974
        %v1007 = vunpack.c.l.b16 %v975
        %v1008 = vpack.c.b16 %v993, %v992
        %v1009 = vpack.c.b16 %v995, %v994
        %v1010 = vpack.c.b16 %v997, %v996
        %v1011 = vpack.c.b16 %v999, %v998
        %v1012 = vpack.c.b16 %v1001, %v1000
        %v1013 = vpack.c.b16 %v1003, %v1002
        %v1014 = vpack.c.b16 %v1005, %v1004
        %v1015 = vpack.c.b16 %v1007, %v1006
        %1024 = vmatpush.bf16.msra.mxu0 %v1015
        %1025 = vmatpush.bf16.msra.mxu0 %v1014
        %1026 = vmatpush.bf16.msra.mxu0 %v1013
        %1027 = vmatpush.bf16.msra.mxu0 %v1012
        %1028 = vmatpush.bf16.msra.mxu0 %v1011
        %1029 = vmatpush.bf16.msra.mxu0 %v1010
        %1030 = vmatpush.bf16.msra.mxu0 %v1009
        %1031 = vmatpush.bf16.msra.mxu0 %v1008
        %1032 = vmatmul.bf16.gmra.mxu0 %v959
        %v1033 = vpop.f32.mrf.mxu0
        %v1034 = vadd.f32 0.0, %v1033
        %v1035 = vpop.f32.mrf.mxu0
        %1036 = vdwg.mxu0
        %v1037 = vadd.f32 %v873, %v1034
        %v1038 = vld [vmem:[%s12] sm:$0x1]
        %v1040 = vperm.slane %v1038, 0
        %v1042 = vadd.f32 %v1037, %v1040
        %1043 = vst.msk [vmem:[%s445] sm:$0xff] %vm856, %v1042
        %s1044 = sand.u32 %s327, 1
        %s1045 = scalar_lea.sflag [#allocation5], %s1044
        %s1046 = sand.u32 %s327, 1
        %s1047 = smul.addr %s1046, 8
        %s1048 = scalar_lea.vmem [#allocation4], %s1047
        // Predicated region
        $region77: #{tpu_custom_call.1} parent=71 // pred_check
          %p1049 = pneg %p337
        $region78: #{tpu_custom_call.1} parent=71 // pred_check_branch
          %1051 = sbr.rel (%p1049) target = $region80
        $region79: #{tpu_custom_call.1} parent=71 // pred_region
          %1053 = vsyncadd %s1045, 0
          %s1054 = sadd.s32 %s32, %s31
          %s1055 = smul.addr %s1054, 8
          %s1056 = scalar_lea.hbm %s13, %s1055
          %s1058 = sshll.u32 %s1048, 4
          %s1059 = int_to_ptr.vmem [resolvable:$true] %s1058
          %s1060 = sshll.u32 %s1056, 4
          %s1061 = int_to_ptr.hbm [resolvable:$true] %s1060
          %1063 = dma.vmem_to_hbm [thread:$0]  %s1059, 128, %s1061, %s1045
        $region80: #{tpu_custom_call.1} parent=71 // pred_fallthru
          _
      $region72: #{tpu_custom_call.1} parent=5 // pred_fallthru
        _
      %p1064 = scmp.le.s32.totalorder 2, %s22
      // Predicated region
      $region81: #{tpu_custom_call.1} parent=5 // pred_check
        %p1065 = pneg %p1064
      $region82: #{tpu_custom_call.1} parent=5 // pred_check_branch
        %1067 = sbr.rel (%p1065) target = $region84
      $region83: #{tpu_custom_call.1} parent=5 // pred_region
        %s1068 = ssub.s32 %s22, 2
        // Predicated region
        $region85: #{tpu_custom_call.1} parent=83 // pred_check
          %p1069 = pneg %p343
        $region86: #{tpu_custom_call.1} parent=83 // pred_check_branch
          %1071 = sbr.rel (%p1069) target = $region88
        $region87: #{tpu_custom_call.1} parent=83 // pred_region
          %s1072 = sand.u32 %s328, 1
          %s1073 = scalar_lea.sflag [#allocation5], %s1072
          %s1074 = sand.u32 %s328, 1
          %s1075 = smul.addr %s1074, 8
          %s1076 = scalar_lea.vmem [#allocation4], %s1075
          %1078 = dma.done %s1073, 128
        $region88: #{tpu_custom_call.1} parent=83 // pred_fallthru
          _
      $region84: #{tpu_custom_call.1} parent=5 // pred_fallthru
        _
    $region6: #{tpu_custom_call.1} parent=1 // loop_footer
      %s26 = sadd.s32 1, %s22
    $region7: #{tpu_custom_call.1} parent=1 // loop_footer_branch
      %21 = sbr.rel target = $region3
    $region8: #{tpu_custom_call.1} parent=1 // loop_exit
      _
    %1079 = vsyncpa [#allocation5], 1
    %s1080 = scalar_lea.sflag [#allocation5], 1
    %1081 = vsyncpa %s1080, 1

// kernel: tpu_custom_call.1
$region0: #{tpu_custom_call.1}
  #allocation0 [shape = 'u32[]', space=smem, size = 0x4, offset = 0x4, fixed_abs, tag = 'smem constant byte address 0x4 - core index']
  #allocation1 [shape = 'u32[72,128]{1,0:T(1,128)}', space=vmem, size = 0x9000, scoped, tag = 'internal scratch']
  #allocation2 [shape = 'bf16[8,96]{1,0:T(8,128)(2,1)}', space=vmem, size = 0x800, scoped, tag = 'scratch operand']
  #allocation3 [shape = 'bf16[8,32]{1,0:T(8,128)(2,1)}', space=vmem, size = 0x800, scoped, tag = 'scratch operand']
  %s0 = inlined_call_operand.vmem [shape: f32[2,8,32], index: 0, kind: input, shape index: {}]
  %s1 = inlined_call_operand.vmem [shape: f32[1,32], index: 1, kind: input, shape index: {}]
  %s2 = inlined_call_operand.vmem [shape: f32[1,32], index: 2, kind: input, shape index: {}]
  %s3 = inlined_call_operand.vmem [shape: bf16[32,96], index: 3, kind: input, shape index: {}]
  %s4 = inlined_call_operand.vmem [shape: f32[1,96], index: 4, kind: input, shape index: {}]
  %s5 = inlined_call_operand.vmem [shape: bf16[32,32], index: 5, kind: input, shape index: {}]
  %s6 = inlined_call_operand.vmem [shape: f32[1,32], index: 6, kind: input, shape index: {}]
  %s7 = inlined_call_operand.vmem [shape: f32[1,32], index: 7, kind: input, shape index: {}]
  %s8 = inlined_call_operand.vmem [shape: f32[1,32], index: 8, kind: input, shape index: {}]
  %s9 = inlined_call_operand.vmem [shape: bf16[32,128], index: 9, kind: input, shape index: {}]
  %s10 = inlined_call_operand.vmem [shape: f32[1,128], index: 10, kind: input, shape index: {}]
  %s11 = inlined_call_operand.vmem [shape: bf16[128,32], index: 11, kind: input, shape index: {}]
  %s12 = inlined_call_operand.vmem [shape: f32[1,32], index: 12, kind: input, shape index: {}]
  %s13 = inlined_call_operand.hbm [shape: f32[2,8,32], index: 13, kind: output, shape index: {}]
  %s14 = sld [smem:[#allocation0]]
  $region89: #{tpu_custom_call.1} parent=0
    _
  %s16 = ssub.s32 1, %s14
  %s17 = scalar_select 0, %s16, %s14
  $region1: #{tpu_custom_call.1} parent=0
    #allocation4 [shape = 'u8[8192]{0}', space=vmem, size = 0x2000, scoped, tag = 'output window, operand 0']
    #allocation5 [shape = 's32[2]{0}', space=sflag, size = 0x8, scoped, tag = 'scoped memory for tpu_custom_call.1']
    %18 = vsyncpa [#allocation5], 0
    %s19 = scalar_lea.sflag [#allocation5], 1
    %20 = vsyncpa %s19, 0
    loop: start=0, step=1, limit=4
    $region2: #{tpu_custom_call.1} parent=1 // loop_pre_header
      _
    $region3: #{tpu_custom_call.1} parent=1 // loop_header
      %s22 = sphi 0, %s26
      %p23 = scmp.ge.s32.totalorder %s22, 4
      %s29 = sphi 0, %s41
      %s30 = sphi 0, %s37
      %s31 = sphi 0, %s29
      %s32 = sphi 0, %s30
      %s33 = sphi 0, %s31
      %s34 = sphi 0, %s32
      %s44 = sphi 0, %s46
      %s47 = sphi 0, %s44
      %s48 = sphi 0, %s47
      %s64 = sphi 0, %s48
      %s68 = sphi 0, %s68
      %s70 = sphi 0, %s68
      %s71 = sphi 0, %s70
      %s85 = sphi 0, %s71
      %s89 = sphi 0, %s89
      %s91 = sphi 0, %s89
      %s92 = sphi 0, %s91
      %s106 = sphi 0, %s92
      %s110 = sphi 0, %s110
      %s112 = sphi 0, %s110
      %s113 = sphi 0, %s112
      %s127 = sphi 0, %s113
      %s131 = sphi 0, %s131
      %s133 = sphi 0, %s131
      %s134 = sphi 0, %s133
      %s148 = sphi 0, %s134
      %s152 = sphi 0, %s152
      %s154 = sphi 0, %s152
      %s155 = sphi 0, %s154
      %s169 = sphi 0, %s155
      %s173 = sphi 0, %s173
      %s175 = sphi 0, %s173
      %s176 = sphi 0, %s175
      %s190 = sphi 0, %s176
      %s194 = sphi 0, %s194
      %s196 = sphi 0, %s194
      %s197 = sphi 0, %s196
      %s211 = sphi 0, %s197
      %s215 = sphi 0, %s215
      %s217 = sphi 0, %s215
      %s218 = sphi 0, %s217
      %s232 = sphi 0, %s218
      %s236 = sphi 0, %s236
      %s238 = sphi 0, %s236
      %s239 = sphi 0, %s238
      %s253 = sphi 0, %s239
      %s257 = sphi 0, %s257
      %s259 = sphi 0, %s257
      %s260 = sphi 0, %s259
      %s274 = sphi 0, %s260
      %s278 = sphi 0, %s278
      %s280 = sphi 0, %s278
      %s281 = sphi 0, %s280
      %s295 = sphi 0, %s281
      %s299 = sphi 0, %s299
      %s301 = sphi 0, %s299
      %s302 = sphi 0, %s301
      %s316 = sphi 0, %s302
      %s324 = sphi 0, %s326
      %s327 = sphi 0, %s324
      %s328 = sphi 0, %s327
      %s344 = sphi 0, %s328
    $region4: #{tpu_custom_call.1} parent=1 // loop_header_branch
      %25 = sbr.rel (%p23) target = $region8
    $region5: #{tpu_custom_call.1} parent=1 // loop_body
      %s27 = ssub.s32 %s22, 1
      %s28 = ssub.s32 %s22, 2
      %s35 = sadd.s32 1, %s30
      %p36 = scmp.ge.s32.totalorder %s35, 1
      %s37 = scalar_select %p36, 0, %s35
      %s38 = sadd.s32 1, %s29
      %s39 = scalar_select %p36, %s38, %s29
      %p40 = scmp.ge.s32.totalorder %s39, 2
      %s41 = scalar_select %p40, 0, %s39
      %s42 = ssub.s32 %s29, %s41
      %p43 = scmp.eq.s32.totalorder %s42, 0
      %s45 = sadd.s32 %s44, 1
      %s46 = scalar_select %p43, %s44, %s45
      %p49 = pneg %p43
      %p50 = scmp.eq.s32.totalorder %s22, 1
      %p51 = por %p49, %p50
      %p52 = scmp.ne.s32.totalorder %s44, %s47
      %p53 = scmp.eq.s32.totalorder %s22, 0
      %p54 = por %p52, %p53
      %p55 = scmp.ne.s32.totalorder %s44, %s47
      %p56 = scmp.eq.s32.totalorder %s27, 1
      %p57 = por %p55, %p56
      %p58 = scmp.ne.s32.totalorder %s47, %s48
      %p59 = scmp.eq.s32.totalorder %s27, 0
      %p60 = por %p58, %p59
      %p61 = scmp.ne.s32.totalorder %s47, %s48
      %p62 = scmp.eq.s32.totalorder %s28, 1
      %p63 = por %p61, %p62
      %p65 = scmp.ne.s32.totalorder %s48, %s64
      %p66 = scmp.eq.s32.totalorder %s28, 0
      %p67 = por %p65, %p66
      %s69 = sadd.s32 %s68, 1
      %p72 = scmp.eq.s32.totalorder %s22, 1
      %p73 = scmp.ne.s32.totalorder %s68, %s70
      %p74 = scmp.eq.s32.totalorder %s22, 0
      %p75 = por %p73, %p74
      %p76 = scmp.ne.s32.totalorder %s68, %s70
      %p77 = scmp.eq.s32.totalorder %s27, 1
      %p78 = por %p76, %p77
      %p79 = scmp.ne.s32.totalorder %s70, %s71
      %p80 = scmp.eq.s32.totalorder %s27, 0
      %p81 = por %p79, %p80
      %p82 = scmp.ne.s32.totalorder %s70, %s71
      %p83 = scmp.eq.s32.totalorder %s28, 1
      %p84 = por %p82, %p83
      %p86 = scmp.ne.s32.totalorder %s71, %s85
      %p87 = scmp.eq.s32.totalorder %s28, 0
      %p88 = por %p86, %p87
      %s90 = sadd.s32 %s89, 1
      %p93 = scmp.eq.s32.totalorder %s22, 1
      %p94 = scmp.ne.s32.totalorder %s89, %s91
      %p95 = scmp.eq.s32.totalorder %s22, 0
      %p96 = por %p94, %p95
      %p97 = scmp.ne.s32.totalorder %s89, %s91
      %p98 = scmp.eq.s32.totalorder %s27, 1
      %p99 = por %p97, %p98
      %p100 = scmp.ne.s32.totalorder %s91, %s92
      %p101 = scmp.eq.s32.totalorder %s27, 0
      %p102 = por %p100, %p101
      %p103 = scmp.ne.s32.totalorder %s91, %s92
      %p104 = scmp.eq.s32.totalorder %s28, 1
      %p105 = por %p103, %p104
      %p107 = scmp.ne.s32.totalorder %s92, %s106
      %p108 = scmp.eq.s32.totalorder %s28, 0
      %p109 = por %p107, %p108
      %s111 = sadd.s32 %s110, 1
      %p114 = scmp.eq.s32.totalorder %s22, 1
      %p115 = scmp.ne.s32.totalorder %s110, %s112
      %p116 = scmp.eq.s32.totalorder %s22, 0
      %p117 = por %p115, %p116
      %p118 = scmp.ne.s32.totalorder %s110, %s112
      %p119 = scmp.eq.s32.totalorder %s27, 1
      %p120 = por %p118, %p119
      %p121 = scmp.ne.s32.totalorder %s112, %s113
      %p122 = scmp.eq.s32.totalorder %s27, 0
      %p123 = por %p121, %p122
      %p124 = scmp.ne.s32.totalorder %s112, %s113
      %p125 = scmp.eq.s32.totalorder %s28, 1
      %p126 = por %p124, %p125
      %p128 = scmp.ne.s32.totalorder %s113, %s127
      %p129 = scmp.eq.s32.totalorder %s28, 0
      %p130 = por %p128, %p129
      %s132 = sadd.s32 %s131, 1
      %p135 = scmp.eq.s32.totalorder %s22, 1
      %p136 = scmp.ne.s32.totalorder %s131, %s133
      %p137 = scmp.eq.s32.totalorder %s22, 0
      %p138 = por %p136, %p137
      %p139 = scmp.ne.s32.totalorder %s131, %s133
      %p140 = scmp.eq.s32.totalorder %s27, 1
      %p141 = por %p139, %p140
      %p142 = scmp.ne.s32.totalorder %s133, %s134
      %p143 = scmp.eq.s32.totalorder %s27, 0
      %p144 = por %p142, %p143
      %p145 = scmp.ne.s32.totalorder %s133, %s134
      %p146 = scmp.eq.s32.totalorder %s28, 1
      %p147 = por %p145, %p146
      %p149 = scmp.ne.s32.totalorder %s134, %s148
      %p150 = scmp.eq.s32.totalorder %s28, 0
      %p151 = por %p149, %p150
      %s153 = sadd.s32 %s152, 1
      %p156 = scmp.eq.s32.totalorder %s22, 1
      %p157 = scmp.ne.s32.totalorder %s152, %s154
      %p158 = scmp.eq.s32.totalorder %s22, 0
      %p159 = por %p157, %p158
      %p160 = scmp.ne.s32.totalorder %s152, %s154
      %p161 = scmp.eq.s32.totalorder %s27, 1
      %p162 = por %p160, %p161
      %p163 = scmp.ne.s32.totalorder %s154, %s155
      %p164 = scmp.eq.s32.totalorder %s27, 0
      %p165 = por %p163, %p164
      %p166 = scmp.ne.s32.totalorder %s154, %s155
      %p167 = scmp.eq.s32.totalorder %s28, 1
      %p168 = por %p166, %p167
      %p170 = scmp.ne.s32.totalorder %s155, %s169
      %p171 = scmp.eq.s32.totalorder %s28, 0
      %p172 = por %p170, %p171
      %s174 = sadd.s32 %s173, 1
      %p177 = scmp.eq.s32.totalorder %s22, 1
      %p178 = scmp.ne.s32.totalorder %s173, %s175
      %p179 = scmp.eq.s32.totalorder %s22, 0
      %p180 = por %p178, %p179
      %p181 = scmp.ne.s32.totalorder %s173, %s175
      %p182 = scmp.eq.s32.totalorder %s27, 1
      %p183 = por %p181, %p182
      %p184 = scmp.ne.s32.totalorder %s175, %s176
      %p185 = scmp.eq.s32.totalorder %s27, 0
      %p186 = por %p184, %p185
      %p187 = scmp.ne.s32.totalorder %s175, %s176
      %p188 = scmp.eq.s32.totalorder %s28, 1
      %p189 = por %p187, %p188
      %p191 = scmp.ne.s32.totalorder %s176, %s190
      %p192 = scmp.eq.s32.totalorder %s28, 0
      %p193 = por %p191, %p192
      %s195 = sadd.s32 %s194, 1
      %p198 = scmp.eq.s32.totalorder %s22, 1
      %p199 = scmp.ne.s32.totalorder %s194, %s196
      %p200 = scmp.eq.s32.totalorder %s22, 0
      %p201 = por %p199, %p200
      %p202 = scmp.ne.s32.totalorder %s194, %s196
      %p203 = scmp.eq.s32.totalorder %s27, 1
      %p204 = por %p202, %p203
      %p205 = scmp.ne.s32.totalorder %s196, %s197
      %p206 = scmp.eq.s32.totalorder %s27, 0
      %p207 = por %p205, %p206
      %p208 = scmp.ne.s32.totalorder %s196, %s197
      %p209 = scmp.eq.s32.totalorder %s28, 1
      %p210 = por %p208, %p209
      %p212 = scmp.ne.s32.totalorder %s197, %s211
      %p213 = scmp.eq.s32.totalorder %s28, 0
      %p214 = por %p212, %p213
      %s216 = sadd.s32 %s215, 1
      %p219 = scmp.eq.s32.totalorder %s22, 1
      %p220 = scmp.ne.s32.totalorder %s215, %s217
      %p221 = scmp.eq.s32.totalorder %s22, 0
      %p222 = por %p220, %p221
      %p223 = scmp.ne.s32.totalorder %s215, %s217
      %p224 = scmp.eq.s32.totalorder %s27, 1
      %p225 = por %p223, %p224
      %p226 = scmp.ne.s32.totalorder %s217, %s218
      %p227 = scmp.eq.s32.totalorder %s27, 0
      %p228 = por %p226, %p227
      %p229 = scmp.ne.s32.totalorder %s217, %s218
      %p230 = scmp.eq.s32.totalorder %s28, 1
      %p231 = por %p229, %p230
      %p233 = scmp.ne.s32.totalorder %s218, %s232
      %p234 = scmp.eq.s32.totalorder %s28, 0
      %p235 = por %p233, %p234
      %s237 = sadd.s32 %s236, 1
      %p240 = scmp.eq.s32.totalorder %s22, 1
      %p241 = scmp.ne.s32.totalorder %s236, %s238
      %p242 = scmp.eq.s32.totalorder %s22, 0
      %p243 = por %p241, %p242
      %p244 = scmp.ne.s32.totalorder %s236, %s238
      %p245 = scmp.eq.s32.totalorder %s27, 1
      %p246 = por %p244, %p245
      %p247 = scmp.ne.s32.totalorder %s238, %s239
      %p248 = scmp.eq.s32.totalorder %s27, 0
      %p249 = por %p247, %p248
      %p250 = scmp.ne.s32.totalorder %s238, %s239
      %p251 = scmp.eq.s32.totalorder %s28, 1
      %p252 = por %p250, %p251
      %p254 = scmp.ne.s32.totalorder %s239, %s253
      %p255 = scmp.eq.s32.totalorder %s28, 0
      %p256 = por %p254, %p255
      %s258 = sadd.s32 %s257, 1
      %p261 = scmp.eq.s32.totalorder %s22, 1
      %p262 = scmp.ne.s32.totalorder %s257, %s259
      %p263 = scmp.eq.s32.totalorder %s22, 0
      %p264 = por %p262, %p263
      %p265 = scmp.ne.s32.totalorder %s257, %s259
      %p266 = scmp.eq.s32.totalorder %s27, 1
      %p267 = por %p265, %p266
      %p268 = scmp.ne.s32.totalorder %s259, %s260
      %p269 = scmp.eq.s32.totalorder %s27, 0
      %p270 = por %p268, %p269
      %p271 = scmp.ne.s32.totalorder %s259, %s260
      %p272 = scmp.eq.s32.totalorder %s28, 1
      %p273 = por %p271, %p272
      %p275 = scmp.ne.s32.totalorder %s260, %s274
      %p276 = scmp.eq.s32.totalorder %s28, 0
      %p277 = por %p275, %p276
      %s279 = sadd.s32 %s278, 1
      %p282 = scmp.eq.s32.totalorder %s22, 1
      %p283 = scmp.ne.s32.totalorder %s278, %s280
      %p284 = scmp.eq.s32.totalorder %s22, 0
      %p285 = por %p283, %p284
      %p286 = scmp.ne.s32.totalorder %s278, %s280
      %p287 = scmp.eq.s32.totalorder %s27, 1
      %p288 = por %p286, %p287
      %p289 = scmp.ne.s32.totalorder %s280, %s281
      %p290 = scmp.eq.s32.totalorder %s27, 0
      %p291 = por %p289, %p290
      %p292 = scmp.ne.s32.totalorder %s280, %s281
      %p293 = scmp.eq.s32.totalorder %s28, 1
      %p294 = por %p292, %p293
      %p296 = scmp.ne.s32.totalorder %s281, %s295
      %p297 = scmp.eq.s32.totalorder %s28, 0
      %p298 = por %p296, %p297
      %s300 = sadd.s32 %s299, 1
      %p303 = scmp.eq.s32.totalorder %s22, 1
      %p304 = scmp.ne.s32.totalorder %s299, %s301
      %p305 = scmp.eq.s32.totalorder %s22, 0
      %p306 = por %p304, %p305
      %p307 = scmp.ne.s32.totalorder %s299, %s301
      %p308 = scmp.eq.s32.totalorder %s27, 1
      %p309 = por %p307, %p308
      %p310 = scmp.ne.s32.totalorder %s301, %s302
      %p311 = scmp.eq.s32.totalorder %s27, 0
      %p312 = por %p310, %p311
      %p313 = scmp.ne.s32.totalorder %s301, %s302
      %p314 = scmp.eq.s32.totalorder %s28, 1
      %p315 = por %p313, %p314
      %p317 = scmp.ne.s32.totalorder %s302, %s316
      %p318 = scmp.eq.s32.totalorder %s28, 0
      %p319 = por %p317, %p318
      %s320 = ssub.s32 %s29, %s41
      %s321 = ssub.s32 %s30, %s37
      %s322 = sor.u32 %s320, %s321
      %p323 = scmp.eq.s32.totalorder %s322, 0
      %s325 = sadd.s32 %s324, 1
      %s326 = scalar_select %p323, %s324, %s325
      %p329 = pneg %p323
      %p330 = scmp.eq.s32.totalorder %s22, 1
      %p331 = por %p329, %p330
      %p332 = scmp.ne.s32.totalorder %s324, %s327
      %p333 = scmp.eq.s32.totalorder %s22, 0
      %p334 = por %p332, %p333
      %p335 = scmp.ne.s32.totalorder %s324, %s327
      %p336 = scmp.eq.s32.totalorder %s27, 1
      %p337 = por %p335, %p336
      %p338 = scmp.ne.s32.totalorder %s327, %s328
      %p339 = scmp.eq.s32.totalorder %s27, 0
      %p340 = por %p338, %p339
      %p341 = scmp.ne.s32.totalorder %s327, %s328
      %p342 = scmp.eq.s32.totalorder %s28, 1
      %p343 = por %p341, %p342
      %p345 = scmp.ne.s32.totalorder %s328, %s344
      %p346 = scmp.eq.s32.totalorder %s28, 0
      %p347 = por %p345, %p346
      %p348 = scmp.le.s32.totalorder 1, %s22
      %p349 = scmp.lt.s32.totalorder %s22, 3
      %p350 = pnand %p348, %p349
      %p351 = pneg %p350
      // Predicated region
      $region9: #{tpu_custom_call.1} parent=5 // pred_check
        _
      $region10: #{tpu_custom_call.1} parent=5 // pred_check_branch
        %353 = sbr.rel (%p350) target = $region12
      $region11: #{tpu_custom_call.1} parent=5 // pred_region
        %s354 = ssub.s32 %s22, 1
        // Predicated region
        $region13: #{tpu_custom_call.1} parent=11 // pred_check
          %p355 = pneg %p81
        $region14: #{tpu_custom_call.1} parent=11 // pred_check_branch
          %357 = sbr.rel (%p355) target = $region16
        $region15: #{tpu_custom_call.1} parent=11 // pred_region
          _
        $region16: #{tpu_custom_call.1} parent=11 // pred_fallthru
          _
        // Predicated region
        $region17: #{tpu_custom_call.1} parent=11 // pred_check
          %p358 = pneg %p102
        $region18: #{tpu_custom_call.1} parent=11 // pred_check_branch
          %360 = sbr.rel (%p358) target = $region20
        $region19: #{tpu_custom_call.1} parent=11 // pred_region
          _
        $region20: #{tpu_custom_call.1} parent=11 // pred_fallthru
          _
        // Predicated region
        $region21: #{tpu_custom_call.1} parent=11 // pred_check
          %p361 = pneg %p123
        $region22: #{tpu_custom_call.1} parent=11 // pred_check_branch
          %363 = sbr.rel (%p361) target = $region24
        $region23: #{tpu_custom_call.1} parent=11 // pred_region
          _
        $region24: #{tpu_custom_call.1} parent=11 // pred_fallthru
          _
        // Predicated region
        $region25: #{tpu_custom_call.1} parent=11 // pred_check
          %p364 = pneg %p144
        $region26: #{tpu_custom_call.1} parent=11 // pred_check_branch
          %366 = sbr.rel (%p364) target = $region28
        $region27: #{tpu_custom_call.1} parent=11 // pred_region
          _
        $region28: #{tpu_custom_call.1} parent=11 // pred_fallthru
          _
        // Predicated region
        $region29: #{tpu_custom_call.1} parent=11 // pred_check
          %p367 = pneg %p165
        $region30: #{tpu_custom_call.1} parent=11 // pred_check_branch
          %369 = sbr.rel (%p367) target = $region32
        $region31: #{tpu_custom_call.1} parent=11 // pred_region
          _
        $region32: #{tpu_custom_call.1} parent=11 // pred_fallthru
          _
        // Predicated region
        $region33: #{tpu_custom_call.1} parent=11 // pred_check
          %p370 = pneg %p186
        $region34: #{tpu_custom_call.1} parent=11 // pred_check_branch
          %372 = sbr.rel (%p370) target = $region36
        $region35: #{tpu_custom_call.1} parent=11 // pred_region
          _
        $region36: #{tpu_custom_call.1} parent=11 // pred_fallthru
          _
        // Predicated region
        $region37: #{tpu_custom_call.1} parent=11 // pred_check
          %p373 = pneg %p207
        $region38: #{tpu_custom_call.1} parent=11 // pred_check_branch
          %375 = sbr.rel (%p373) target = $region40
        $region39: #{tpu_custom_call.1} parent=11 // pred_region
          _
        $region40: #{tpu_custom_call.1} parent=11 // pred_fallthru
          _
        // Predicated region
        $region41: #{tpu_custom_call.1} parent=11 // pred_check
          %p376 = pneg %p228
        $region42: #{tpu_custom_call.1} parent=11 // pred_check_branch
          %378 = sbr.rel (%p376) target = $region44
        $region43: #{tpu_custom_call.1} parent=11 // pred_region
          _
        $region44: #{tpu_custom_call.1} parent=11 // pred_fallthru
          _
        // Predicated region
        $region45: #{tpu_custom_call.1} parent=11 // pred_check
          %p379 = pneg %p249
        $region46: #{tpu_custom_call.1} parent=11 // pred_check_branch
          %381 = sbr.rel (%p379) target = $region48
        $region47: #{tpu_custom_call.1} parent=11 // pred_region
          _
        $region48: #{tpu_custom_call.1} parent=11 // pred_fallthru
          _
        // Predicated region
        $region49: #{tpu_custom_call.1} parent=11 // pred_check
          %p382 = pneg %p270
        $region50: #{tpu_custom_call.1} parent=11 // pred_check_branch
          %384 = sbr.rel (%p382) target = $region52
        $region51: #{tpu_custom_call.1} parent=11 // pred_region
          _
        $region52: #{tpu_custom_call.1} parent=11 // pred_fallthru
          _
        // Predicated region
        $region53: #{tpu_custom_call.1} parent=11 // pred_check
          %p385 = pneg %p291
        $region54: #{tpu_custom_call.1} parent=11 // pred_check_branch
          %387 = sbr.rel (%p385) target = $region56
        $region55: #{tpu_custom_call.1} parent=11 // pred_region
          _
        $region56: #{tpu_custom_call.1} parent=11 // pred_fallthru
          _
        // Predicated region
        $region57: #{tpu_custom_call.1} parent=11 // pred_check
          %p388 = pneg %p312
        $region58: #{tpu_custom_call.1} parent=11 // pred_check_branch
          %390 = sbr.rel (%p388) target = $region60
        $region59: #{tpu_custom_call.1} parent=11 // pred_region
          _
        $region60: #{tpu_custom_call.1} parent=11 // pred_fallthru
          _
      $region12: #{tpu_custom_call.1} parent=5 // pred_fallthru
        _
      %p391 = scmp.lt.s32.totalorder %s22, 2
      // Predicated region
      $region61: #{tpu_custom_call.1} parent=5 // pred_check
        %p392 = pneg %p391
      $region62: #{tpu_custom_call.1} parent=5 // pred_check_branch
        %394 = sbr.rel (%p392) target = $region64
      $region63: #{tpu_custom_call.1} parent=5 // pred_region
        // Predicated region
        $region65: #{tpu_custom_call.1} parent=63 // pred_check
          %p395 = pneg %p54
        $region66: #{tpu_custom_call.1} parent=63 // pred_check_branch
          %397 = sbr.rel (%p395) target = $region68
        $region67: #{tpu_custom_call.1} parent=63 // pred_region
          %p398 = scmp.lt.s32.totalorder %s29, 1
          %s399 = scalar_select %p398, %s29, 1
          %s400 = smul.addr %s399, 8
          %s401 = scalar_lea.vmem %s0, %s400
        $region68: #{tpu_custom_call.1} parent=63 // pred_fallthru
          _
      $region64: #{tpu_custom_call.1} parent=5 // pred_fallthru
        _
      %p402 = scmp.le.s32.totalorder 1, %s22
      %p403 = scmp.lt.s32.totalorder %s22, 3
      %p404 = pnand %p402, %p403
      %p405 = pneg %p404
      // Predicated region
      $region69: #{tpu_custom_call.1} parent=5 // pred_check
        _
      $region70: #{tpu_custom_call.1} parent=5 // pred_check_branch
        %407 = sbr.rel (%p404) target = $region72
      $region71: #{tpu_custom_call.1} parent=5 // pred_region
        %s408 = ssub.s32 %s22, 1
        %p409 = scmp.lt.s32.totalorder %s31, 1
        %s410 = scalar_select %p409, %s31, 1
        %s411 = smul.addr %s410, 8
        %s412 = scalar_lea.vmem %s0, %s411
        %p413 = pneg %p60
        %p414 = pneg %p57
        %p415 = pneg %p81
        %p416 = pneg %p78
        %p417 = pneg %p102
        %p418 = pneg %p99
        %p419 = pneg %p123
        %p420 = pneg %p120
        %p421 = pneg %p144
        %p422 = pneg %p141
        %p423 = pneg %p165
        %p424 = pneg %p162
        %p425 = pneg %p186
        %p426 = pneg %p183
        %p427 = pneg %p207
        %p428 = pneg %p204
        %p429 = pneg %p228
        %p430 = pneg %p225
        %p431 = pneg %p249
        %p432 = pneg %p246
        %p433 = pneg %p270
        %p434 = pneg %p267
        %p435 = pneg %p291
        %p436 = pneg %p288
        %p437 = pneg %p312
        %p438 = pneg %p309
        %p439 = pneg %p340
        %p440 = pneg %p337
        %s441 = sand.u32 %s327, 1
        %s442 = scalar_lea.sflag [#allocation5], %s441
        %s443 = sand.u32 %s327, 1
        %s444 = smul.addr %s443, 8
        %s445 = scalar_lea.vmem [#allocation4], %s444
        %p446 = scmp.lt.s32.totalorder %s31, 1
        %s447 = scalar_select %p446, %s31, 1
        %s448 = smul.addr %s447, 8
        %s449 = scalar_lea.vmem %s0, %s448
        %p451 = scmp.eq.s32.totalorder %s32, 0
        // Predicated region
        $region73: #{tpu_custom_call.1} parent=71 // pred_check
          %p452 = pneg %p451
        $region74: #{tpu_custom_call.1} parent=71 // pred_check_branch
          %454 = sbr.rel (%p452) target = $region76
        $region75: #{tpu_custom_call.1} parent=71 // pred_region
          %v455 = vld [vmem:[%s449] sm:$0xff]
          %v456 = vld [vmem:[%s1] sm:$0x1]
          %v457 = vld [vmem:[%s2] sm:$0x1]
          %vm458 = vcmask 261120
          %v459 = vsel %vm458, %v455, 0.0
          %460 = vadd.xlane.f32.xlu0 %v459
          %v461 = vpop.xlane.xlu0 %460
          %v462 = vrcp.pop 32.0
          %v463 = vmul.f32 32.0, %v462
          %v464 = vsub.f32 1.0, %v463
          %v465 = vmul.f32 %v462, %v464
          %v466 = vadd.f32 %v462, %v465
          %vm467 = vweird.f32 %v462
          %v468 = vsel %vm467, %v462, %v466
          %v469 = vmul.f32 %v461, %v468
          %v470 = vsub.f32 %v455, %v469
          %v471 = vmul.f32 %v470, %v470
          %v472 = vsel %vm458, %v471, 0.0
          %473 = vadd.xlane.f32.xlu0 %v472
          %v474 = vpop.xlane.xlu0 %473
          %v475 = vmul.f32 %v474, %v468
          %v476 = vadd.f32 %v475, 1e-05
          %v477 = vrsqrt.pop %v476
          %v478 = vmul.f32 %v477, %v476
          %v479 = vmul.f32 %v478, %v477
          %v480 = vmul.f32 0.5, %v479
          %v481 = vsub.f32 1.5, %v480
          %v482 = vmul.f32 %v477, %v481
          %vm483 = vweird.f32 %v476
          %vm484 = vweird.f32 %v477
          %vm485 = vmor %vm483, %vm484
          %v486 = vsel %vm485, %v477, %v482
          %v487 = vmul.f32 %v470, %v486
          %v489 = vperm.slane %v456, 0
          %v491 = vmul.f32 %v487, %v489
          %v493 = vperm.slane %v457, 0
          %v495 = vadd.f32 %v491, %v493
          %v496 = vpack.c.bf16 %v495, %v495
          %v497 = vld [vmem:[%s3] sm:$0xf]
          %v498 = vld [vmem:[%s3 + $0x4] sm:$0xf]
          %v499 = vld [vmem:[%s3 + $0x8] sm:$0xf]
          %v500 = vld [vmem:[%s3 + $0xc] sm:$0xf]
          %v501 = vld [vmem:[%s4] sm:$0x1]
          %v503 = vperm.slane %v501, 0
          %v509 = vunpack.c.l.b16 %v497
          %v510 = vunpack.c.l.b16 %v498
          %v511 = vunpack.c.l.b16 %v499
          %v512 = vunpack.c.l.b16 %v500
          %v513 = vpack.c.b16 %v510, %v509
          %v514 = vpack.c.b16 %v512, %v511
          %v518 = vsel %vm458, %v496, 0
          %520 = vmatpush.bf16.msra.mxu0 0
          %521 = vmatpush.bf16.msra.mxu0 0
          %522 = vmatpush.bf16.msra.mxu0 0
          %523 = vmatpush.bf16.msra.mxu0 0
          %524 = vmatpush.bf16.msra.mxu0 0
          %525 = vmatpush.bf16.msra.mxu0 0
          %526 = vmatpush.bf16.msra.mxu0 %v514
          %527 = vmatpush.bf16.msra.mxu0 %v513
          %528 = vmatmul.bf16.gmra.mxu0 %v518
          %v529 = vpop.f32.mrf.mxu0
          %v530 = vadd.f32 %v503, %v529
          %v531 = vpop.f32.mrf.mxu0
          %532 = vdwg.mxu0
          %v533 = vpack.c.bf16 %v530, %v530
          %vm534 = vcmask 781312
          %535 = vst.msk [vmem:[#allocation2] sm:$0xf] %vm534, %v533
        $region76: #{tpu_custom_call.1} parent=71 // pred_fallthru
          _
        %s536 = smul.u32 %s32, 8
        %s537 = scalar_lea.vmem %s449, %s536
        %v538 = vld [vmem:[%s537] sm:$0xff]
        %v539 = vlaneseq
        %v540 = vshrl.u32 %v539, 7
        %v541 = vstv %s536
        %v542 = vadd.s32 %v541, %v540
        %v543 = vlaneseq
        %v544 = vand.u32 %v543, 127
        %vm545 = vcmp.le.s32.totalorder %v544, %v542
        %s546 = sshra.s32 %s536, 3
        %s547 = sand.u32 %s536, 7
        %s548 = smul.addr %s546, 4
        %s549 = scalar_lea.vmem [#allocation2], %s548
        %v550 = vld [vmem:[%s549] sm:$0xf]
        %v551 = vld [vmem:[#allocation2] sm:$0xf]
        %v553 = vunpack.c.l.b16 %v551
        %v554 = vpack.c.b16 %v553, %v553
        %555 = vrot.lane.b32.xlu0 %v554, 96
        %v556 = vpop.permute.xlu0 %555
        %vm557 = vcmask 64512
        %v559 = vsel %vm557, %v550, 0
        %v562 = vsel %vm557, %v556, 0
        %564 = vmatpush.bf16.xpose.msra.mxu0 0
        %565 = vmatpush.bf16.xpose.msra.mxu0 0
        %566 = vmatpush.bf16.xpose.msra.mxu0 0
        %567 = vmatpush.bf16.xpose.msra.mxu0 0
        %568 = vmatpush.bf16.xpose.msra.mxu0 0
        %569 = vmatpush.bf16.xpose.msra.mxu0 0
        %570 = vmatpush.bf16.xpose.msra.mxu0 0
        %571 = vmatpush.bf16.xpose.msra.mxu0 %v562
        %572 = vmatmul.bf16.gmra.mxu0 %v559
        %v573 = vpop.f32.mrf.mxu0
        %v574 = vadd.f32 0.0, %v573
        %v575 = vpop.f32.mrf.mxu0
        %576 = vdwg.mxu0
        %v577 = vmul.f32 %v574, 0.35355338
        %v578 = vsel %vm545, %v577, -10000.0
        %v579 = vsel %vm557, %v578, -inf
        %580 = vmax.xlane.f32.xlu0 %v579
        %v581 = vpop.xlane.xlu0 %580
        %v582 = vsub.f32 %v578, %v581
        %v583 = vmul.f32 %v582, 1.442695
        %v584 = vpow.pop %v583
        %v585 = vsel %vm557, %v584, 0.0
        %586 = vadd.xlane.f32.xlu0 %v585
        %v587 = vpop.xlane.xlu0 %586
        %v588 = vrcp.pop %v587
        %v589 = vmul.f32 %v584, %v588
        %v590 = vpack.c.bf16 %v589, %v589
        %591 = vrot.lane.b32.xlu0 %v554, 64
        %v592 = vpop.permute.xlu0 %591
        %v594 = vsel %vm557, %v590, 0
        %vm596 = vcmask 1043456
        %v598 = vsel %vm596, %v592, 0
        %600 = vmatpush.bf16.msra.mxu0 0
        %601 = vmatpush.bf16.msra.mxu0 0
        %602 = vmatpush.bf16.msra.mxu0 0
        %603 = vmatpush.bf16.msra.mxu0 0
        %604 = vmatpush.bf16.msra.mxu0 0
        %605 = vmatpush.bf16.msra.mxu0 0
        %606 = vmatpush.bf16.msra.mxu0 0
        %607 = vmatpush.bf16.msra.mxu0 %v598
        %608 = vmatmul.bf16.gmra.mxu0 %v594
        %v609 = vpop.f32.mrf.mxu0
        %v610 = vadd.f32 0.0, %v609
        %v611 = vpop.f32.mrf.mxu0
        %612 = vdwg.mxu0
        %v613 = vpack.c.bf16 %v610, %v610
        %vm614 = vcmask 60416
        %615 = vst.msk [vmem:[#allocation3] sm:$0xf] %vm614, %v613
        %v616 = vld [vmem:[%s549] sm:$0xf]
        %v617 = vld [vmem:[#allocation2] sm:$0xf]
        %v619 = vunpack.c.l.b16 %v616
        %v620 = vpack.c.b16 %v619, %v619
        %621 = vrot.lane.b32.xlu0 %v620, 120
        %v622 = vpop.permute.xlu0 %621
        %v624 = vunpack.c.l.b16 %v617
        %v625 = vpack.c.b16 %v624, %v624
        %626 = vrot.lane.b32.xlu0 %v625, 88
        %v627 = vpop.permute.xlu0 %626
        %v629 = vsel %vm557, %v622, 0
        %v632 = vsel %vm557, %v627, 0
        %634 = vmatpush.bf16.xpose.msra.mxu0 0
        %635 = vmatpush.bf16.xpose.msra.mxu0 0
        %636 = vmatpush.bf16.xpose.msra.mxu0 0
        %637 = vmatpush.bf16.xpose.msra.mxu0 0
        %638 = vmatpush.bf16.xpose.msra.mxu0 0
        %639 = vmatpush.bf16.xpose.msra.mxu0 0
        %640 = vmatpush.bf16.xpose.msra.mxu0 0
        %641 = vmatpush.bf16.xpose.msra.mxu0 %v632
        %642 = vmatmul.bf16.gmra.mxu0 %v629
        %v643 = vpop.f32.mrf.mxu0
        %v644 = vadd.f32 0.0, %v643
        %v645 = vpop.f32.mrf.mxu0
        %646 = vdwg.mxu0
        %v647 = vmul.f32 %v644, 0.35355338
        %v648 = vsel %vm545, %v647, -10000.0
        %v649 = vsel %vm557, %v648, -inf
        %650 = vmax.xlane.f32.xlu0 %v649
        %v651 = vpop.xlane.xlu0 %650
        %v652 = vsub.f32 %v648, %v651
        %v653 = vmul.f32 %v652, 1.442695
        %v654 = vpow.pop %v653
        %v655 = vsel %vm557, %v654, 0.0
        %656 = vadd.xlane.f32.xlu0 %v655
        %v657 = vpop.xlane.xlu0 %656
        %v658 = vrcp.pop %v657
        %v659 = vmul.f32 %v654, %v658
        %v660 = vpack.c.bf16 %v659, %v659
        %661 = vrot.lane.b32.xlu0 %v625, 56
        %v662 = vpop.permute.xlu0 %661
        %v664 = vsel %vm557, %v660, 0
        %v667 = vsel %vm596, %v662, 0
        %669 = vmatpush.bf16.msra.mxu0 0
        %670 = vmatpush.bf16.msra.mxu0 0
        %671 = vmatpush.bf16.msra.mxu0 0
        %672 = vmatpush.bf16.msra.mxu0 0
        %673 = vmatpush.bf16.msra.mxu0 0
        %674 = vmatpush.bf16.msra.mxu0 0
        %675 = vmatpush.bf16.msra.mxu0 0
        %676 = vmatpush.bf16.msra.mxu0 %v667
        %677 = vmatmul.bf16.gmra.mxu0 %v664
        %v678 = vpop.f32.mrf.mxu0
        %v679 = vadd.f32 0.0, %v678
        %v680 = vpop.f32.mrf.mxu0
        %681 = vdwg.mxu0
        %v682 = vpack.c.bf16 %v679, %v679
        %684 = vrot.lane.b32.xlu0 %v682, 8
        %v685 = vpop.permute.xlu0 %684
        %vm687 = vcmask 126016
        %688 = vst.msk [vmem:[#allocation3] sm:$0xf] %vm687, %v685
        %v689 = vld [vmem:[%s549] sm:$0xf]
        %v690 = vld [vmem:[#allocation2] sm:$0xf]
        %v692 = vunpack.c.l.b16 %v689
        %v693 = vpack.c.b16 %v692, %v692
        %694 = vrot.lane.b32.xlu0 %v693, 112
        %v695 = vpop.permute.xlu0 %694
        %v697 = vunpack.c.l.b16 %v690
        %v698 = vpack.c.b16 %v697, %v697
        %699 = vrot.lane.b32.xlu0 %v698, 80
        %v700 = vpop.permute.xlu0 %699
        %v702 = vsel %vm557, %v695, 0
        %v705 = vsel %vm557, %v700, 0
        %707 = vmatpush.bf16.xpose.msra.mxu0 0
        %708 = vmatpush.bf16.xpose.msra.mxu0 0
        %709 = vmatpush.bf16.xpose.msra.mxu0 0
        %710 = vmatpush.bf16.xpose.msra.mxu0 0
        %711 = vmatpush.bf16.xpose.msra.mxu0 0
        %712 = vmatpush.bf16.xpose.msra.mxu0 0
        %713 = vmatpush.bf16.xpose.msra.mxu0 0
        %714 = vmatpush.bf16.xpose.msra.mxu0 %v705
        %715 = vmatmul.bf16.gmra.mxu0 %v702
        %v716 = vpop.f32.mrf.mxu0
        %v717 = vadd.f32 0.0, %v716
        %v718 = vpop.f32.mrf.mxu0
        %719 = vdwg.mxu0
        %v720 = vmul.f32 %v717, 0.35355338
        %v721 = vsel %vm545, %v720, -10000.0
        %v722 = vsel %vm557, %v721, -inf
        %723 = vmax.xlane.f32.xlu0 %v722
        %v724 = vpop.xlane.xlu0 %723
        %v725 = vsub.f32 %v721, %v724
        %v726 = vmul.f32 %v725, 1.442695
        %v727 = vpow.pop %v726
        %v728 = vsel %vm557, %v727, 0.0
        %729 = vadd.xlane.f32.xlu0 %v728
        %v730 = vpop.xlane.xlu0 %729
        %v731 = vrcp.pop %v730
        %v732 = vmul.f32 %v727, %v731
        %v733 = vpack.c.bf16 %v732, %v732
        %734 = vrot.lane.b32.xlu0 %v698, 48
        %v735 = vpop.permute.xlu0 %734
        %v737 = vsel %vm557, %v733, 0
        %v740 = vsel %vm596, %v735, 0
        %742 = vmatpush.bf16.msra.mxu0 0
        %743 = vmatpush.bf16.msra.mxu0 0
        %744 = vmatpush.bf16.msra.mxu0 0
        %745 = vmatpush.bf16.msra.mxu0 0
        %746 = vmatpush.bf16.msra.mxu0 0
        %747 = vmatpush.bf16.msra.mxu0 0
        %748 = vmatpush.bf16.msra.mxu0 0
        %749 = vmatpush.bf16.msra.mxu0 %v740
        %750 = vmatmul.bf16.gmra.mxu0 %v737
        %v751 = vpop.f32.mrf.mxu0
        %v752 = vadd.f32 0.0, %v751
        %v753 = vpop.f32.mrf.mxu0
        %754 = vdwg.mxu0
        %v755 = vpack.c.bf16 %v752, %v752
        %757 = vrot.lane.b32.xlu0 %v755, 16
        %v758 = vpop.permute.xlu0 %757
        %vm760 = vcmask 191616
        %761 = vst.msk [vmem:[#allocation3] sm:$0xf] %vm760, %v758
        %v762 = vld [vmem:[%s549] sm:$0xf]
        %v763 = vld [vmem:[#allocation2] sm:$0xf]
        %v765 = vunpack.c.l.b16 %v762
        %v766 = vpack.c.b16 %v765, %v765
        %767 = vrot.lane.b32.xlu0 %v766, 104
        %v768 = vpop.permute.xlu0 %767
        %v770 = vunpack.c.l.b16 %v763
        %v771 = vpack.c.b16 %v770, %v770
        %772 = vrot.lane.b32.xlu0 %v771, 72
        %v773 = vpop.permute.xlu0 %772
        %v775 = vsel %vm557, %v768, 0
        %v778 = vsel %vm557, %v773, 0
        %780 = vmatpush.bf16.xpose.msra.mxu0 0
        %781 = vmatpush.bf16.xpose.msra.mxu0 0
        %782 = vmatpush.bf16.xpose.msra.mxu0 0
        %783 = vmatpush.bf16.xpose.msra.mxu0 0
        %784 = vmatpush.bf16.xpose.msra.mxu0 0
        %785 = vmatpush.bf16.xpose.msra.mxu0 0
        %786 = vmatpush.bf16.xpose.msra.mxu0 0
        %787 = vmatpush.bf16.xpose.msra.mxu0 %v778
        %788 = vmatmul.bf16.gmra.mxu0 %v775
        %v789 = vpop.f32.mrf.mxu0
        %v790 = vadd.f32 0.0, %v789
        %v791 = vpop.f32.mrf.mxu0
        %792 = vdwg.mxu0
        %v793 = vmul.f32 %v790, 0.35355338
        %v794 = vsel %vm545, %v793, -10000.0
        %v795 = vsel %vm557, %v794, -inf
        %796 = vmax.xlane.f32.xlu0 %v795
        %v797 = vpop.xlane.xlu0 %796
        %v798 = vsub.f32 %v794, %v797
        %v799 = vmul.f32 %v798, 1.442695
        %v800 = vpow.pop %v799
        %v801 = vsel %vm557, %v800, 0.0
        %802 = vadd.xlane.f32.xlu0 %v801
        %v803 = vpop.xlane.xlu0 %802
        %v804 = vrcp.pop %v803
        %v805 = vmul.f32 %v800, %v804
        %v806 = vpack.c.bf16 %v805, %v805
        %807 = vrot.lane.b32.xlu0 %v771, 40
        %v808 = vpop.permute.xlu0 %807
        %v810 = vsel %vm557, %v806, 0
        %v813 = vsel %vm596, %v808, 0
        %815 = vmatpush.bf16.msra.mxu0 0
        %816 = vmatpush.bf16.msra.mxu0 0
        %817 = vmatpush.bf16.msra.mxu0 0
        %818 = vmatpush.bf16.msra.mxu0 0
        %819 = vmatpush.bf16.msra.mxu0 0
        %820 = vmatpush.bf16.msra.mxu0 0
        %821 = vmatpush.bf16.msra.mxu0 0
        %822 = vmatpush.bf16.msra.mxu0 %v813
        %823 = vmatmul.bf16.gmra.mxu0 %v810
        %v824 = vpop.f32.mrf.mxu0
        %v825 = vadd.f32 0.0, %v824
        %v826 = vpop.f32.mrf.mxu0
        %827 = vdwg.mxu0
        %v828 = vpack.c.bf16 %v825, %v825
        %830 = vrot.lane.b32.xlu0 %v828, 24
        %v831 = vpop.permute.xlu0 %830
        %vm833 = vcmask 257216
        %834 = vst.msk [vmem:[#allocation3] sm:$0xf] %vm833, %v831
        %v835 = vld [vmem:[#allocation3] sm:$0xf]
        %v836 = vld [vmem:[%s5] sm:$0xf]
        %v837 = vld [vmem:[%s5 + $0x4] sm:$0xf]
        %v838 = vld [vmem:[%s5 + $0x8] sm:$0xf]
        %v839 = vld [vmem:[%s5 + $0xc] sm:$0xf]
        %v840 = vld [vmem:[%s6] sm:$0x1]
        %v842 = vperm.slane %v840, 0
        %v848 = vunpack.c.l.b16 %v836
        %v849 = vunpack.c.l.b16 %v837
        %v850 = vunpack.c.l.b16 %v838
        %v851 = vunpack.c.l.b16 %v839
        %v852 = vpack.c.b16 %v849, %v848
        %v853 = vpack.c.b16 %v851, %v850
        %vm856 = vcmask 261120
        %v858 = vsel %vm856, %v835, 0
        %860 = vmatpush.bf16.msra.mxu0 0
        %861 = vmatpush.bf16.msra.mxu0 0
        %862 = vmatpush.bf16.msra.mxu0 0
        %863 = vmatpush.bf16.msra.mxu0 0
        %864 = vmatpush.bf16.msra.mxu0 0
        %865 = vmatpush.bf16.msra.mxu0 0
        %866 = vmatpush.bf16.msra.mxu0 %v853
        %867 = vmatpush.bf16.msra.mxu0 %v852
        %868 = vmatmul.bf16.gmra.mxu0 %v858
        %v869 = vpop.f32.mrf.mxu0
        %v870 = vadd.f32 %v842, %v869
        %v871 = vpop.f32.mrf.mxu0
        %872 = vdwg.mxu0
        %v873 = vadd.f32 %v538, %v870
        %v874 = vld [vmem:[%s7] sm:$0x1]
        %v875 = vld [vmem:[%s8] sm:$0x1]
        %v876 = vsel %vm856, %v873, 0.0
        %877 = vadd.xlane.f32.xlu0 %v876
        %v878 = vpop.xlane.xlu0 %877
        %v879 = vrcp.pop 32.0
        %v880 = vmul.f32 32.0, %v879
        %v881 = vsub.f32 1.0, %v880
        %v882 = vmul.f32 %v879, %v881
        %v883 = vadd.f32 %v879, %v882
        %vm884 = vweird.f32 %v879
        %v885 = vsel %vm884, %v879, %v883
        %v886 = vmul.f32 %v878, %v885
        %v887 = vsub.f32 %v873, %v886
        %v888 = vmul.f32 %v887, %v887
        %v889 = vsel %vm856, %v888, 0.0
        %890 = vadd.xlane.f32.xlu0 %v889
        %v891 = vpop.xlane.xlu0 %890
        %v892 = vmul.f32 %v891, %v885
        %v893 = vadd.f32 %v892, 1e-05
        %v894 = vrsqrt.pop %v893
        %v895 = vmul.f32 %v894, %v893
        %v896 = vmul.f32 %v895, %v894
        %v897 = vmul.f32 0.5, %v896
        %v898 = vsub.f32 1.5, %v897
        %v899 = vmul.f32 %v894, %v898
        %vm900 = vweird.f32 %v893
        %vm901 = vweird.f32 %v894
        %vm902 = vmor %vm900, %vm901
        %v903 = vsel %vm902, %v894, %v899
        %v904 = vmul.f32 %v887, %v903
        %v906 = vperm.slane %v874, 0
        %v908 = vmul.f32 %v904, %v906
        %v910 = vperm.slane %v875, 0
        %v912 = vadd.f32 %v908, %v910
        %v913 = vpack.c.bf16 %v912, %v912
        %v914 = vld [vmem:[%s9] sm:$0xf]
        %v915 = vld [vmem:[%s9 + $0x4] sm:$0xf]
        %v916 = vld [vmem:[%s9 + $0x8] sm:$0xf]
        %v917 = vld [vmem:[%s9 + $0xc] sm:$0xf]
        %v918 = vld [vmem:[%s10] sm:$0x1]
        %v920 = vperm.slane %v918, 0
        %v926 = vunpack.c.l.b16 %v914
        %v927 = vunpack.c.l.b16 %v915
        %v928 = vunpack.c.l.b16 %v916
        %v929 = vunpack.c.l.b16 %v917
        %v930 = vpack.c.b16 %v927, %v926
        %v931 = vpack.c.b16 %v929, %v928
        %v935 = vsel %vm856, %v913, 0
        %937 = vmatpush.bf16.msra.mxu0 0
        %938 = vmatpush.bf16.msra.mxu0 0
        %939 = vmatpush.bf16.msra.mxu0 0
        %940 = vmatpush.bf16.msra.mxu0 0
        %941 = vmatpush.bf16.msra.mxu0 0
        %942 = vmatpush.bf16.msra.mxu0 0
        %943 = vmatpush.bf16.msra.mxu0 %v931
        %944 = vmatpush.bf16.msra.mxu0 %v930
        %945 = vmatmul.bf16.gmra.mxu0 %v935
        %v946 = vpop.f32.mrf.mxu0
        %v947 = vadd.f32 %v920, %v946
        %v948 = vpop.f32.mrf.mxu0
        %949 = vdwg.mxu0
        %v950 = vmul.f32 %v947, 0.5
        %v951 = vmul.f32 %v947, %v947
        %v952 = vmul.f32 %v947, %v951
        %v953 = vmul.f32 %v952, 0.044715
        %v954 = vadd.f32 %v947, %v953
        %v955 = vmul.f32 %v954, 0.7978846
        %v956 = vtanh.pop %v955
        %v957 = vadd.f32 %v956, 1.0
        %v958 = vmul.f32 %v950, %v957
        %v959 = vpack.c.bf16 %v958, %v958
        %v960 = vld [vmem:[%s11] sm:$0xf]
        %v961 = vld [vmem:[%s11 + $0x4] sm:$0xf]
        %v962 = vld [vmem:[%s11 + $0x8] sm:$0xf]
        %v963 = vld [vmem:[%s11 + $0xc] sm:$0xf]
        %v964 = vld [vmem:[%s11 + $0x10] sm:$0xf]
        %v965 = vld [vmem:[%s11 + $0x14] sm:$0xf]
        %v966 = vld [vmem:[%s11 + $0x18] sm:$0xf]
        %v967 = vld [vmem:[%s11 + $0x1c] sm:$0xf]
        %v968 = vld [vmem:[%s11 + $0x20] sm:$0xf]
        %v969 = vld [vmem:[%s11 + $0x24] sm:$0xf]
        %v970 = vld [vmem:[%s11 + $0x28] sm:$0xf]
        %v971 = vld [vmem:[%s11 + $0x2c] sm:$0xf]
        %v972 = vld [vmem:[%s11 + $0x30] sm:$0xf]
        %v973 = vld [vmem:[%s11 + $0x34] sm:$0xf]
        %v974 = vld [vmem:[%s11 + $0x38] sm:$0xf]
        %v975 = vld [vmem:[%s11 + $0x3c] sm:$0xf]
        %v992 = vunpack.c.l.b16 %v960
        %v993 = vunpack.c.l.b16 %v961
        %v994 = vunpack.c.l.b16 %v962
        %v995 = vunpack.c.l.b16 %v963
        %v996 = vunpack.c.l.b16 %v964
        %v997 = vunpack.c.l.b16 %v965
        %v998 = vunpack.c.l.b16 %v966
        %v999 = vunpack.c.l.b16 %v967
        %v1000 = vunpack.c.l.b16 %v968
        %v1001 = vunpack.c.l.b16 %v969
        %v1002 = vunpack.c.l.b16 %v970
        %v1003 = vunpack.c.l.b16 %v971
        %v1004 = vunpack.c.l.b16 %v972
        %v1005 = vunpack.c.l.b16 %v973
        %v1006 = vunpack.c.l.b16 %v974
        %v1007 = vunpack.c.l.b16 %v975
        %v1008 = vpack.c.b16 %v993, %v992
        %v1009 = vpack.c.b16 %v995, %v994
        %v1010 = vpack.c.b16 %v997, %v996
        %v1011 = vpack.c.b16 %v999, %v998
        %v1012 = vpack.c.b16 %v1001, %v1000
        %v1013 = vpack.c.b16 %v1003, %v1002
        %v1014 = vpack.c.b16 %v1005, %v1004
        %v1015 = vpack.c.b16 %v1007, %v1006
        %1024 = vmatpush.bf16.msra.mxu0 %v1015
        %1025 = vmatpush.bf16.msra.mxu0 %v1014
        %1026 = vmatpush.bf16.msra.mxu0 %v1013
        %1027 = vmatpush.bf16.msra.mxu0 %v1012
        %1028 = vmatpush.bf16.msra.mxu0 %v1011
        %1029 = vmatpush.bf16.msra.mxu0 %v1010
        %1030 = vmatpush.bf16.msra.mxu0 %v1009
        %1031 = vmatpush.bf16.msra.mxu0 %v1008
        %1032 = vmatmul.bf16.gmra.mxu0 %v959
        %v1033 = vpop.f32.mrf.mxu0
        %v1034 = vadd.f32 0.0, %v1033
        %v1035 = vpop.f32.mrf.mxu0
        %1036 = vdwg.mxu0
        %v1037 = vadd.f32 %v873, %v1034
        %v1038 = vld [vmem:[%s12] sm:$0x1]
        %v1040 = vperm.slane %v1038, 0
        %v1042 = vadd.f32 %v1037, %v1040
        %1043 = vst.msk [vmem:[%s445] sm:$0xff] %vm856, %v1042
        %s1044 = sand.u32 %s327, 1
        %s1045 = scalar_lea.sflag [#allocation5], %s1044
        %s1046 = sand.u32 %s327, 1
        %s1047 = smul.addr %s1046, 8
        %s1048 = scalar_lea.vmem [#allocation4], %s1047
        // Predicated region
        $region77: #{tpu_custom_call.1} parent=71 // pred_check
          %p1049 = pneg %p337
        $region78: #{tpu_custom_call.1} parent=71 // pred_check_branch
          %1051 = sbr.rel (%p1049) target = $region80
        $region79: #{tpu_custom_call.1} parent=71 // pred_region
          %1053 = vsyncadd %s1045, 0
          %s1054 = sadd.s32 %s32, %s31
          %s1055 = smul.addr %s1054, 8
          %s1056 = scalar_lea.hbm %s13, %s1055
          %s1058 = sshll.u32 %s1048, 4
          %s1059 = int_to_ptr.vmem [resolvable:$true] %s1058
          %s1060 = sshll.u32 %s1056, 4
          %s1061 = int_to_ptr.hbm [resolvable:$true] %s1060
          %1063 = dma.vmem_to_hbm [thread:$0]  %s1059, 128, %s1061, %s1045
        $region80: #{tpu_custom_call.1} parent=71 // pred_fallthru
          _
      $region72: #{tpu_custom_call.1} parent=5 // pred_fallthru
        _
      %p1064 = scmp.le.s32.totalorder 2, %s22
      // Predicated region
      $region81: #{tpu_custom_call.1} parent=5 // pred_check
        %p1065 = pneg %p1064
      $region82: #{tpu_custom_call.1} parent=5 // pred_check_branch
        %1067 = sbr.rel (%p1065) target = $region84
      $region83: #{tpu_custom_call.1} parent=5 // pred_region
        %s1068 = ssub.s32 %s22, 2
        // Predicated region
        $region85: #{tpu_custom_call.1} parent=83 // pred_check
          %p1069 = pneg %p343
        $region86: #{tpu_custom_call.1} parent=83 // pred_check_branch
          %1071 = sbr.rel (%p1069) target = $region88
        $region87: #{tpu_custom_call.1} parent=83 // pred_region
          %s1072 = sand.u32 %s328, 1
          %s1073 = scalar_lea.sflag [#allocation5], %s1072
          %s1074 = sand.u32 %s328, 1
          %s1075 = smul.addr %s1074, 8
          %s1076 = scalar_lea.vmem [#allocation4], %s1075
          %1078 = dma.done %s1073, 128
        $region88: #{tpu_custom_call.1} parent=83 // pred_fallthru
          _
      $region84: #{tpu_custom_call.1} parent=5 // pred_fallthru
        _
    $region6: #{tpu_custom_call.1} parent=1 // loop_footer
      %s26 = sadd.s32 1, %s22
    $region7: #{tpu_custom_call.1} parent=1 // loop_footer_branch
      %21 = sbr.rel target = $region3
    $region8: #{tpu_custom_call.1} parent=1 // loop_exit
      _
    %1079 = vsyncpa [#allocation5], 1
    %s1080 = scalar_lea.sflag [#allocation5], 1
    %1081 = vsyncpa %s1080, 1

</llo_original>
